<compile_context>
chip_gen: v6e
topology: v6e:2x2x1
jax: 0.10.0
libtpu: 0.0.40
codegen_flags: <defaults>
</compile_context>

<pallas_src>
import jax
import jax.numpy as jnp
from jax.experimental import pallas as pl
from jax.experimental.pallas import tpu as pltpu


def _round_up(x, m):
    return ((x + m - 1) // m) * m


# ----------------------------------------------------------------------------
# Conv layer kernel: im2col GEMM + bias + ReLU + fused 2x2 max-pool
# ----------------------------------------------------------------------------
def _conv_gemm_pool_kernel(p_ref, w_ref, b_ref, o_ref):
    """p_ref: (1, 4, Np, K) bf16 im2col patches (4 = the 2x2 pool taps)
       w_ref: (K, Cout) bf16 (resident), b_ref: (1, Cout) f32 (resident)
       o_ref: (1, Np, Cout) bf16 pooled activations."""
    w = w_ref[...]
    b = b_ref[...]

    def tap(t):
        h = jnp.dot(p_ref[0, t], w, preferred_element_type=jnp.float32)
        return jnp.maximum(h + b, 0.0)            # bias + ReLU in f32

    # max over the four pool taps == MaxPool2d(2)(ReLU(conv + bias))
    pooled = jnp.maximum(jnp.maximum(tap(0), tap(1)),
                         jnp.maximum(tap(2), tap(3)))
    o_ref[0] = pooled.astype(o_ref.dtype)


def _conv_relu_pool(x_nhwc, w_hwio, bias, *, compute_dtype=jnp.bfloat16):
    """Valid KxK conv (stride 1) + bias + ReLU + 2x2/2 max-pool via Pallas.
    x_nhwc: (B, H, W, Cin); w_hwio: (KH, KW, Cin, Cout); bias: (Cout,)
    Returns (B, PH, PW, Cout)."""
    B, H, W, Cin = x_nhwc.shape
    KH, KW, _, Cout = w_hwio.shape
    OH, OW = H - KH + 1, W - KW + 1
    PH, PW = OH // 2, OW // 2
    Np = PH * PW
    K = KH * KW * Cin

    # TODO(synk): im2col / pool-tap window extraction is plain XLA strided
    # slicing in the wrapper (a strided window gather is not expressible with a
    # BlockSpec); all FLOPs run inside the Pallas kernel.
    taps = []
    for dy in range(2):
        for dx in range(2):
            cols = []
            for ky in range(KH):
                for kx in range(KW):
                    y0, x0 = dy + ky, dx + kx
                    sl = jax.lax.slice(
                        x_nhwc,
                        (0, y0, x0, 0),
                        (B, y0 + 2 * (PH - 1) + 1, x0 + 2 * (PW - 1) + 1, Cin),
                        (1, 2, 2, 1))                      # (B, PH, PW, Cin)
                    cols.append(sl.reshape(B, Np, Cin))
            taps.append(jnp.concatenate(cols, axis=-1))     # (B, Np, K)
    patches = jnp.stack(taps, axis=1).astype(compute_dtype)  # (B, 4, Np, K)

    w_mat = w_hwio.reshape(K, Cout).astype(compute_dtype)    # same (ky,kx,cin) order
    b_row = bias.reshape(1, Cout).astype(jnp.float32)

    cost = pl.CostEstimate(
        flops=2 * B * 4 * Np * K * Cout,
        transcendentals=0,
        bytes_accessed=(patches.size * patches.dtype.itemsize
                        + w_mat.size * w_mat.dtype.itemsize
                        + b_row.size * 4 + B * Np * Cout * 2))

    out = pl.pallas_call(
        _conv_gemm_pool_kernel,
        out_shape=jax.ShapeDtypeStruct((B, Np, Cout), compute_dtype),
        grid=(B,),
        in_specs=[
            pl.BlockSpec((1, 4, Np, K), lambda b: (b, 0, 0, 0)),
            pl.BlockSpec((K, Cout), lambda b: (0, 0)),       # weights VMEM-resident
            pl.BlockSpec((1, Cout), lambda b: (0, 0)),
        ],
        out_specs=pl.BlockSpec((1, Np, Cout), lambda b: (b, 0, 0)),
        compiler_params=pltpu.CompilerParams(dimension_semantics=("parallel",)),
        cost_estimate=cost,
    )(patches, w_mat, b_row)
    return out.reshape(B, PH, PW, Cout)


# ----------------------------------------------------------------------------
# FC head kernel: fc1 + ReLU + fc, batch-tiled, weights resident
# ----------------------------------------------------------------------------
def _fc_head_kernel(x_ref, w1_ref, b1_ref, w2_ref, b2_ref, o_ref):
    h = jnp.dot(x_ref[...], w1_ref[...], preferred_element_type=jnp.float32)
    h = jnp.maximum(h + b1_ref[...], 0.0)                  # fc1 bias + ReLU (f32)
    h = h.astype(w2_ref.dtype)                             # bf16 for the 2nd MXU pass
    logits = jnp.dot(h, w2_ref[...], preferred_element_type=jnp.float32)
    o_ref[...] = (logits + b2_ref[...]).astype(o_ref.dtype)


def _fc_head(x, w1, b1, w2, b2, *, compute_dtype=jnp.bfloat16, tile_m=512):
    """x: (B, D). Returns (B, num_classes) f32 logits."""
    B, D = x.shape
    Dh = w1.shape[1]
    C = w2.shape[1]
    Cp = _round_up(max(C, 128), 128)            # lane-dense, unmasked stores
    TM = min(tile_m, _round_up(B, 8))
    Bp = _round_up(B, TM)

    x_p = x if Bp == B else jnp.pad(x, ((0, Bp - B), (0, 0)))
    x_p = x_p.astype(compute_dtype)
    w1c = w1.astype(compute_dtype)
    b1r = b1.reshape(1, Dh).astype(jnp.float32)
    w2p = jnp.pad(w2, ((0, 0), (0, Cp - C))).astype(compute_dtype)
    b2p = jnp.pad(b2.reshape(1, C), ((0, 0), (0, Cp - C))).astype(jnp.float32)

    cost = pl.CostEstimate(
        flops=2 * Bp * (D * Dh + Dh * Cp),
        transcendentals=0,
        bytes_accessed=(x_p.size * 2 + w1c.size * 2 + w2p.size * 2
                        + b1r.size * 4 + b2p.size * 4 + Bp * Cp * 4))

    out = pl.pallas_call(
        _fc_head_kernel,
        out_shape=jax.ShapeDtypeStruct((Bp, Cp), jnp.float32),
        grid=(Bp // TM,),
        in_specs=[
            pl.BlockSpec((TM, D), lambda i: (i, 0)),         # batch-tiled activations
            pl.BlockSpec((D, Dh), lambda i: (0, 0)),         # weights stay resident
            pl.BlockSpec((1, Dh), lambda i: (0, 0)),
            pl.BlockSpec((Dh, Cp), lambda i: (0, 0)),
            pl.BlockSpec((1, Cp), lambda i: (0, 0)),
        ],
        out_specs=pl.BlockSpec((TM, Cp), lambda i: (i, 0)),
        compiler_params=pltpu.CompilerParams(dimension_semantics=("parallel",)),
        cost_estimate=cost,
    )(x_p, w1c, b1r, w2p, b2p)
    return out[:B, :C]


# ----------------------------------------------------------------------------
# Full forward pass
# ----------------------------------------------------------------------------
def cnn_forward(x_nchw, params, *, compute_dtype=jnp.bfloat16):
    """Pallas forward of the PyTorch CNN. Returns (B, num_classes) f32 logits."""
    (w_c1, b_c1, w_c2, b_c2, w_f1, b_f1, w_f2, b_f2) = params
    B = x_nchw.shape[0]

    x = jnp.transpose(x_nchw, (0, 2, 3, 1)).astype(jnp.float32)      # NCHW -> NHWC
    y1 = _conv_relu_pool(x, w_c1, b_c1, compute_dtype=compute_dtype)   # (B,12,12,32)
    y2 = _conv_relu_pool(y1, w_c2, b_c2, compute_dtype=compute_dtype)  # (B, 4, 4,64)

    # torch.flatten(out, 1) on NCHW orders features as (c, h, w)
    feat = jnp.transpose(y2, (0, 3, 1, 2)).reshape(B, -1)              # (B, 1024)
    return _fc_head(feat, w_f1, b_f1, w_f2, b_f2, compute_dtype=compute_dtype)


# ----------------------------------------------------------------------------
# Parameter init (mimics nn.Conv2d / nn.Linear defaults: U(+-1/sqrt(fan_in)))
# Conv weights stored HWIO, FC weights stored (in, out) -- layout permutations
# of torch's OIHW / (out, in); the computed function is identical.
# ----------------------------------------------------------------------------
def init_params(key, in_features=1, num_classes=10, dim=1024):
    ks = jax.random.split(key, 8)

    def u(k, shape, fan_in):
        bound = 1.0 / jnp.sqrt(float(fan_in))
        return jax.random.uniform(k, shape, jnp.float32, -bound, bound)

    w_c1 = u(ks[0], (5, 5, in_features, 32), 5 * 5 * in_features)
    b_c1 = u(ks[1], (32,), 5 * 5 * in_features)
    w_c2 = u(ks[2], (5, 5, 32, 64), 5 * 5 * 32)
    b_c2 = u(ks[3], (64,), 5 * 5 * 32)
    w_f1 = u(ks[4], (dim, 512), dim)
    b_f1 = u(ks[5], (512,), dim)
    w_f2 = u(ks[6], (512, num_classes), 512)
    b_f2 = u(ks[7], (num_classes,), 512)
    return (w_c1, b_c1, w_c2, b_c2, w_f1, b_f1, w_f2, b_f2)


# ----------------------------------------------------------------------------
# Plain-JAX reference (f32) of the PyTorch module
# ----------------------------------------------------------------------------
def reference_forward(x_nchw, params):
    (w_c1, b_c1, w_c2, b_c2, w_f1, b_f1, w_f2, b_f2) = params
    dn = ("NHWC", "HWIO", "NHWC")
    x = jnp.transpose(x_nchw, (0, 2, 3, 1)).astype(jnp.float32)
    y = jax.lax.conv_general_dilated(x, w_c1, (1, 1), "VALID", dimension_numbers=dn) + b_c1
    y = jnp.maximum(y, 0.0)
    y = jax.lax.reduce_window(y, -jnp.inf, jax.lax.max, (1, 2, 2, 1), (1, 2, 2, 1), "VALID")
    y = jax.lax.conv_general_dilated(y, w_c2, (1, 1), "VALID", dimension_numbers=dn) + b_c2
    y = jnp.maximum(y, 0.0)
    y = jax.lax.reduce_window(y, -jnp.inf, jax.lax.max, (1, 2, 2, 1), (1, 2, 2, 1), "VALID")
    feat = jnp.transpose(y, (0, 3, 1, 2)).reshape(x_nchw.shape[0], -1)
    h = jnp.maximum(feat @ w_f1 + b_f1, 0.0)
    return h @ w_f2 + b_f2


if __name__ == "__main__":
    key = jax.random.PRNGKey(0)
    kx, kp = jax.random.split(key)

    # MNIST-like input consistent with dim=1024: (B=2, C=1, H=28, W=28)
    x = jax.random.normal(kx, (2, 1, 28, 28), dtype=jnp.float32)
    params = init_params(kp, in_features=1, num_classes=10, dim=1024)

    out = jax.block_until_ready(jax.jit(cnn_forward)(x, params))
    ref = reference_forward(x, params)

    assert out.shape == (2, 10), out.shape
    err = float(jnp.max(jnp.abs(out - ref)))
    assert err < 5e-2, f"max abs error vs f32 reference: {err}"

    print("KERNEL_OK")
</pallas_src>

<mosaic_0001>
module attributes {stable_mosaic.version = 11 : i64} {
  func.func @_conv_gemm_pool_kernel(%arg0: i32, %arg1: memref<1x4x144x25xbf16, #tpu.memory_space<vmem>>, %arg2: memref<25x32xbf16, #tpu.memory_space<vmem>>, %arg3: memref<1x32xf32, #tpu.memory_space<vmem>>, %arg4: memref<1x144x32xbf16, #tpu.memory_space<vmem>>) attributes {dimension_semantics = [#tpu.dimension_semantics<parallel>], iteration_bounds = array<i64: 2>, scalar_prefetch = 0 : i64, scratch_operands = 0 : i64, tpu.core_type = #tpu.core_type<tc>, window_params = [{transform_indices = @transform_0, window_bounds = array<i64: 1, 4, 144, 25>}, {pipeline_mode = #tpu.pipeline_mode<synchronous>, transform_indices = @transform_1, window_bounds = array<i64: 25, 32>}, {pipeline_mode = #tpu.pipeline_mode<synchronous>, transform_indices = @transform_2, window_bounds = array<i64: 1, 32>}, {transform_indices = @transform_3, window_bounds = array<i64: 1, 144, 32>}]} {
    %c0 = arith.constant 0 : index
    %c0_0 = arith.constant 0 : index
    %0 = vector.load %arg2[%c0, %c0_0] : memref<25x32xbf16, #tpu.memory_space<vmem>>, vector<25x32xbf16>
    %c0_1 = arith.constant 0 : index
    %c0_2 = arith.constant 0 : index
    %1 = vector.load %arg3[%c0_1, %c0_2] : memref<1x32xf32, #tpu.memory_space<vmem>>, vector<1x32xf32>
    %c0_3 = arith.constant 0 : index
    %c0_4 = arith.constant 0 : index
    %c0_5 = arith.constant 0 : index
    %c0_6 = arith.constant 0 : index
    %2 = vector.load %arg1[%c0_3, %c0_4, %c0_5, %c0_6] : memref<1x4x144x25xbf16, #tpu.memory_space<vmem>>, vector<1x1x144x25xbf16>
    %3 = vector.shape_cast %2 : vector<1x1x144x25xbf16> to vector<144x25xbf16>
    %cst = arith.constant dense<0.000000e+00> : vector<144x32xf32>
    %4 = tpu.matmul %3, %0, %cst {dimension_numbers = #tpu.dot_dimension_numbers<[1], [0], [0], [1], [0, 0, 1, 1], [], []>} : vector<144x25xbf16>, vector<25x32xbf16>, vector<144x32xf32> -> vector<144x32xf32>
    %5 = vector.broadcast %1 : vector<1x32xf32> to vector<144x32xf32>
    %6 = arith.addf %4, %5 : vector<144x32xf32>
    %cst_7 = arith.constant 0.000000e+00 : f32
    %7 = vector.broadcast %cst_7 : f32 to vector<144x32xf32>
    %8 = arith.maximumf %6, %7 : vector<144x32xf32>
    %c0_8 = arith.constant 0 : index
    %c1 = arith.constant 1 : index
    %c0_9 = arith.constant 0 : index
    %c0_10 = arith.constant 0 : index
    %9 = vector.load %arg1[%c0_8, %c1, %c0_9, %c0_10] : memref<1x4x144x25xbf16, #tpu.memory_space<vmem>>, vector<1x1x144x25xbf16>
    %10 = vector.shape_cast %9 : vector<1x1x144x25xbf16> to vector<144x25xbf16>
    %cst_11 = arith.constant dense<0.000000e+00> : vector<144x32xf32>
    %11 = tpu.matmul %10, %0, %cst_11 {dimension_numbers = #tpu.dot_dimension_numbers<[1], [0], [0], [1], [0, 0, 1, 1], [], []>} : vector<144x25xbf16>, vector<25x32xbf16>, vector<144x32xf32> -> vector<144x32xf32>
    %12 = vector.broadcast %1 : vector<1x32xf32> to vector<144x32xf32>
    %13 = arith.addf %11, %12 : vector<144x32xf32>
    %cst_12 = arith.constant 0.000000e+00 : f32
    %14 = vector.broadcast %cst_12 : f32 to vector<144x32xf32>
    %15 = arith.maximumf %13, %14 : vector<144x32xf32>
    %16 = arith.maximumf %8, %15 : vector<144x32xf32>
    %c0_13 = arith.constant 0 : index
    %c2 = arith.constant 2 : index
    %c0_14 = arith.constant 0 : index
    %c0_15 = arith.constant 0 : index
    %17 = vector.load %arg1[%c0_13, %c2, %c0_14, %c0_15] : memref<1x4x144x25xbf16, #tpu.memory_space<vmem>>, vector<1x1x144x25xbf16>
    %18 = vector.shape_cast %17 : vector<1x1x144x25xbf16> to vector<144x25xbf16>
    %cst_16 = arith.constant dense<0.000000e+00> : vector<144x32xf32>
    %19 = tpu.matmul %18, %0, %cst_16 {dimension_numbers = #tpu.dot_dimension_numbers<[1], [0], [0], [1], [0, 0, 1, 1], [], []>} : vector<144x25xbf16>, vector<25x32xbf16>, vector<144x32xf32> -> vector<144x32xf32>
    %20 = vector.broadcast %1 : vector<1x32xf32> to vector<144x32xf32>
    %21 = arith.addf %19, %20 : vector<144x32xf32>
    %cst_17 = arith.constant 0.000000e+00 : f32
    %22 = vector.broadcast %cst_17 : f32 to vector<144x32xf32>
    %23 = arith.maximumf %21, %22 : vector<144x32xf32>
    %c0_18 = arith.constant 0 : index
    %c3 = arith.constant 3 : index
    %c0_19 = arith.constant 0 : index
    %c0_20 = arith.constant 0 : index
    %24 = vector.load %arg1[%c0_18, %c3, %c0_19, %c0_20] : memref<1x4x144x25xbf16, #tpu.memory_space<vmem>>, vector<1x1x144x25xbf16>
    %25 = vector.shape_cast %24 : vector<1x1x144x25xbf16> to vector<144x25xbf16>
    %cst_21 = arith.constant dense<0.000000e+00> : vector<144x32xf32>
    %26 = tpu.matmul %25, %0, %cst_21 {dimension_numbers = #tpu.dot_dimension_numbers<[1], [0], [0], [1], [0, 0, 1, 1], [], []>} : vector<144x25xbf16>, vector<25x32xbf16>, vector<144x32xf32> -> vector<144x32xf32>
    %27 = vector.broadcast %1 : vector<1x32xf32> to vector<144x32xf32>
    %28 = arith.addf %26, %27 : vector<144x32xf32>
    %cst_22 = arith.constant 0.000000e+00 : f32
    %29 = vector.broadcast %cst_22 : f32 to vector<144x32xf32>
    %30 = arith.maximumf %28, %29 : vector<144x32xf32>
    %31 = arith.maximumf %23, %30 : vector<144x32xf32>
    %32 = arith.maximumf %16, %31 : vector<144x32xf32>
    %33 = arith.truncf %32 : vector<144x32xf32> to vector<144x32xbf16>
    %c0_23 = arith.constant 0 : index
    %c0_24 = arith.constant 0 : index
    %c0_25 = arith.constant 0 : index
    %34 = vector.load %arg4[%c0_23, %c0_24, %c0_25] : memref<1x144x32xbf16, #tpu.memory_space<vmem>>, vector<1x144x32xbf16>
    %35 = vector.shape_cast %34 : vector<1x144x32xbf16> to vector<144x32xbf16>
    %36 = vector.shape_cast %33 : vector<144x32xbf16> to vector<1x144x32xbf16>
    tpu.vector_store %arg4[%c0_23, %c0_24, %c0_25], %36 {strides = array<i32>} : memref<1x144x32xbf16, #tpu.memory_space<vmem>>, vector<1x144x32xbf16>,
    return
  }
  func.func @transform_0(%arg0: i32) -> (i32, i32, i32, i32) {
    %c0_i32 = arith.constant 0 : i32
    %c0_i32_0 = arith.constant 0 : i32
    %c0_i32_1 = arith.constant 0 : i32
    %c0_i32_2 = arith.constant 0 : i32
    return %arg0, %c0_i32, %c0_i32_0, %c0_i32_1 : i32, i32, i32, i32
  }
  func.func @transform_1(%arg0: i32) -> (i32, i32) {
    %c0_i32 = arith.constant 0 : i32
    %c0_i32_0 = arith.constant 0 : i32
    %c0_i32_1 = arith.constant 0 : i32
    return %c0_i32, %c0_i32_0 : i32, i32
  }
  func.func @transform_2(%arg0: i32) -> (i32, i32) {
    %c0_i32 = arith.constant 0 : i32
    %c0_i32_0 = arith.constant 0 : i32
    %c0_i32_1 = arith.constant 0 : i32
    return %c0_i32, %c0_i32_0 : i32, i32
  }
  func.func @transform_3(%arg0: i32) -> (i32, i32, i32) {
    %c0_i32 = arith.constant 0 : i32
    %c0_i32_0 = arith.constant 0 : i32
    %c0_i32_1 = arith.constant 0 : i32
    return %arg0, %c0_i32, %c0_i32_0 : i32, i32, i32
  }
}

module attributes {stable_mosaic.version = 11 : i64} {
  func.func @_conv_gemm_pool_kernel(%arg0: i32, %arg1: memref<1x4x16x800xbf16, #tpu.memory_space<vmem>>, %arg2: memref<800x64xbf16, #tpu.memory_space<vmem>>, %arg3: memref<1x64xf32, #tpu.memory_space<vmem>>, %arg4: memref<1x16x64xbf16, #tpu.memory_space<vmem>>) attributes {dimension_semantics = [#tpu.dimension_semantics<parallel>], iteration_bounds = array<i64: 2>, scalar_prefetch = 0 : i64, scratch_operands = 0 : i64, tpu.core_type = #tpu.core_type<tc>, window_params = [{transform_indices = @transform_0, window_bounds = array<i64: 1, 4, 16, 800>}, {pipeline_mode = #tpu.pipeline_mode<synchronous>, transform_indices = @transform_1, window_bounds = array<i64: 800, 64>}, {pipeline_mode = #tpu.pipeline_mode<synchronous>, transform_indices = @transform_2, window_bounds = array<i64: 1, 64>}, {transform_indices = @transform_3, window_bounds = array<i64: 1, 16, 64>}]} {
    %c0 = arith.constant 0 : index
    %c0_0 = arith.constant 0 : index
    %0 = vector.load %arg2[%c0, %c0_0] : memref<800x64xbf16, #tpu.memory_space<vmem>>, vector<800x64xbf16>
    %c0_1 = arith.constant 0 : index
    %c0_2 = arith.constant 0 : index
    %1 = vector.load %arg3[%c0_1, %c0_2] : memref<1x64xf32, #tpu.memory_space<vmem>>, vector<1x64xf32>
    %c0_3 = arith.constant 0 : index
    %c0_4 = arith.constant 0 : index
    %c0_5 = arith.constant 0 : index
    %c0_6 = arith.constant 0 : index
    %2 = vector.load %arg1[%c0_3, %c0_4, %c0_5, %c0_6] : memref<1x4x16x800xbf16, #tpu.memory_space<vmem>>, vector<1x1x16x800xbf16>
    %3 = vector.shape_cast %2 : vector<1x1x16x800xbf16> to vector<16x800xbf16>
    %cst = arith.constant dense<0.000000e+00> : vector<16x64xf32>
    %4 = tpu.matmul %3, %0, %cst {dimension_numbers = #tpu.dot_dimension_numbers<[1], [0], [0], [1], [0, 0, 1, 1], [], []>} : vector<16x800xbf16>, vector<800x64xbf16>, vector<16x64xf32> -> vector<16x64xf32>
    %5 = vector.broadcast %1 : vector<1x64xf32> to vector<16x64xf32>
    %6 = arith.addf %4, %5 : vector<16x64xf32>
    %cst_7 = arith.constant 0.000000e+00 : f32
    %7 = vector.broadcast %cst_7 : f32 to vector<16x64xf32>
    %8 = arith.maximumf %6, %7 : vector<16x64xf32>
    %c0_8 = arith.constant 0 : index
    %c1 = arith.constant 1 : index
    %c0_9 = arith.constant 0 : index
    %c0_10 = arith.constant 0 : index
    %9 = vector.load %arg1[%c0_8, %c1, %c0_9, %c0_10] : memref<1x4x16x800xbf16, #tpu.memory_space<vmem>>, vector<1x1x16x800xbf16>
    %10 = vector.shape_cast %9 : vector<1x1x16x800xbf16> to vector<16x800xbf16>
    %cst_11 = arith.constant dense<0.000000e+00> : vector<16x64xf32>
    %11 = tpu.matmul %10, %0, %cst_11 {dimension_numbers = #tpu.dot_dimension_numbers<[1], [0], [0], [1], [0, 0, 1, 1], [], []>} : vector<16x800xbf16>, vector<800x64xbf16>, vector<16x64xf32> -> vector<16x64xf32>
    %12 = vector.broadcast %1 : vector<1x64xf32> to vector<16x64xf32>
    %13 = arith.addf %11, %12 : vector<16x64xf32>
    %cst_12 = arith.constant 0.000000e+00 : f32
    %14 = vector.broadcast %cst_12 : f32 to vector<16x64xf32>
    %15 = arith.maximumf %13, %14 : vector<16x64xf32>
    %16 = arith.maximumf %8, %15 : vector<16x64xf32>
    %c0_13 = arith.constant 0 : index
    %c2 = arith.constant 2 : index
    %c0_14 = arith.constant 0 : index
    %c0_15 = arith.constant 0 : index
    %17 = vector.load %arg1[%c0_13, %c2, %c0_14, %c0_15] : memref<1x4x16x800xbf16, #tpu.memory_space<vmem>>, vector<1x1x16x800xbf16>
    %18 = vector.shape_cast %17 : vector<1x1x16x800xbf16> to vector<16x800xbf16>
    %cst_16 = arith.constant dense<0.000000e+00> : vector<16x64xf32>
    %19 = tpu.matmul %18, %0, %cst_16 {dimension_numbers = #tpu.dot_dimension_numbers<[1], [0], [0], [1], [0, 0, 1, 1], [], []>} : vector<16x800xbf16>, vector<800x64xbf16>, vector<16x64xf32> -> vector<16x64xf32>
    %20 = vector.broadcast %1 : vector<1x64xf32> to vector<16x64xf32>
    %21 = arith.addf %19, %20 : vector<16x64xf32>
    %cst_17 = arith.constant 0.000000e+00 : f32
    %22 = vector.broadcast %cst_17 : f32 to vector<16x64xf32>
    %23 = arith.maximumf %21, %22 : vector<16x64xf32>
    %c0_18 = arith.constant 0 : index
    %c3 = arith.constant 3 : index
    %c0_19 = arith.constant 0 : index
    %c0_20 = arith.constant 0 : index
    %24 = vector.load %arg1[%c0_18, %c3, %c0_19, %c0_20] : memref<1x4x16x800xbf16, #tpu.memory_space<vmem>>, vector<1x1x16x800xbf16>
    %25 = vector.shape_cast %24 : vector<1x1x16x800xbf16> to vector<16x800xbf16>
    %cst_21 = arith.constant dense<0.000000e+00> : vector<16x64xf32>
    %26 = tpu.matmul %25, %0, %cst_21 {dimension_numbers = #tpu.dot_dimension_numbers<[1], [0], [0], [1], [0, 0, 1, 1], [], []>} : vector<16x800xbf16>, vector<800x64xbf16>, vector<16x64xf32> -> vector<16x64xf32>
    %27 = vector.broadcast %1 : vector<1x64xf32> to vector<16x64xf32>
    %28 = arith.addf %26, %27 : vector<16x64xf32>
    %cst_22 = arith.constant 0.000000e+00 : f32
    %29 = vector.broadcast %cst_22 : f32 to vector<16x64xf32>
    %30 = arith.maximumf %28, %29 : vector<16x64xf32>
    %31 = arith.maximumf %23, %30 : vector<16x64xf32>
    %32 = arith.maximumf %16, %31 : vector<16x64xf32>
    %33 = arith.truncf %32 : vector<16x64xf32> to vector<16x64xbf16>
    %c0_23 = arith.constant 0 : index
    %c0_24 = arith.constant 0 : index
    %c0_25 = arith.constant 0 : index
    %34 = vector.load %arg4[%c0_23, %c0_24, %c0_25] : memref<1x16x64xbf16, #tpu.memory_space<vmem>>, vector<1x16x64xbf16>
    %35 = vector.shape_cast %34 : vector<1x16x64xbf16> to vector<16x64xbf16>
    %36 = vector.shape_cast %33 : vector<16x64xbf16> to vector<1x16x64xbf16>
    tpu.vector_store %arg4[%c0_23, %c0_24, %c0_25], %36 {strides = array<i32>} : memref<1x16x64xbf16, #tpu.memory_space<vmem>>, vector<1x16x64xbf16>,
    return
  }
  func.func @transform_0(%arg0: i32) -> (i32, i32, i32, i32) {
    %c0_i32 = arith.constant 0 : i32
    %c0_i32_0 = arith.constant 0 : i32
    %c0_i32_1 = arith.constant 0 : i32
    %c0_i32_2 = arith.constant 0 : i32
    return %arg0, %c0_i32, %c0_i32_0, %c0_i32_1 : i32, i32, i32, i32
  }
  func.func @transform_1(%arg0: i32) -> (i32, i32) {
    %c0_i32 = arith.constant 0 : i32
    %c0_i32_0 = arith.constant 0 : i32
    %c0_i32_1 = arith.constant 0 : i32
    return %c0_i32, %c0_i32_0 : i32, i32
  }
  func.func @transform_2(%arg0: i32) -> (i32, i32) {
    %c0_i32 = arith.constant 0 : i32
    %c0_i32_0 = arith.constant 0 : i32
    %c0_i32_1 = arith.constant 0 : i32
    return %c0_i32, %c0_i32_0 : i32, i32
  }
  func.func @transform_3(%arg0: i32) -> (i32, i32, i32) {
    %c0_i32 = arith.constant 0 : i32
    %c0_i32_0 = arith.constant 0 : i32
    %c0_i32_1 = arith.constant 0 : i32
    return %arg0, %c0_i32, %c0_i32_0 : i32, i32, i32
  }
}

module attributes {stable_mosaic.version = 11 : i64} {
  func.func @_fc_head_kernel(%arg0: i32, %arg1: memref<8x1024xbf16, #tpu.memory_space<vmem>>, %arg2: memref<1024x512xbf16, #tpu.memory_space<vmem>>, %arg3: memref<1x512xf32, #tpu.memory_space<vmem>>, %arg4: memref<512x128xbf16, #tpu.memory_space<vmem>>, %arg5: memref<1x128xf32, #tpu.memory_space<vmem>>, %arg6: memref<8x128xf32, #tpu.memory_space<vmem>>) attributes {dimension_semantics = [#tpu.dimension_semantics<parallel>], iteration_bounds = array<i64: 1>, scalar_prefetch = 0 : i64, scratch_operands = 0 : i64, tpu.core_type = #tpu.core_type<tc>, window_params = [{transform_indices = @transform_0, window_bounds = array<i64: 8, 1024>}, {pipeline_mode = #tpu.pipeline_mode<synchronous>, transform_indices = @transform_1, window_bounds = array<i64: 1024, 512>}, {pipeline_mode = #tpu.pipeline_mode<synchronous>, transform_indices = @transform_2, window_bounds = array<i64: 1, 512>}, {pipeline_mode = #tpu.pipeline_mode<synchronous>, transform_indices = @transform_3, window_bounds = array<i64: 512, 128>}, {pipeline_mode = #tpu.pipeline_mode<synchronous>, transform_indices = @transform_4, window_bounds = array<i64: 1, 128>}, {transform_indices = @transform_5, window_bounds = array<i64: 8, 128>}]} {
    %c0 = arith.constant 0 : index
    %c0_0 = arith.constant 0 : index
    %0 = vector.load %arg1[%c0, %c0_0] : memref<8x1024xbf16, #tpu.memory_space<vmem>>, vector<8x1024xbf16>
    %c0_1 = arith.constant 0 : index
    %c0_2 = arith.constant 0 : index
    %1 = vector.load %arg2[%c0_1, %c0_2] : memref<1024x512xbf16, #tpu.memory_space<vmem>>, vector<1024x512xbf16>
    %cst = arith.constant dense<0.000000e+00> : vector<8x512xf32>
    %2 = tpu.matmul %0, %1, %cst {dimension_numbers = #tpu.dot_dimension_numbers<[1], [0], [0], [1], [0, 0, 1, 1], [], []>} : vector<8x1024xbf16>, vector<1024x512xbf16>, vector<8x512xf32> -> vector<8x512xf32>
    %c0_3 = arith.constant 0 : index
    %c0_4 = arith.constant 0 : index
    %3 = vector.load %arg3[%c0_3, %c0_4] : memref<1x512xf32, #tpu.memory_space<vmem>>, vector<1x512xf32>
    %4 = vector.broadcast %3 : vector<1x512xf32> to vector<8x512xf32>
    %5 = arith.addf %2, %4 : vector<8x512xf32>
    %cst_5 = arith.constant 0.000000e+00 : f32
    %6 = vector.broadcast %cst_5 : f32 to vector<8x512xf32>
    %7 = arith.maximumf %5, %6 : vector<8x512xf32>
    %8 = arith.truncf %7 : vector<8x512xf32> to vector<8x512xbf16>
    %c0_6 = arith.constant 0 : index
    %c0_7 = arith.constant 0 : index
    %9 = vector.load %arg4[%c0_6, %c0_7] : memref<512x128xbf16, #tpu.memory_space<vmem>>, vector<512x128xbf16>
    %cst_8 = arith.constant dense<0.000000e+00> : vector<8x128xf32>
    %10 = tpu.matmul %8, %9, %cst_8 {dimension_numbers = #tpu.dot_dimension_numbers<[1], [0], [0], [1], [0, 0, 1, 1], [], []>} : vector<8x512xbf16>, vector<512x128xbf16>, vector<8x128xf32> -> vector<8x128xf32>
    %c0_9 = arith.constant 0 : index
    %c0_10 = arith.constant 0 : index
    %11 = vector.load %arg5[%c0_9, %c0_10] : memref<1x128xf32, #tpu.memory_space<vmem>>, vector<1x128xf32>
    %12 = vector.broadcast %11 : vector<1x128xf32> to vector<8x128xf32>
    %13 = arith.addf %10, %12 : vector<8x128xf32>
    %c0_11 = arith.constant 0 : index
    %c0_12 = arith.constant 0 : index
    %14 = vector.load %arg6[%c0_11, %c0_12] : memref<8x128xf32, #tpu.memory_space<vmem>>, vector<8x128xf32>
    tpu.vector_store %arg6[%c0_11, %c0_12], %13 {strides = array<i32>} : memref<8x128xf32, #tpu.memory_space<vmem>>, vector<8x128xf32>,
    return
  }
  func.func @transform_0(%arg0: i32) -> (i32, i32) {
    %c0_i32 = arith.constant 0 : i32
    %c0_i32_0 = arith.constant 0 : i32
    return %arg0, %c0_i32 : i32, i32
  }
  func.func @transform_1(%arg0: i32) -> (i32, i32) {
    %c0_i32 = arith.constant 0 : i32
    %c0_i32_0 = arith.constant 0 : i32
    %c0_i32_1 = arith.constant 0 : i32
    return %c0_i32, %c0_i32_0 : i32, i32
  }
  func.func @transform_2(%arg0: i32) -> (i32, i32) {
    %c0_i32 = arith.constant 0 : i32
    %c0_i32_0 = arith.constant 0 : i32
    %c0_i32_1 = arith.constant 0 : i32
    return %c0_i32, %c0_i32_0 : i32, i32
  }
  func.func @transform_3(%arg0: i32) -> (i32, i32) {
    %c0_i32 = arith.constant 0 : i32
    %c0_i32_0 = arith.constant 0 : i32
    %c0_i32_1 = arith.constant 0 : i32
    return %c0_i32, %c0_i32_0 : i32, i32
  }
  func.func @transform_4(%arg0: i32) -> (i32, i32) {
    %c0_i32 = arith.constant 0 : i32
    %c0_i32_0 = arith.constant 0 : i32
    %c0_i32_1 = arith.constant 0 : i32
    return %c0_i32, %c0_i32_0 : i32, i32
  }
  func.func @transform_5(%arg0: i32) -> (i32, i32) {
    %c0_i32 = arith.constant 0 : i32
    %c0_i32_0 = arith.constant 0 : i32
    return %arg0, %c0_i32 : i32, i32
  }
}

</mosaic_0001>

<llo_original>
// kernel: cnn_forward.3
$region0: #{cnn_forward.3}
  #allocation0 [shape = 'u32[]', space=smem, size = 0x4, offset = 0x4, fixed_abs, tag = 'smem constant byte address 0x4 - core index']
  #allocation1 [shape = 'u32[144,128]{1,0:T(1,128)}', space=vmem, size = 0x12000, scoped, tag = 'internal scratch']
  %s0 = inlined_call_operand.vmem [shape: bf16[2,4,144,25], index: 0, kind: input, shape index: {}]
  %s1 = inlined_call_operand.vmem [shape: bf16[25,32], index: 1, kind: input, shape index: {}]
  %s2 = inlined_call_operand.vmem [shape: f32[1,32], index: 2, kind: input, shape index: {}]
  %s3 = inlined_call_operand.vmem [shape: bf16[2,144,32], index: 3, kind: output, shape index: {}]
  %s4 = sld [smem:[#allocation0]]
  $region45: #{cnn_forward.3} parent=0
    _
  %s6 = ssub.s32 1, %s4
  %s7 = scalar_select 0, %s6, %s4
  loop: start=0, step=1, limit=4
  $region2: #{cnn_forward.3} parent=0 // loop_pre_header
    _
  $region3: #{cnn_forward.3} parent=0 // loop_header
    %s9 = sphi 0, %s13
    %p10 = scmp.ge.s32.totalorder %s9, 4
    %s19 = sphi 0, %s21
    %s22 = sphi 0, %s19
    %s23 = sphi 0, %s22
    %s39 = sphi 0, %s23
    %s43 = sphi 0, %s43
    %s45 = sphi 0, %s43
    %s46 = sphi 0, %s45
    %s60 = sphi 0, %s46
    %s64 = sphi 0, %s64
    %s66 = sphi 0, %s64
    %s67 = sphi 0, %s66
    %s81 = sphi 0, %s67
    %s87 = sphi 0, %s89
    %s90 = sphi 0, %s87
    %s91 = sphi 0, %s90
    %s107 = sphi 0, %s91
  $region4: #{cnn_forward.3} parent=0 // loop_header_branch
    %12 = sbr.rel (%p10) target = $region8
  $region5: #{cnn_forward.3} parent=0 // loop_body
    %s14 = ssub.s32 %s9, 1
    %s15 = ssub.s32 %s9, 2
    %s16 = sadd.s32 %s9, 1
    %s17 = ssub.s32 %s9, %s16
    %p18 = scmp.eq.s32.totalorder %s17, 0
    %s20 = sadd.s32 %s19, 1
    %s21 = scalar_select %p18, %s19, %s20
    %p24 = pneg %p18
    %p25 = scmp.eq.s32.totalorder %s9, 1
    %p26 = por %p24, %p25
    %p27 = scmp.ne.s32.totalorder %s19, %s22
    %p28 = scmp.eq.s32.totalorder %s9, 0
    %p29 = por %p27, %p28
    %p30 = scmp.ne.s32.totalorder %s19, %s22
    %p31 = scmp.eq.s32.totalorder %s14, 1
    %p32 = por %p30, %p31
    %p33 = scmp.ne.s32.totalorder %s22, %s23
    %p34 = scmp.eq.s32.totalorder %s14, 0
    %p35 = por %p33, %p34
    %p36 = scmp.ne.s32.totalorder %s22, %s23
    %p37 = scmp.eq.s32.totalorder %s15, 1
    %p38 = por %p36, %p37
    %p40 = scmp.ne.s32.totalorder %s23, %s39
    %p41 = scmp.eq.s32.totalorder %s15, 0
    %p42 = por %p40, %p41
    %s44 = sadd.s32 %s43, 1
    %p47 = scmp.eq.s32.totalorder %s9, 1
    %p48 = scmp.ne.s32.totalorder %s43, %s45
    %p49 = scmp.eq.s32.totalorder %s9, 0
    %p50 = por %p48, %p49
    %p51 = scmp.ne.s32.totalorder %s43, %s45
    %p52 = scmp.eq.s32.totalorder %s14, 1
    %p53 = por %p51, %p52
    %p54 = scmp.ne.s32.totalorder %s45, %s46
    %p55 = scmp.eq.s32.totalorder %s14, 0
    %p56 = por %p54, %p55
    %p57 = scmp.ne.s32.totalorder %s45, %s46
    %p58 = scmp.eq.s32.totalorder %s15, 1
    %p59 = por %p57, %p58
    %p61 = scmp.ne.s32.totalorder %s46, %s60
    %p62 = scmp.eq.s32.totalorder %s15, 0
    %p63 = por %p61, %p62
    %s65 = sadd.s32 %s64, 1
    %p68 = scmp.eq.s32.totalorder %s9, 1
    %p69 = scmp.ne.s32.totalorder %s64, %s66
    %p70 = scmp.eq.s32.totalorder %s9, 0
    %p71 = por %p69, %p70
    %p72 = scmp.ne.s32.totalorder %s64, %s66
    %p73 = scmp.eq.s32.totalorder %s14, 1
    %p74 = por %p72, %p73
    %p75 = scmp.ne.s32.totalorder %s66, %s67
    %p76 = scmp.eq.s32.totalorder %s14, 0
    %p77 = por %p75, %p76
    %p78 = scmp.ne.s32.totalorder %s66, %s67
    %p79 = scmp.eq.s32.totalorder %s15, 1
    %p80 = por %p78, %p79
    %p82 = scmp.ne.s32.totalorder %s67, %s81
    %p83 = scmp.eq.s32.totalorder %s15, 0
    %p84 = por %p82, %p83
    %s85 = ssub.s32 %s9, %s16
    %p86 = scmp.eq.s32.totalorder %s85, 0
    %s88 = sadd.s32 %s87, 1
    %s89 = scalar_select %p86, %s87, %s88
    %p92 = pneg %p86
    %p93 = scmp.eq.s32.totalorder %s9, 1
    %p94 = por %p92, %p93
    %p95 = scmp.ne.s32.totalorder %s87, %s90
    %p96 = scmp.eq.s32.totalorder %s9, 0
    %p97 = por %p95, %p96
    %p98 = scmp.ne.s32.totalorder %s87, %s90
    %p99 = scmp.eq.s32.totalorder %s14, 1
    %p100 = por %p98, %p99
    %p101 = scmp.ne.s32.totalorder %s90, %s91
    %p102 = scmp.eq.s32.totalorder %s14, 0
    %p103 = por %p101, %p102
    %p104 = scmp.ne.s32.totalorder %s90, %s91
    %p105 = scmp.eq.s32.totalorder %s15, 1
    %p106 = por %p104, %p105
    %p108 = scmp.ne.s32.totalorder %s91, %s107
    %p109 = scmp.eq.s32.totalorder %s15, 0
    %p110 = por %p108, %p109
    %p111 = scmp.le.s32.totalorder 1, %s9
    %p112 = scmp.lt.s32.totalorder %s9, 3
    %p113 = pnand %p111, %p112
    %p114 = pneg %p113
    // Predicated region
    $region9: #{cnn_forward.3} parent=5 // pred_check
      _
    $region10: #{cnn_forward.3} parent=5 // pred_check_branch
      %116 = sbr.rel (%p113) target = $region12
    $region11: #{cnn_forward.3} parent=5 // pred_region
      %s117 = ssub.s32 %s9, 1
      // Predicated region
      $region13: #{cnn_forward.3} parent=11 // pred_check
        %p118 = pneg %p56
      $region14: #{cnn_forward.3} parent=11 // pred_check_branch
        %120 = sbr.rel (%p118) target = $region16
      $region15: #{cnn_forward.3} parent=11 // pred_region
        _
      $region16: #{cnn_forward.3} parent=11 // pred_fallthru
        _
      // Predicated region
      $region17: #{cnn_forward.3} parent=11 // pred_check
        %p121 = pneg %p77
      $region18: #{cnn_forward.3} parent=11 // pred_check_branch
        %123 = sbr.rel (%p121) target = $region20
      $region19: #{cnn_forward.3} parent=11 // pred_region
        _
      $region20: #{cnn_forward.3} parent=11 // pred_fallthru
        _
    $region12: #{cnn_forward.3} parent=5 // pred_fallthru
      _
    %p124 = scmp.lt.s32.totalorder %s9, 2
    // Predicated region
    $region21: #{cnn_forward.3} parent=5 // pred_check
      %p125 = pneg %p124
    $region22: #{cnn_forward.3} parent=5 // pred_check_branch
      %127 = sbr.rel (%p125) target = $region24
    $region23: #{cnn_forward.3} parent=5 // pred_region
      // Predicated region
      $region25: #{cnn_forward.3} parent=23 // pred_check
        %p128 = pneg %p29
      $region26: #{cnn_forward.3} parent=23 // pred_check_branch
        %130 = sbr.rel (%p128) target = $region28
      $region27: #{cnn_forward.3} parent=23 // pred_region
        %p131 = scmp.lt.s32.totalorder %s9, 1
        %s132 = scalar_select %p131, %s9, 1
        %s133 = smul.addr %s132, 72
        %s134 = smul.addr %s133, 4
        %s135 = scalar_lea.vmem %s0, %s134
      $region28: #{cnn_forward.3} parent=23 // pred_fallthru
        _
    $region24: #{cnn_forward.3} parent=5 // pred_fallthru
      _
    %p136 = scmp.le.s32.totalorder 1, %s9
    %p137 = scmp.lt.s32.totalorder %s9, 3
    %p138 = pnand %p136, %p137
    %p139 = pneg %p138
    // Predicated region
    $region29: #{cnn_forward.3} parent=5 // pred_check
      _
    $region30: #{cnn_forward.3} parent=5 // pred_check_branch
      %141 = sbr.rel (%p138) target = $region32
    $region31: #{cnn_forward.3} parent=5 // pred_region
      %s142 = ssub.s32 %s9, 1
      %p143 = scmp.lt.s32.totalorder %s14, 1
      %s144 = scalar_select %p143, %s14, 1
      %s145 = smul.addr %s144, 72
      %s146 = smul.addr %s145, 4
      %s147 = scalar_lea.vmem %s0, %s146
      %p148 = pneg %p35
      %p149 = pneg %p32
      %p150 = pneg %p56
      %p151 = pneg %p53
      %p152 = pneg %p77
      %p153 = pneg %p74
      %p154 = pneg %p103
      %p155 = pneg %p100
      %p156 = scmp.lt.s32.totalorder %s14, 1
      %s157 = scalar_select %p156, %s14, 1
      %s158 = smul.addr %s157, 18
      %s159 = smul.addr %s158, 4
      %s160 = scalar_lea.vmem %s3, %s159
      %p161 = scmp.lt.s32.totalorder %s14, 1
      %s162 = scalar_select %p161, %s14, 1
      %s163 = smul.addr %s162, 72
      %s164 = smul.addr %s163, 4
      %s165 = scalar_lea.vmem %s0, %s164
      %p166 = scmp.lt.s32.totalorder %s14, 1
      %s167 = scalar_select %p166, %s14, 1
      %s168 = smul.addr %s167, 18
      %s169 = smul.addr %s168, 4
      %s170 = scalar_lea.vmem %s3, %s169
      %v172 = vld [vmem:[%s1] sm:$0xf]
      %v173 = vld [vmem:[%s1 + $0x4] sm:$0xf]
      %v174 = vld [vmem:[%s1 + $0x8] sm:$0xf]
      %v175 = vld [vmem:[%s1 + $0xc] sm:$0x1]
      %v176 = vld [vmem:[%s2] sm:$0x1]
      %v177 = vld [vmem:[%s165] sm:$0xf]
      %v178 = vld [vmem:[%s165 + $0x4] sm:$0xf]
      %v179 = vld [vmem:[%s165 + $0x8] sm:$0xf]
      %v180 = vld [vmem:[%s165 + $0xc] sm:$0xf]
      %v181 = vld [vmem:[%s165 + $0x10] sm:$0xf]
      %v182 = vld [vmem:[%s165 + $0x14] sm:$0xf]
      %v183 = vld [vmem:[%s165 + $0x18] sm:$0xf]
      %v184 = vld [vmem:[%s165 + $0x1c] sm:$0xf]
      %v185 = vld [vmem:[%s165 + $0x20] sm:$0xf]
      %v186 = vld [vmem:[%s165 + $0x24] sm:$0xf]
      %v187 = vld [vmem:[%s165 + $0x28] sm:$0xf]
      %v188 = vld [vmem:[%s165 + $0x2c] sm:$0xf]
      %v189 = vld [vmem:[%s165 + $0x30] sm:$0xf]
      %v190 = vld [vmem:[%s165 + $0x34] sm:$0xf]
      %v191 = vld [vmem:[%s165 + $0x38] sm:$0xf]
      %v192 = vld [vmem:[%s165 + $0x3c] sm:$0xf]
      %v193 = vld [vmem:[%s165 + $0x40] sm:$0xf]
      %v194 = vld [vmem:[%s165 + $0x44] sm:$0xf]
      %v196 = vlaneseq
      %v197 = vshrl.u32 %v196, 7
      %v198 = vsub.s32 0, %v197
      %v199 = vrot.slane %v176, %v198
      %v219 = vunpack.c.l.b16 %v177
      %v220 = vunpack.c.l.b16 %v178
      %v221 = vunpack.c.l.b16 %v179
      %v222 = vunpack.c.l.b16 %v180
      %v223 = vunpack.c.l.b16 %v181
      %v224 = vunpack.c.l.b16 %v182
      %v225 = vunpack.c.l.b16 %v183
      %v226 = vunpack.c.l.b16 %v184
      %v227 = vunpack.c.l.b16 %v185
      %v228 = vunpack.c.l.b16 %v186
      %v229 = vunpack.c.l.b16 %v187
      %v230 = vunpack.c.l.b16 %v188
      %v231 = vunpack.c.l.b16 %v189
      %v232 = vunpack.c.l.b16 %v190
      %v233 = vunpack.c.l.b16 %v191
      %v234 = vunpack.c.l.b16 %v192
      %v235 = vunpack.c.l.b16 %v193
      %v236 = vunpack.c.l.b16 %v194
      %v237 = vpack.c.b16 %v220, %v219
      %v238 = vpack.c.b16 %v222, %v221
      %v239 = vpack.c.b16 %v224, %v223
      %v240 = vpack.c.b16 %v226, %v225
      %v241 = vpack.c.b16 %v228, %v227
      %v242 = vpack.c.b16 %v230, %v229
      %v243 = vpack.c.b16 %v232, %v231
      %v244 = vpack.c.b16 %v234, %v233
      %v245 = vpack.c.b16 %v236, %v235
      %v250 = vunpack.c.l.b16 %v172
      %v251 = vunpack.c.l.b16 %v173
      %v252 = vunpack.c.l.b16 %v174
      %v253 = vunpack.c.l.b16 %v175
      %v254 = vpack.c.b16 %v251, %v250
      %v255 = vpack.c.b16 %v253, %v252
      %vm257 = vcmask 203776
      %v259 = vsel %vm257, %v237, 0
      %v262 = vsel %vm257, %v238, 0
      %v265 = vsel %vm257, %v239, 0
      %v268 = vsel %vm257, %v240, 0
      %v271 = vsel %vm257, %v241, 0
      %v274 = vsel %vm257, %v242, 0
      %v277 = vsel %vm257, %v243, 0
      %v280 = vsel %vm257, %v244, 0
      %v283 = vsel %vm257, %v245, 0
      %vm285 = vcmask 1043456
      %vm286 = vcmask 1044480
      %v287 = vsel %vm285, 4294967295, 65535
      %v288 = vsel %vm286, %v287, 0
      %v290 = vand.u32 %v255, %v288
      %292 = vmatprep.subr.bf16.mxu0 0
      %293 = vmatpush1.bf16.msra.mxu0 0
      %294 = vmatprep.subr.bf16.mxu0 0
      %295 = vmatpush1.bf16.msra.mxu0 0
      %296 = vmatprep.subr.bf16.mxu0 0
      %297 = vmatpush1.bf16.msra.mxu0 0
      %298 = vmatprep.subr.bf16.mxu0 0
      %299 = vmatpush1.bf16.msra.mxu0 0
      %300 = vmatprep.subr.bf16.mxu0 0
      %301 = vmatpush1.bf16.msra.mxu0 0
      %302 = vmatprep.subr.bf16.mxu0 0
      %303 = vmatpush1.bf16.msra.mxu0 0
      %304 = vmatprep.subr.bf16.mxu0 0
      %305 = vmatpush1.bf16.msra.mxu0 %v290
      %306 = vmatprep.subr.bf16.mxu0 0
      %307 = vmatpush1.bf16.msra.mxu0 %v254
      %308 = vmatprep.subr.bf16.mxu0 0
      %309 = vmatpush2.bf16.msra.mxu0 0
      %310 = vmatprep.subr.bf16.mxu0 0
      %311 = vmatpush2.bf16.msra.mxu0 0
      %312 = vmatprep.subr.bf16.mxu0 0
      %313 = vmatpush2.bf16.msra.mxu0 0
      %314 = vmatprep.subr.bf16.mxu0 0
      %315 = vmatpush2.bf16.msra.mxu0 0
      %316 = vmatprep.subr.bf16.mxu0 0
      %317 = vmatpush2.bf16.msra.mxu0 0
      %318 = vmatprep.subr.bf16.mxu0 0
      %319 = vmatpush2.bf16.msra.mxu0 0
      %320 = vmatprep.subr.bf16.mxu0 0
      %321 = vmatpush2.bf16.msra.mxu0 0
      %322 = vmatprep.subr.bf16.mxu0 0
      %323 = vmatpush2.bf16.msra.mxu0 0
      %324 = vmatprep.mubr.bf16.mxu0 0
      %325 = vmatmul.mubr.bf16.gmra.mxu0 %v259
      %v326 = vpop.f32.mrf.mxu0
      %v327 = vadd.f32 %v199, %v326
      %v328 = vpop.f32.mrf.mxu0
      %v329 = vpop.f32.mrf.mxu0
      %v330 = vadd.f32 %v199, %v329
      %v331 = vpop.f32.mrf.mxu0
      %332 = vmatprep.mubr.bf16.mxu0 0
      %333 = vmatmul.mubr.bf16.gmra.mxu0 %v262
      %v334 = vpop.f32.mrf.mxu0
      %v335 = vadd.f32 %v199, %v334
      %v336 = vpop.f32.mrf.mxu0
      %v337 = vpop.f32.mrf.mxu0
      %v338 = vadd.f32 %v199, %v337
      %v339 = vpop.f32.mrf.mxu0
      %340 = vmatprep.mubr.bf16.mxu0 0
      %341 = vmatmul.mubr.bf16.gmra.mxu0 %v265
      %v342 = vpop.f32.mrf.mxu0
      %v343 = vadd.f32 %v199, %v342
      %v344 = vpop.f32.mrf.mxu0
      %v345 = vpop.f32.mrf.mxu0
      %v346 = vadd.f32 %v199, %v345
      %v347 = vpop.f32.mrf.mxu0
      %348 = vmatprep.mubr.bf16.mxu0 0
      %349 = vmatmul.mubr.bf16.gmra.mxu0 %v268
      %v350 = vpop.f32.mrf.mxu0
      %v351 = vadd.f32 %v199, %v350
      %v352 = vpop.f32.mrf.mxu0
      %v353 = vpop.f32.mrf.mxu0
      %v354 = vadd.f32 %v199, %v353
      %v355 = vpop.f32.mrf.mxu0
      %356 = vmatprep.mubr.bf16.mxu0 0
      %357 = vmatmul.mubr.bf16.gmra.mxu0 %v271
      %v358 = vpop.f32.mrf.mxu0
      %v359 = vadd.f32 %v199, %v358
      %v360 = vpop.f32.mrf.mxu0
      %v361 = vpop.f32.mrf.mxu0
      %v362 = vadd.f32 %v199, %v361
      %v363 = vpop.f32.mrf.mxu0
      %364 = vmatprep.mubr.bf16.mxu0 0
      %365 = vmatmul.mubr.bf16.gmra.mxu0 %v274
      %v366 = vpop.f32.mrf.mxu0
      %v367 = vadd.f32 %v199, %v366
      %v368 = vpop.f32.mrf.mxu0
      %v369 = vpop.f32.mrf.mxu0
      %v370 = vadd.f32 %v199, %v369
      %v371 = vpop.f32.mrf.mxu0
      %372 = vmatprep.mubr.bf16.mxu0 0
      %373 = vmatmul.mubr.bf16.gmra.mxu0 %v277
      %v374 = vpop.f32.mrf.mxu0
      %v375 = vadd.f32 %v199, %v374
      %v376 = vpop.f32.mrf.mxu0
      %v377 = vpop.f32.mrf.mxu0
      %v378 = vadd.f32 %v199, %v377
      %v379 = vpop.f32.mrf.mxu0
      %380 = vmatprep.mubr.bf16.mxu0 0
      %381 = vmatmul.mubr.bf16.gmra.mxu0 %v280
      %v382 = vpop.f32.mrf.mxu0
      %v383 = vadd.f32 %v199, %v382
      %v384 = vpop.f32.mrf.mxu0
      %v385 = vpop.f32.mrf.mxu0
      %v386 = vadd.f32 %v199, %v385
      %v387 = vpop.f32.mrf.mxu0
      %388 = vmatprep.mubr.bf16.mxu0 0
      %389 = vmatmul.mubr.bf16.gmra.mxu0 %v283
      %v390 = vpop.f32.mrf.mxu0
      %v391 = vadd.f32 %v199, %v390
      %v392 = vpop.f32.mrf.mxu0
      %v393 = vpop.f32.mrf.mxu0
      %v394 = vadd.f32 %v199, %v393
      %v395 = vpop.f32.mrf.mxu0
      %396 = vdwg.mxu0
      %v397 = vmax.f32 %v327, 0.0
      %v398 = vmax.f32 %v330, 0.0
      %v399 = vmax.f32 %v335, 0.0
      %v400 = vmax.f32 %v338, 0.0
      %v401 = vmax.f32 %v343, 0.0
      %v402 = vmax.f32 %v346, 0.0
      %v403 = vmax.f32 %v351, 0.0
      %v404 = vmax.f32 %v354, 0.0
      %v405 = vmax.f32 %v359, 0.0
      %v406 = vmax.f32 %v362, 0.0
      %v407 = vmax.f32 %v367, 0.0
      %v408 = vmax.f32 %v370, 0.0
      %v409 = vmax.f32 %v375, 0.0
      %v410 = vmax.f32 %v378, 0.0
      %v411 = vmax.f32 %v383, 0.0
      %v412 = vmax.f32 %v386, 0.0
      %v413 = vmax.f32 %v391, 0.0
      %v414 = vmax.f32 %v394, 0.0
      %s415 = scalar_lea.vmem %s165, 72
      %v416 = vld [vmem:[%s415] sm:$0xf]
      %v417 = vld [vmem:[%s415 + $0x4] sm:$0xf]
      %v418 = vld [vmem:[%s415 + $0x8] sm:$0xf]
      %v419 = vld [vmem:[%s415 + $0xc] sm:$0xf]
      %v420 = vld [vmem:[%s415 + $0x10] sm:$0xf]
      %v421 = vld [vmem:[%s415 + $0x14] sm:$0xf]
      %v422 = vld [vmem:[%s415 + $0x18] sm:$0xf]
      %v423 = vld [vmem:[%s415 + $0x1c] sm:$0xf]
      %v424 = vld [vmem:[%s415 + $0x20] sm:$0xf]
      %v425 = vld [vmem:[%s415 + $0x24] sm:$0xf]
      %v426 = vld [vmem:[%s415 + $0x28] sm:$0xf]
      %v427 = vld [vmem:[%s415 + $0x2c] sm:$0xf]
      %v428 = vld [vmem:[%s415 + $0x30] sm:$0xf]
      %v429 = vld [vmem:[%s415 + $0x34] sm:$0xf]
      %v430 = vld [vmem:[%s415 + $0x38] sm:$0xf]
      %v431 = vld [vmem:[%s415 + $0x3c] sm:$0xf]
      %v432 = vld [vmem:[%s415 + $0x40] sm:$0xf]
      %v433 = vld [vmem:[%s415 + $0x44] sm:$0xf]
      %v452 = vunpack.c.l.b16 %v416
      %v453 = vunpack.c.l.b16 %v417
      %v454 = vunpack.c.l.b16 %v418
      %v455 = vunpack.c.l.b16 %v419
      %v456 = vunpack.c.l.b16 %v420
      %v457 = vunpack.c.l.b16 %v421
      %v458 = vunpack.c.l.b16 %v422
      %v459 = vunpack.c.l.b16 %v423
      %v460 = vunpack.c.l.b16 %v424
      %v461 = vunpack.c.l.b16 %v425
      %v462 = vunpack.c.l.b16 %v426
      %v463 = vunpack.c.l.b16 %v427
      %v464 = vunpack.c.l.b16 %v428
      %v465 = vunpack.c.l.b16 %v429
      %v466 = vunpack.c.l.b16 %v430
      %v467 = vunpack.c.l.b16 %v431
      %v468 = vunpack.c.l.b16 %v432
      %v469 = vunpack.c.l.b16 %v433
      %v470 = vpack.c.b16 %v453, %v452
      %v471 = vpack.c.b16 %v455, %v454
      %v472 = vpack.c.b16 %v457, %v456
      %v473 = vpack.c.b16 %v459, %v458
      %v474 = vpack.c.b16 %v461, %v460
      %v475 = vpack.c.b16 %v463, %v462
      %v476 = vpack.c.b16 %v465, %v464
      %v477 = vpack.c.b16 %v467, %v466
      %v478 = vpack.c.b16 %v469, %v468
      %v480 = vsel %vm257, %v470, 0
      %v483 = vsel %vm257, %v471, 0
      %v486 = vsel %vm257, %v472, 0
      %v489 = vsel %vm257, %v473, 0
      %v492 = vsel %vm257, %v474, 0
      %v495 = vsel %vm257, %v475, 0
      %v498 = vsel %vm257, %v476, 0
      %v501 = vsel %vm257, %v477, 0
      %v504 = vsel %vm257, %v478, 0
      %506 = vmatprep.subr.bf16.mxu0 0
      %507 = vmatpush1.bf16.msra.mxu0 0
      %508 = vmatprep.subr.bf16.mxu0 0
      %509 = vmatpush1.bf16.msra.mxu0 0
      %510 = vmatprep.subr.bf16.mxu0 0
      %511 = vmatpush1.bf16.msra.mxu0 0
      %512 = vmatprep.subr.bf16.mxu0 0
      %513 = vmatpush1.bf16.msra.mxu0 0
      %514 = vmatprep.subr.bf16.mxu0 0
      %515 = vmatpush1.bf16.msra.mxu0 0
      %516 = vmatprep.subr.bf16.mxu0 0
      %517 = vmatpush1.bf16.msra.mxu0 0
      %518 = vmatprep.subr.bf16.mxu0 0
      %519 = vmatpush1.bf16.msra.mxu0 %v290
      %520 = vmatprep.subr.bf16.mxu0 0
      %521 = vmatpush1.bf16.msra.mxu0 %v254
      %522 = vmatprep.subr.bf16.mxu0 0
      %523 = vmatpush2.bf16.msra.mxu0 0
      %524 = vmatprep.subr.bf16.mxu0 0
      %525 = vmatpush2.bf16.msra.mxu0 0
      %526 = vmatprep.subr.bf16.mxu0 0
      %527 = vmatpush2.bf16.msra.mxu0 0
      %528 = vmatprep.subr.bf16.mxu0 0
      %529 = vmatpush2.bf16.msra.mxu0 0
      %530 = vmatprep.subr.bf16.mxu0 0
      %531 = vmatpush2.bf16.msra.mxu0 0
      %532 = vmatprep.subr.bf16.mxu0 0
      %533 = vmatpush2.bf16.msra.mxu0 0
      %534 = vmatprep.subr.bf16.mxu0 0
      %535 = vmatpush2.bf16.msra.mxu0 0
      %536 = vmatprep.subr.bf16.mxu0 0
      %537 = vmatpush2.bf16.msra.mxu0 0
      %538 = vmatprep.mubr.bf16.mxu0 0
      %539 = vmatmul.mubr.bf16.gmra.mxu0 %v480
      %v540 = vpop.f32.mrf.mxu0
      %v541 = vadd.f32 %v199, %v540
      %v542 = vpop.f32.mrf.mxu0
      %v543 = vpop.f32.mrf.mxu0
      %v544 = vadd.f32 %v199, %v543
      %v545 = vpop.f32.mrf.mxu0
      %546 = vmatprep.mubr.bf16.mxu0 0
      %547 = vmatmul.mubr.bf16.gmra.mxu0 %v483
      %v548 = vpop.f32.mrf.mxu0
      %v549 = vadd.f32 %v199, %v548
      %v550 = vpop.f32.mrf.mxu0
      %v551 = vpop.f32.mrf.mxu0
      %v552 = vadd.f32 %v199, %v551
      %v553 = vpop.f32.mrf.mxu0
      %554 = vmatprep.mubr.bf16.mxu0 0
      %555 = vmatmul.mubr.bf16.gmra.mxu0 %v486
      %v556 = vpop.f32.mrf.mxu0
      %v557 = vadd.f32 %v199, %v556
      %v558 = vpop.f32.mrf.mxu0
      %v559 = vpop.f32.mrf.mxu0
      %v560 = vadd.f32 %v199, %v559
      %v561 = vpop.f32.mrf.mxu0
      %562 = vmatprep.mubr.bf16.mxu0 0
      %563 = vmatmul.mubr.bf16.gmra.mxu0 %v489
      %v564 = vpop.f32.mrf.mxu0
      %v565 = vadd.f32 %v199, %v564
      %v566 = vpop.f32.mrf.mxu0
      %v567 = vpop.f32.mrf.mxu0
      %v568 = vadd.f32 %v199, %v567
      %v569 = vpop.f32.mrf.mxu0
      %570 = vmatprep.mubr.bf16.mxu0 0
      %571 = vmatmul.mubr.bf16.gmra.mxu0 %v492
      %v572 = vpop.f32.mrf.mxu0
      %v573 = vadd.f32 %v199, %v572
      %v574 = vpop.f32.mrf.mxu0
      %v575 = vpop.f32.mrf.mxu0
      %v576 = vadd.f32 %v199, %v575
      %v577 = vpop.f32.mrf.mxu0
      %578 = vmatprep.mubr.bf16.mxu0 0
      %579 = vmatmul.mubr.bf16.gmra.mxu0 %v495
      %v580 = vpop.f32.mrf.mxu0
      %v581 = vadd.f32 %v199, %v580
      %v582 = vpop.f32.mrf.mxu0
      %v583 = vpop.f32.mrf.mxu0
      %v584 = vadd.f32 %v199, %v583
      %v585 = vpop.f32.mrf.mxu0
      %586 = vmatprep.mubr.bf16.mxu0 0
      %587 = vmatmul.mubr.bf16.gmra.mxu0 %v498
      %v588 = vpop.f32.mrf.mxu0
      %v589 = vadd.f32 %v199, %v588
      %v590 = vpop.f32.mrf.mxu0
      %v591 = vpop.f32.mrf.mxu0
      %v592 = vadd.f32 %v199, %v591
      %v593 = vpop.f32.mrf.mxu0
      %594 = vmatprep.mubr.bf16.mxu0 0
      %595 = vmatmul.mubr.bf16.gmra.mxu0 %v501
      %v596 = vpop.f32.mrf.mxu0
      %v597 = vadd.f32 %v199, %v596
      %v598 = vpop.f32.mrf.mxu0
      %v599 = vpop.f32.mrf.mxu0
      %v600 = vadd.f32 %v199, %v599
      %v601 = vpop.f32.mrf.mxu0
      %602 = vmatprep.mubr.bf16.mxu0 0
      %603 = vmatmul.mubr.bf16.gmra.mxu0 %v504
      %v604 = vpop.f32.mrf.mxu0
      %v605 = vadd.f32 %v199, %v604
      %v606 = vpop.f32.mrf.mxu0
      %v607 = vpop.f32.mrf.mxu0
      %v608 = vadd.f32 %v199, %v607
      %v609 = vpop.f32.mrf.mxu0
      %610 = vdwg.mxu0
      %v611 = vmax.f32 %v541, 0.0
      %v612 = vmax.f32 %v544, 0.0
      %v613 = vmax.f32 %v549, 0.0
      %v614 = vmax.f32 %v552, 0.0
      %v615 = vmax.f32 %v557, 0.0
      %v616 = vmax.f32 %v560, 0.0
      %v617 = vmax.f32 %v565, 0.0
      %v618 = vmax.f32 %v568, 0.0
      %v619 = vmax.f32 %v573, 0.0
      %v620 = vmax.f32 %v576, 0.0
      %v621 = vmax.f32 %v581, 0.0
      %v622 = vmax.f32 %v584, 0.0
      %v623 = vmax.f32 %v589, 0.0
      %v624 = vmax.f32 %v592, 0.0
      %v625 = vmax.f32 %v597, 0.0
      %v626 = vmax.f32 %v600, 0.0
      %v627 = vmax.f32 %v605, 0.0
      %v628 = vmax.f32 %v608, 0.0
      %v629 = vmax.f32 %v397, %v611
      %v630 = vmax.f32 %v398, %v612
      %v631 = vmax.f32 %v399, %v613
      %v632 = vmax.f32 %v400, %v614
      %v633 = vmax.f32 %v401, %v615
      %v634 = vmax.f32 %v402, %v616
      %v635 = vmax.f32 %v403, %v617
      %v636 = vmax.f32 %v404, %v618
      %v637 = vmax.f32 %v405, %v619
      %v638 = vmax.f32 %v406, %v620
      %v639 = vmax.f32 %v407, %v621
      %v640 = vmax.f32 %v408, %v622
      %v641 = vmax.f32 %v409, %v623
      %v642 = vmax.f32 %v410, %v624
      %v643 = vmax.f32 %v411, %v625
      %v644 = vmax.f32 %v412, %v626
      %v645 = vmax.f32 %v413, %v627
      %v646 = vmax.f32 %v414, %v628
      %s647 = scalar_lea.vmem %s165, 144
      %v648 = vld [vmem:[%s647] sm:$0xf]
      %v649 = vld [vmem:[%s647 + $0x4] sm:$0xf]
      %v650 = vld [vmem:[%s647 + $0x8] sm:$0xf]
      %v651 = vld [vmem:[%s647 + $0xc] sm:$0xf]
      %v652 = vld [vmem:[%s647 + $0x10] sm:$0xf]
      %v653 = vld [vmem:[%s647 + $0x14] sm:$0xf]
      %v654 = vld [vmem:[%s647 + $0x18] sm:$0xf]
      %v655 = vld [vmem:[%s647 + $0x1c] sm:$0xf]
      %v656 = vld [vmem:[%s647 + $0x20] sm:$0xf]
      %v657 = vld [vmem:[%s647 + $0x24] sm:$0xf]
      %v658 = vld [vmem:[%s647 + $0x28] sm:$0xf]
      %v659 = vld [vmem:[%s647 + $0x2c] sm:$0xf]
      %v660 = vld [vmem:[%s647 + $0x30] sm:$0xf]
      %v661 = vld [vmem:[%s647 + $0x34] sm:$0xf]
      %v662 = vld [vmem:[%s647 + $0x38] sm:$0xf]
      %v663 = vld [vmem:[%s647 + $0x3c] sm:$0xf]
      %v664 = vld [vmem:[%s647 + $0x40] sm:$0xf]
      %v665 = vld [vmem:[%s647 + $0x44] sm:$0xf]
      %v684 = vunpack.c.l.b16 %v648
      %v685 = vunpack.c.l.b16 %v649
      %v686 = vunpack.c.l.b16 %v650
      %v687 = vunpack.c.l.b16 %v651
      %v688 = vunpack.c.l.b16 %v652
      %v689 = vunpack.c.l.b16 %v653
      %v690 = vunpack.c.l.b16 %v654
      %v691 = vunpack.c.l.b16 %v655
      %v692 = vunpack.c.l.b16 %v656
      %v693 = vunpack.c.l.b16 %v657
      %v694 = vunpack.c.l.b16 %v658
      %v695 = vunpack.c.l.b16 %v659
      %v696 = vunpack.c.l.b16 %v660
      %v697 = vunpack.c.l.b16 %v661
      %v698 = vunpack.c.l.b16 %v662
      %v699 = vunpack.c.l.b16 %v663
      %v700 = vunpack.c.l.b16 %v664
      %v701 = vunpack.c.l.b16 %v665
      %v702 = vpack.c.b16 %v685, %v684
      %v703 = vpack.c.b16 %v687, %v686
      %v704 = vpack.c.b16 %v689, %v688
      %v705 = vpack.c.b16 %v691, %v690
      %v706 = vpack.c.b16 %v693, %v692
      %v707 = vpack.c.b16 %v695, %v694
      %v708 = vpack.c.b16 %v697, %v696
      %v709 = vpack.c.b16 %v699, %v698
      %v710 = vpack.c.b16 %v701, %v700
      %v712 = vsel %vm257, %v702, 0
      %v715 = vsel %vm257, %v703, 0
      %v718 = vsel %vm257, %v704, 0
      %v721 = vsel %vm257, %v705, 0
      %v724 = vsel %vm257, %v706, 0
      %v727 = vsel %vm257, %v707, 0
      %v730 = vsel %vm257, %v708, 0
      %v733 = vsel %vm257, %v709, 0
      %v736 = vsel %vm257, %v710, 0
      %738 = vmatprep.subr.bf16.mxu0 0
      %739 = vmatpush1.bf16.msra.mxu0 0
      %740 = vmatprep.subr.bf16.mxu0 0
      %741 = vmatpush1.bf16.msra.mxu0 0
      %742 = vmatprep.subr.bf16.mxu0 0
      %743 = vmatpush1.bf16.msra.mxu0 0
      %744 = vmatprep.subr.bf16.mxu0 0
      %745 = vmatpush1.bf16.msra.mxu0 0
      %746 = vmatprep.subr.bf16.mxu0 0
      %747 = vmatpush1.bf16.msra.mxu0 0
      %748 = vmatprep.subr.bf16.mxu0 0
      %749 = vmatpush1.bf16.msra.mxu0 0
      %750 = vmatprep.subr.bf16.mxu0 0
      %751 = vmatpush1.bf16.msra.mxu0 %v290
      %752 = vmatprep.subr.bf16.mxu0 0
      %753 = vmatpush1.bf16.msra.mxu0 %v254
      %754 = vmatprep.subr.bf16.mxu0 0
      %755 = vmatpush2.bf16.msra.mxu0 0
      %756 = vmatprep.subr.bf16.mxu0 0
      %757 = vmatpush2.bf16.msra.mxu0 0
      %758 = vmatprep.subr.bf16.mxu0 0
      %759 = vmatpush2.bf16.msra.mxu0 0
      %760 = vmatprep.subr.bf16.mxu0 0
      %761 = vmatpush2.bf16.msra.mxu0 0
      %762 = vmatprep.subr.bf16.mxu0 0
      %763 = vmatpush2.bf16.msra.mxu0 0
      %764 = vmatprep.subr.bf16.mxu0 0
      %765 = vmatpush2.bf16.msra.mxu0 0
      %766 = vmatprep.subr.bf16.mxu0 0
      %767 = vmatpush2.bf16.msra.mxu0 0
      %768 = vmatprep.subr.bf16.mxu0 0
      %769 = vmatpush2.bf16.msra.mxu0 0
      %770 = vmatprep.mubr.bf16.mxu0 0
      %771 = vmatmul.mubr.bf16.gmra.mxu0 %v712
      %v772 = vpop.f32.mrf.mxu0
      %v773 = vadd.f32 %v199, %v772
      %v774 = vpop.f32.mrf.mxu0
      %v775 = vpop.f32.mrf.mxu0
      %v776 = vadd.f32 %v199, %v775
      %v777 = vpop.f32.mrf.mxu0
      %778 = vmatprep.mubr.bf16.mxu0 0
      %779 = vmatmul.mubr.bf16.gmra.mxu0 %v715
      %v780 = vpop.f32.mrf.mxu0
      %v781 = vadd.f32 %v199, %v780
      %v782 = vpop.f32.mrf.mxu0
      %v783 = vpop.f32.mrf.mxu0
      %v784 = vadd.f32 %v199, %v783
      %v785 = vpop.f32.mrf.mxu0
      %786 = vmatprep.mubr.bf16.mxu0 0
      %787 = vmatmul.mubr.bf16.gmra.mxu0 %v718
      %v788 = vpop.f32.mrf.mxu0
      %v789 = vadd.f32 %v199, %v788
      %v790 = vpop.f32.mrf.mxu0
      %v791 = vpop.f32.mrf.mxu0
      %v792 = vadd.f32 %v199, %v791
      %v793 = vpop.f32.mrf.mxu0
      %794 = vmatprep.mubr.bf16.mxu0 0
      %795 = vmatmul.mubr.bf16.gmra.mxu0 %v721
      %v796 = vpop.f32.mrf.mxu0
      %v797 = vadd.f32 %v199, %v796
      %v798 = vpop.f32.mrf.mxu0
      %v799 = vpop.f32.mrf.mxu0
      %v800 = vadd.f32 %v199, %v799
      %v801 = vpop.f32.mrf.mxu0
      %802 = vmatprep.mubr.bf16.mxu0 0
      %803 = vmatmul.mubr.bf16.gmra.mxu0 %v724
      %v804 = vpop.f32.mrf.mxu0
      %v805 = vadd.f32 %v199, %v804
      %v806 = vpop.f32.mrf.mxu0
      %v807 = vpop.f32.mrf.mxu0
      %v808 = vadd.f32 %v199, %v807
      %v809 = vpop.f32.mrf.mxu0
      %810 = vmatprep.mubr.bf16.mxu0 0
      %811 = vmatmul.mubr.bf16.gmra.mxu0 %v727
      %v812 = vpop.f32.mrf.mxu0
      %v813 = vadd.f32 %v199, %v812
      %v814 = vpop.f32.mrf.mxu0
      %v815 = vpop.f32.mrf.mxu0
      %v816 = vadd.f32 %v199, %v815
      %v817 = vpop.f32.mrf.mxu0
      %818 = vmatprep.mubr.bf16.mxu0 0
      %819 = vmatmul.mubr.bf16.gmra.mxu0 %v730
      %v820 = vpop.f32.mrf.mxu0
      %v821 = vadd.f32 %v199, %v820
      %v822 = vpop.f32.mrf.mxu0
      %v823 = vpop.f32.mrf.mxu0
      %v824 = vadd.f32 %v199, %v823
      %v825 = vpop.f32.mrf.mxu0
      %826 = vmatprep.mubr.bf16.mxu0 0
      %827 = vmatmul.mubr.bf16.gmra.mxu0 %v733
      %v828 = vpop.f32.mrf.mxu0
      %v829 = vadd.f32 %v199, %v828
      %v830 = vpop.f32.mrf.mxu0
      %v831 = vpop.f32.mrf.mxu0
      %v832 = vadd.f32 %v199, %v831
      %v833 = vpop.f32.mrf.mxu0
      %834 = vmatprep.mubr.bf16.mxu0 0
      %835 = vmatmul.mubr.bf16.gmra.mxu0 %v736
      %v836 = vpop.f32.mrf.mxu0
      %v837 = vadd.f32 %v199, %v836
      %v838 = vpop.f32.mrf.mxu0
      %v839 = vpop.f32.mrf.mxu0
      %v840 = vadd.f32 %v199, %v839
      %v841 = vpop.f32.mrf.mxu0
      %842 = vdwg.mxu0
      %v843 = vmax.f32 %v773, 0.0
      %v844 = vmax.f32 %v776, 0.0
      %v845 = vmax.f32 %v781, 0.0
      %v846 = vmax.f32 %v784, 0.0
      %v847 = vmax.f32 %v789, 0.0
      %v848 = vmax.f32 %v792, 0.0
      %v849 = vmax.f32 %v797, 0.0
      %v850 = vmax.f32 %v800, 0.0
      %v851 = vmax.f32 %v805, 0.0
      %v852 = vmax.f32 %v808, 0.0
      %v853 = vmax.f32 %v813, 0.0
      %v854 = vmax.f32 %v816, 0.0
      %v855 = vmax.f32 %v821, 0.0
      %v856 = vmax.f32 %v824, 0.0
      %v857 = vmax.f32 %v829, 0.0
      %v858 = vmax.f32 %v832, 0.0
      %v859 = vmax.f32 %v837, 0.0
      %v860 = vmax.f32 %v840, 0.0
      %s861 = scalar_lea.vmem %s165, 216
      %v862 = vld [vmem:[%s861] sm:$0xf]
      %v863 = vld [vmem:[%s861 + $0x4] sm:$0xf]
      %v864 = vld [vmem:[%s861 + $0x8] sm:$0xf]
      %v865 = vld [vmem:[%s861 + $0xc] sm:$0xf]
      %v866 = vld [vmem:[%s861 + $0x10] sm:$0xf]
      %v867 = vld [vmem:[%s861 + $0x14] sm:$0xf]
      %v868 = vld [vmem:[%s861 + $0x18] sm:$0xf]
      %v869 = vld [vmem:[%s861 + $0x1c] sm:$0xf]
      %v870 = vld [vmem:[%s861 + $0x20] sm:$0xf]
      %v871 = vld [vmem:[%s861 + $0x24] sm:$0xf]
      %v872 = vld [vmem:[%s861 + $0x28] sm:$0xf]
      %v873 = vld [vmem:[%s861 + $0x2c] sm:$0xf]
      %v874 = vld [vmem:[%s861 + $0x30] sm:$0xf]
      %v875 = vld [vmem:[%s861 + $0x34] sm:$0xf]
      %v876 = vld [vmem:[%s861 + $0x38] sm:$0xf]
      %v877 = vld [vmem:[%s861 + $0x3c] sm:$0xf]
      %v878 = vld [vmem:[%s861 + $0x40] sm:$0xf]
      %v879 = vld [vmem:[%s861 + $0x44] sm:$0xf]
      %v898 = vunpack.c.l.b16 %v862
      %v899 = vunpack.c.l.b16 %v863
      %v900 = vunpack.c.l.b16 %v864
      %v901 = vunpack.c.l.b16 %v865
      %v902 = vunpack.c.l.b16 %v866
      %v903 = vunpack.c.l.b16 %v867
      %v904 = vunpack.c.l.b16 %v868
      %v905 = vunpack.c.l.b16 %v869
      %v906 = vunpack.c.l.b16 %v870
      %v907 = vunpack.c.l.b16 %v871
      %v908 = vunpack.c.l.b16 %v872
      %v909 = vunpack.c.l.b16 %v873
      %v910 = vunpack.c.l.b16 %v874
      %v911 = vunpack.c.l.b16 %v875
      %v912 = vunpack.c.l.b16 %v876
      %v913 = vunpack.c.l.b16 %v877
      %v914 = vunpack.c.l.b16 %v878
      %v915 = vunpack.c.l.b16 %v879
      %v916 = vpack.c.b16 %v899, %v898
      %v917 = vpack.c.b16 %v901, %v900
      %v918 = vpack.c.b16 %v903, %v902
      %v919 = vpack.c.b16 %v905, %v904
      %v920 = vpack.c.b16 %v907, %v906
      %v921 = vpack.c.b16 %v909, %v908
      %v922 = vpack.c.b16 %v911, %v910
      %v923 = vpack.c.b16 %v913, %v912
      %v924 = vpack.c.b16 %v915, %v914
      %v926 = vsel %vm257, %v916, 0
      %v929 = vsel %vm257, %v917, 0
      %v932 = vsel %vm257, %v918, 0
      %v935 = vsel %vm257, %v919, 0
      %v938 = vsel %vm257, %v920, 0
      %v941 = vsel %vm257, %v921, 0
      %v944 = vsel %vm257, %v922, 0
      %v947 = vsel %vm257, %v923, 0
      %v950 = vsel %vm257, %v924, 0
      %952 = vmatprep.subr.bf16.mxu0 0
      %953 = vmatpush1.bf16.msra.mxu0 0
      %954 = vmatprep.subr.bf16.mxu0 0
      %955 = vmatpush1.bf16.msra.mxu0 0
      %956 = vmatprep.subr.bf16.mxu0 0
      %957 = vmatpush1.bf16.msra.mxu0 0
      %958 = vmatprep.subr.bf16.mxu0 0
      %959 = vmatpush1.bf16.msra.mxu0 0
      %960 = vmatprep.subr.bf16.mxu0 0
      %961 = vmatpush1.bf16.msra.mxu0 0
      %962 = vmatprep.subr.bf16.mxu0 0
      %963 = vmatpush1.bf16.msra.mxu0 0
      %964 = vmatprep.subr.bf16.mxu0 0
      %965 = vmatpush1.bf16.msra.mxu0 %v290
      %966 = vmatprep.subr.bf16.mxu0 0
      %967 = vmatpush1.bf16.msra.mxu0 %v254
      %968 = vmatprep.subr.bf16.mxu0 0
      %969 = vmatpush2.bf16.msra.mxu0 0
      %970 = vmatprep.subr.bf16.mxu0 0
      %971 = vmatpush2.bf16.msra.mxu0 0
      %972 = vmatprep.subr.bf16.mxu0 0
      %973 = vmatpush2.bf16.msra.mxu0 0
      %974 = vmatprep.subr.bf16.mxu0 0
      %975 = vmatpush2.bf16.msra.mxu0 0
      %976 = vmatprep.subr.bf16.mxu0 0
      %977 = vmatpush2.bf16.msra.mxu0 0
      %978 = vmatprep.subr.bf16.mxu0 0
      %979 = vmatpush2.bf16.msra.mxu0 0
      %980 = vmatprep.subr.bf16.mxu0 0
      %981 = vmatpush2.bf16.msra.mxu0 0
      %982 = vmatprep.subr.bf16.mxu0 0
      %983 = vmatpush2.bf16.msra.mxu0 0
      %984 = vmatprep.mubr.bf16.mxu0 0
      %985 = vmatmul.mubr.bf16.gmra.mxu0 %v926
      %v986 = vpop.f32.mrf.mxu0
      %v987 = vadd.f32 %v199, %v986
      %v988 = vpop.f32.mrf.mxu0
      %v989 = vpop.f32.mrf.mxu0
      %v990 = vadd.f32 %v199, %v989
      %v991 = vpop.f32.mrf.mxu0
      %992 = vmatprep.mubr.bf16.mxu0 0
      %993 = vmatmul.mubr.bf16.gmra.mxu0 %v929
      %v994 = vpop.f32.mrf.mxu0
      %v995 = vadd.f32 %v199, %v994
      %v996 = vpop.f32.mrf.mxu0
      %v997 = vpop.f32.mrf.mxu0
      %v998 = vadd.f32 %v199, %v997
      %v999 = vpop.f32.mrf.mxu0
      %1000 = vmatprep.mubr.bf16.mxu0 0
      %1001 = vmatmul.mubr.bf16.gmra.mxu0 %v932
      %v1002 = vpop.f32.mrf.mxu0
      %v1003 = vadd.f32 %v199, %v1002
      %v1004 = vpop.f32.mrf.mxu0
      %v1005 = vpop.f32.mrf.mxu0
      %v1006 = vadd.f32 %v199, %v1005
      %v1007 = vpop.f32.mrf.mxu0
      %1008 = vmatprep.mubr.bf16.mxu0 0
      %1009 = vmatmul.mubr.bf16.gmra.mxu0 %v935
      %v1010 = vpop.f32.mrf.mxu0
      %v1011 = vadd.f32 %v199, %v1010
      %v1012 = vpop.f32.mrf.mxu0
      %v1013 = vpop.f32.mrf.mxu0
      %v1014 = vadd.f32 %v199, %v1013
      %v1015 = vpop.f32.mrf.mxu0
      %1016 = vmatprep.mubr.bf16.mxu0 0
      %1017 = vmatmul.mubr.bf16.gmra.mxu0 %v938
      %v1018 = vpop.f32.mrf.mxu0
      %v1019 = vadd.f32 %v199, %v1018
      %v1020 = vpop.f32.mrf.mxu0
      %v1021 = vpop.f32.mrf.mxu0
      %v1022 = vadd.f32 %v199, %v1021
      %v1023 = vpop.f32.mrf.mxu0
      %1024 = vmatprep.mubr.bf16.mxu0 0
      %1025 = vmatmul.mubr.bf16.gmra.mxu0 %v941
      %v1026 = vpop.f32.mrf.mxu0
      %v1027 = vadd.f32 %v199, %v1026
      %v1028 = vpop.f32.mrf.mxu0
      %v1029 = vpop.f32.mrf.mxu0
      %v1030 = vadd.f32 %v199, %v1029
      %v1031 = vpop.f32.mrf.mxu0
      %1032 = vmatprep.mubr.bf16.mxu0 0
      %1033 = vmatmul.mubr.bf16.gmra.mxu0 %v944
      %v1034 = vpop.f32.mrf.mxu0
      %v1035 = vadd.f32 %v199, %v1034
      %v1036 = vpop.f32.mrf.mxu0
      %v1037 = vpop.f32.mrf.mxu0
      %v1038 = vadd.f32 %v199, %v1037
      %v1039 = vpop.f32.mrf.mxu0
      %1040 = vmatprep.mubr.bf16.mxu0 0
      %1041 = vmatmul.mubr.bf16.gmra.mxu0 %v947
      %v1042 = vpop.f32.mrf.mxu0
      %v1043 = vadd.f32 %v199, %v1042
      %v1044 = vpop.f32.mrf.mxu0
      %v1045 = vpop.f32.mrf.mxu0
      %v1046 = vadd.f32 %v199, %v1045
      %v1047 = vpop.f32.mrf.mxu0
      %1048 = vmatprep.mubr.bf16.mxu0 0
      %1049 = vmatmul.mubr.bf16.gmra.mxu0 %v950
      %v1050 = vpop.f32.mrf.mxu0
      %v1051 = vadd.f32 %v199, %v1050
      %v1052 = vpop.f32.mrf.mxu0
      %v1053 = vpop.f32.mrf.mxu0
      %v1054 = vadd.f32 %v199, %v1053
      %v1055 = vpop.f32.mrf.mxu0
      %1056 = vdwg.mxu0
      %v1057 = vmax.f32 %v987, 0.0
      %v1058 = vmax.f32 %v990, 0.0
      %v1059 = vmax.f32 %v995, 0.0
      %v1060 = vmax.f32 %v998, 0.0
      %v1061 = vmax.f32 %v1003, 0.0
      %v1062 = vmax.f32 %v1006, 0.0
      %v1063 = vmax.f32 %v1011, 0.0
      %v1064 = vmax.f32 %v1014, 0.0
      %v1065 = vmax.f32 %v1019, 0.0
      %v1066 = vmax.f32 %v1022, 0.0
      %v1067 = vmax.f32 %v1027, 0.0
      %v1068 = vmax.f32 %v1030, 0.0
      %v1069 = vmax.f32 %v1035, 0.0
      %v1070 = vmax.f32 %v1038, 0.0
      %v1071 = vmax.f32 %v1043, 0.0
      %v1072 = vmax.f32 %v1046, 0.0
      %v1073 = vmax.f32 %v1051, 0.0
      %v1074 = vmax.f32 %v1054, 0.0
      %v1075 = vmax.f32 %v843, %v1057
      %v1076 = vmax.f32 %v844, %v1058
      %v1077 = vmax.f32 %v845, %v1059
      %v1078 = vmax.f32 %v846, %v1060
      %v1079 = vmax.f32 %v847, %v1061
      %v1080 = vmax.f32 %v848, %v1062
      %v1081 = vmax.f32 %v849, %v1063
      %v1082 = vmax.f32 %v850, %v1064
      %v1083 = vmax.f32 %v851, %v1065
      %v1084 = vmax.f32 %v852, %v1066
      %v1085 = vmax.f32 %v853, %v1067
      %v1086 = vmax.f32 %v854, %v1068
      %v1087 = vmax.f32 %v855, %v1069
      %v1088 = vmax.f32 %v856, %v1070
      %v1089 = vmax.f32 %v857, %v1071
      %v1090 = vmax.f32 %v858, %v1072
      %v1091 = vmax.f32 %v859, %v1073
      %v1092 = vmax.f32 %v860, %v1074
      %v1093 = vmax.f32 %v629, %v1075
      %v1094 = vmax.f32 %v630, %v1076
      %v1095 = vmax.f32 %v631, %v1077
      %v1096 = vmax.f32 %v632, %v1078
      %v1097 = vmax.f32 %v633, %v1079
      %v1098 = vmax.f32 %v634, %v1080
      %v1099 = vmax.f32 %v635, %v1081
      %v1100 = vmax.f32 %v636, %v1082
      %v1101 = vmax.f32 %v637, %v1083
      %v1102 = vmax.f32 %v638, %v1084
      %v1103 = vmax.f32 %v639, %v1085
      %v1104 = vmax.f32 %v640, %v1086
      %v1105 = vmax.f32 %v641, %v1087
      %v1106 = vmax.f32 %v642, %v1088
      %v1107 = vmax.f32 %v643, %v1089
      %v1108 = vmax.f32 %v644, %v1090
      %v1109 = vmax.f32 %v645, %v1091
      %v1110 = vmax.f32 %v646, %v1092
      %v1111 = vpack.c.bf16 %v1094, %v1093
      %v1112 = vpack.c.bf16 %v1096, %v1095
      %v1113 = vpack.c.bf16 %v1098, %v1097
      %v1114 = vpack.c.bf16 %v1100, %v1099
      %v1115 = vpack.c.bf16 %v1102, %v1101
      %v1116 = vpack.c.bf16 %v1104, %v1103
      %v1117 = vpack.c.bf16 %v1106, %v1105
      %v1118 = vpack.c.bf16 %v1108, %v1107
      %v1119 = vpack.c.bf16 %v1110, %v1109
      %v1129 = vunpack.c.l.b16 %v1111
      %v1130 = vunpack.c.h.b16 %v1111
      %v1131 = vunpack.c.l.b16 %v1112
      %v1132 = vunpack.c.h.b16 %v1112
      %v1133 = vunpack.c.l.b16 %v1113
      %v1134 = vunpack.c.h.b16 %v1113
      %v1135 = vunpack.c.l.b16 %v1114
      %v1136 = vunpack.c.h.b16 %v1114
      %v1137 = vunpack.c.l.b16 %v1115
      %v1138 = vunpack.c.h.b16 %v1115
      %v1139 = vunpack.c.l.b16 %v1116
      %v1140 = vunpack.c.h.b16 %v1116
      %v1141 = vunpack.c.l.b16 %v1117
      %v1142 = vunpack.c.h.b16 %v1117
      %v1143 = vunpack.c.l.b16 %v1118
      %v1144 = vunpack.c.h.b16 %v1118
      %v1145 = vunpack.c.l.b16 %v1119
      %v1146 = vunpack.c.h.b16 %v1119
      %v1147 = vpack.c.b16 %v1129, %v1129
      %v1148 = vpack.c.b16 %v1130, %v1130
      %v1149 = vpack.c.b16 %v1131, %v1131
      %v1150 = vpack.c.b16 %v1132, %v1132
      %v1151 = vpack.c.b16 %v1133, %v1133
      %v1152 = vpack.c.b16 %v1134, %v1134
      %v1153 = vpack.c.b16 %v1135, %v1135
      %v1154 = vpack.c.b16 %v1136, %v1136
      %v1155 = vpack.c.b16 %v1137, %v1137
      %v1156 = vpack.c.b16 %v1138, %v1138
      %v1157 = vpack.c.b16 %v1139, %v1139
      %v1158 = vpack.c.b16 %v1140, %v1140
      %v1159 = vpack.c.b16 %v1141, %v1141
      %v1160 = vpack.c.b16 %v1142, %v1142
      %v1161 = vpack.c.b16 %v1143, %v1143
      %v1162 = vpack.c.b16 %v1144, %v1144
      %v1163 = vpack.c.b16 %v1145, %v1145
      %v1164 = vpack.c.b16 %v1146, %v1146
      %vm1183 = vcmask 257024
      %1184 = vst.msk [vmem:[%s170] sm:$0xf] %vm1183, %v1147
      %1185 = vst.msk [vmem:[%s170 + $0x4] sm:$0xf] %vm1183, %v1148
      %1186 = vst.msk [vmem:[%s170 + $0x8] sm:$0xf] %vm1183, %v1149
      %1187 = vst.msk [vmem:[%s170 + $0xc] sm:$0xf] %vm1183, %v1150
      %1188 = vst.msk [vmem:[%s170 + $0x10] sm:$0xf] %vm1183, %v1151
      %1189 = vst.msk [vmem:[%s170 + $0x14] sm:$0xf] %vm1183, %v1152
      %1190 = vst.msk [vmem:[%s170 + $0x18] sm:$0xf] %vm1183, %v1153
      %1191 = vst.msk [vmem:[%s170 + $0x1c] sm:$0xf] %vm1183, %v1154
      %1192 = vst.msk [vmem:[%s170 + $0x20] sm:$0xf] %vm1183, %v1155
      %1193 = vst.msk [vmem:[%s170 + $0x24] sm:$0xf] %vm1183, %v1156
      %1194 = vst.msk [vmem:[%s170 + $0x28] sm:$0xf] %vm1183, %v1157
      %1195 = vst.msk [vmem:[%s170 + $0x2c] sm:$0xf] %vm1183, %v1158
      %1196 = vst.msk [vmem:[%s170 + $0x30] sm:$0xf] %vm1183, %v1159
      %1197 = vst.msk [vmem:[%s170 + $0x34] sm:$0xf] %vm1183, %v1160
      %1198 = vst.msk [vmem:[%s170 + $0x38] sm:$0xf] %vm1183, %v1161
      %1199 = vst.msk [vmem:[%s170 + $0x3c] sm:$0xf] %vm1183, %v1162
      %1200 = vst.msk [vmem:[%s170 + $0x40] sm:$0xf] %vm1183, %v1163
      %1201 = vst.msk [vmem:[%s170 + $0x44] sm:$0xf] %vm1183, %v1164
      %p1202 = scmp.lt.s32.totalorder %s14, 1
      %s1203 = scalar_select %p1202, %s14, 1
      %s1204 = smul.addr %s1203, 18
      %s1205 = smul.addr %s1204, 4
      %s1206 = scalar_lea.vmem %s3, %s1205
      // Predicated region
      $region33: #{cnn_forward.3} parent=31 // pred_check
        %p1207 = pneg %p100
      $region34: #{cnn_forward.3} parent=31 // pred_check_branch
        %1209 = sbr.rel (%p1207) target = $region36
      $region35: #{cnn_forward.3} parent=31 // pred_region
        _
      $region36: #{cnn_forward.3} parent=31 // pred_fallthru
        _
    $region32: #{cnn_forward.3} parent=5 // pred_fallthru
      _
    %p1210 = scmp.le.s32.totalorder 2, %s9
    // Predicated region
    $region37: #{cnn_forward.3} parent=5 // pred_check
      %p1211 = pneg %p1210
    $region38: #{cnn_forward.3} parent=5 // pred_check_branch
      %1213 = sbr.rel (%p1211) target = $region40
    $region39: #{cnn_forward.3} parent=5 // pred_region
      %s1214 = ssub.s32 %s9, 2
      // Predicated region
      $region41: #{cnn_forward.3} parent=39 // pred_check
        %p1215 = pneg %p106
      $region42: #{cnn_forward.3} parent=39 // pred_check_branch
        %1217 = sbr.rel (%p1215) target = $region44
      $region43: #{cnn_forward.3} parent=39 // pred_region
        %p1218 = scmp.lt.s32.totalorder %s15, 1
        %s1219 = scalar_select %p1218, %s15, 1
        %s1220 = smul.addr %s1219, 18
        %s1221 = smul.addr %s1220, 4
        %s1222 = scalar_lea.vmem %s3, %s1221
      $region44: #{cnn_forward.3} parent=39 // pred_fallthru
        _
    $region40: #{cnn_forward.3} parent=5 // pred_fallthru
      _
  $region6: #{cnn_forward.3} parent=0 // loop_footer
    %s13 = sadd.s32 1, %s9
  $region7: #{cnn_forward.3} parent=0 // loop_footer_branch
    %8 = sbr.rel target = $region3
  $region8: #{cnn_forward.3} parent=0 // loop_exit
    _

// kernel: cnn_forward.4
$region0: #{cnn_forward.4}
  #allocation0 [shape = 'u32[]', space=smem, size = 0x4, offset = 0x4, fixed_abs, tag = 'smem constant byte address 0x4 - core index']
  #allocation1 [shape = 'u32[144,128]{1,0:T(1,128)}', space=vmem, size = 0x12000, scoped, tag = 'internal scratch']
  %s0 = inlined_call_operand.vmem [shape: bf16[2,4,16,800], index: 0, kind: input, shape index: {}]
  %s1 = inlined_call_operand.vmem [shape: bf16[800,64], index: 1, kind: input, shape index: {}]
  %s2 = inlined_call_operand.vmem [shape: f32[1,64], index: 2, kind: input, shape index: {}]
  %s3 = inlined_call_operand.vmem [shape: bf16[2,16,64], index: 3, kind: output, shape index: {}]
  %s4 = sld [smem:[#allocation0]]
  $region45: #{cnn_forward.4} parent=0
    _
  %s6 = ssub.s32 1, %s4
  %s7 = scalar_select 0, %s6, %s4
  loop: start=0, step=1, limit=4
  $region2: #{cnn_forward.4} parent=0 // loop_pre_header
    _
  $region3: #{cnn_forward.4} parent=0 // loop_header
    %s9 = sphi 0, %s13
    %p10 = scmp.ge.s32.totalorder %s9, 4
    %s19 = sphi 0, %s21
    %s22 = sphi 0, %s19
    %s23 = sphi 0, %s22
    %s39 = sphi 0, %s23
    %s43 = sphi 0, %s43
    %s45 = sphi 0, %s43
    %s46 = sphi 0, %s45
    %s60 = sphi 0, %s46
    %s64 = sphi 0, %s64
    %s66 = sphi 0, %s64
    %s67 = sphi 0, %s66
    %s81 = sphi 0, %s67
    %s87 = sphi 0, %s89
    %s90 = sphi 0, %s87
    %s91 = sphi 0, %s90
    %s107 = sphi 0, %s91
  $region4: #{cnn_forward.4} parent=0 // loop_header_branch
    %12 = sbr.rel (%p10) target = $region8
  $region5: #{cnn_forward.4} parent=0 // loop_body
    %s14 = ssub.s32 %s9, 1
    %s15 = ssub.s32 %s9, 2
    %s16 = sadd.s32 %s9, 1
    %s17 = ssub.s32 %s9, %s16
    %p18 = scmp.eq.s32.totalorder %s17, 0
    %s20 = sadd.s32 %s19, 1
    %s21 = scalar_select %p18, %s19, %s20
    %p24 = pneg %p18
    %p25 = scmp.eq.s32.totalorder %s9, 1
    %p26 = por %p24, %p25
    %p27 = scmp.ne.s32.totalorder %s19, %s22
    %p28 = scmp.eq.s32.totalorder %s9, 0
    %p29 = por %p27, %p28
    %p30 = scmp.ne.s32.totalorder %s19, %s22
    %p31 = scmp.eq.s32.totalorder %s14, 1
    %p32 = por %p30, %p31
    %p33 = scmp.ne.s32.totalorder %s22, %s23
    %p34 = scmp.eq.s32.totalorder %s14, 0
    %p35 = por %p33, %p34
    %p36 = scmp.ne.s32.totalorder %s22, %s23
    %p37 = scmp.eq.s32.totalorder %s15, 1
    %p38 = por %p36, %p37
    %p40 = scmp.ne.s32.totalorder %s23, %s39
    %p41 = scmp.eq.s32.totalorder %s15, 0
    %p42 = por %p40, %p41
    %s44 = sadd.s32 %s43, 1
    %p47 = scmp.eq.s32.totalorder %s9, 1
    %p48 = scmp.ne.s32.totalorder %s43, %s45
    %p49 = scmp.eq.s32.totalorder %s9, 0
    %p50 = por %p48, %p49
    %p51 = scmp.ne.s32.totalorder %s43, %s45
    %p52 = scmp.eq.s32.totalorder %s14, 1
    %p53 = por %p51, %p52
    %p54 = scmp.ne.s32.totalorder %s45, %s46
    %p55 = scmp.eq.s32.totalorder %s14, 0
    %p56 = por %p54, %p55
    %p57 = scmp.ne.s32.totalorder %s45, %s46
    %p58 = scmp.eq.s32.totalorder %s15, 1
    %p59 = por %p57, %p58
    %p61 = scmp.ne.s32.totalorder %s46, %s60
    %p62 = scmp.eq.s32.totalorder %s15, 0
    %p63 = por %p61, %p62
    %s65 = sadd.s32 %s64, 1
    %p68 = scmp.eq.s32.totalorder %s9, 1
    %p69 = scmp.ne.s32.totalorder %s64, %s66
    %p70 = scmp.eq.s32.totalorder %s9, 0
    %p71 = por %p69, %p70
    %p72 = scmp.ne.s32.totalorder %s64, %s66
    %p73 = scmp.eq.s32.totalorder %s14, 1
    %p74 = por %p72, %p73
    %p75 = scmp.ne.s32.totalorder %s66, %s67
    %p76 = scmp.eq.s32.totalorder %s14, 0
    %p77 = por %p75, %p76
    %p78 = scmp.ne.s32.totalorder %s66, %s67
    %p79 = scmp.eq.s32.totalorder %s15, 1
    %p80 = por %p78, %p79
    %p82 = scmp.ne.s32.totalorder %s67, %s81
    %p83 = scmp.eq.s32.totalorder %s15, 0
    %p84 = por %p82, %p83
    %s85 = ssub.s32 %s9, %s16
    %p86 = scmp.eq.s32.totalorder %s85, 0
    %s88 = sadd.s32 %s87, 1
    %s89 = scalar_select %p86, %s87, %s88
    %p92 = pneg %p86
    %p93 = scmp.eq.s32.totalorder %s9, 1
    %p94 = por %p92, %p93
    %p95 = scmp.ne.s32.totalorder %s87, %s90
    %p96 = scmp.eq.s32.totalorder %s9, 0
    %p97 = por %p95, %p96
    %p98 = scmp.ne.s32.totalorder %s87, %s90
    %p99 = scmp.eq.s32.totalorder %s14, 1
    %p100 = por %p98, %p99
    %p101 = scmp.ne.s32.totalorder %s90, %s91
    %p102 = scmp.eq.s32.totalorder %s14, 0
    %p103 = por %p101, %p102
    %p104 = scmp.ne.s32.totalorder %s90, %s91
    %p105 = scmp.eq.s32.totalorder %s15, 1
    %p106 = por %p104, %p105
    %p108 = scmp.ne.s32.totalorder %s91, %s107
    %p109 = scmp.eq.s32.totalorder %s15, 0
    %p110 = por %p108, %p109
    %p111 = scmp.le.s32.totalorder 1, %s9
    %p112 = scmp.lt.s32.totalorder %s9, 3
    %p113 = pnand %p111, %p112
    %p114 = pneg %p113
    // Predicated region
    $region9: #{cnn_forward.4} parent=5 // pred_check
      _
    $region10: #{cnn_forward.4} parent=5 // pred_check_branch
      %116 = sbr.rel (%p113) target = $region12
    $region11: #{cnn_forward.4} parent=5 // pred_region
      %s117 = ssub.s32 %s9, 1
      // Predicated region
      $region13: #{cnn_forward.4} parent=11 // pred_check
        %p118 = pneg %p56
      $region14: #{cnn_forward.4} parent=11 // pred_check_branch
        %120 = sbr.rel (%p118) target = $region16
      $region15: #{cnn_forward.4} parent=11 // pred_region
        _
      $region16: #{cnn_forward.4} parent=11 // pred_fallthru
        _
      // Predicated region
      $region17: #{cnn_forward.4} parent=11 // pred_check
        %p121 = pneg %p77
      $region18: #{cnn_forward.4} parent=11 // pred_check_branch
        %123 = sbr.rel (%p121) target = $region20
      $region19: #{cnn_forward.4} parent=11 // pred_region
        _
      $region20: #{cnn_forward.4} parent=11 // pred_fallthru
        _
    $region12: #{cnn_forward.4} parent=5 // pred_fallthru
      _
    %p124 = scmp.lt.s32.totalorder %s9, 2
    // Predicated region
    $region21: #{cnn_forward.4} parent=5 // pred_check
      %p125 = pneg %p124
    $region22: #{cnn_forward.4} parent=5 // pred_check_branch
      %127 = sbr.rel (%p125) target = $region24
    $region23: #{cnn_forward.4} parent=5 // pred_region
      // Predicated region
      $region25: #{cnn_forward.4} parent=23 // pred_check
        %p128 = pneg %p29
      $region26: #{cnn_forward.4} parent=23 // pred_check_branch
        %130 = sbr.rel (%p128) target = $region28
      $region27: #{cnn_forward.4} parent=23 // pred_region
        %p131 = scmp.lt.s32.totalorder %s9, 1
        %s132 = scalar_select %p131, %s9, 1
        %s133 = smul.addr %s132, 56
        %s134 = smul.addr %s133, 4
        %s135 = scalar_lea.vmem %s0, %s134
      $region28: #{cnn_forward.4} parent=23 // pred_fallthru
        _
    $region24: #{cnn_forward.4} parent=5 // pred_fallthru
      _
    %p136 = scmp.le.s32.totalorder 1, %s9
    %p137 = scmp.lt.s32.totalorder %s9, 3
    %p138 = pnand %p136, %p137
    %p139 = pneg %p138
    // Predicated region
    $region29: #{cnn_forward.4} parent=5 // pred_check
      _
    $region30: #{cnn_forward.4} parent=5 // pred_check_branch
      %141 = sbr.rel (%p138) target = $region32
    $region31: #{cnn_forward.4} parent=5 // pred_region
      %s142 = ssub.s32 %s9, 1
      %p143 = scmp.lt.s32.totalorder %s14, 1
      %s144 = scalar_select %p143, %s14, 1
      %s145 = smul.addr %s144, 56
      %s146 = smul.addr %s145, 4
      %s147 = scalar_lea.vmem %s0, %s146
      %p148 = pneg %p35
      %p149 = pneg %p32
      %p150 = pneg %p56
      %p151 = pneg %p53
      %p152 = pneg %p77
      %p153 = pneg %p74
      %p154 = pneg %p103
      %p155 = pneg %p100
      %p156 = scmp.lt.s32.totalorder %s14, 1
      %s157 = scalar_select %p156, %s14, 1
      %s158 = smul.addr %s157, 2
      %s159 = smul.addr %s158, 4
      %s160 = scalar_lea.vmem %s3, %s159
      %p161 = scmp.lt.s32.totalorder %s14, 1
      %s162 = scalar_select %p161, %s14, 1
      %s163 = smul.addr %s162, 56
      %s164 = smul.addr %s163, 4
      %s165 = scalar_lea.vmem %s0, %s164
      %p166 = scmp.lt.s32.totalorder %s14, 1
      %s167 = scalar_select %p166, %s14, 1
      %s168 = smul.addr %s167, 2
      %s169 = smul.addr %s168, 4
      %s170 = scalar_lea.vmem %s3, %s169
      %v172 = vld [vmem:[%s1] sm:$0xf]
      %v173 = vld [vmem:[%s1 + $0x4] sm:$0xf]
      %v174 = vld [vmem:[%s1 + $0x8] sm:$0xf]
      %v175 = vld [vmem:[%s1 + $0xc] sm:$0xf]
      %v176 = vld [vmem:[%s1 + $0x10] sm:$0xf]
      %v177 = vld [vmem:[%s1 + $0x14] sm:$0xf]
      %v178 = vld [vmem:[%s1 + $0x18] sm:$0xf]
      %v179 = vld [vmem:[%s1 + $0x1c] sm:$0xf]
      %v180 = vld [vmem:[%s1 + $0x20] sm:$0xf]
      %v181 = vld [vmem:[%s1 + $0x24] sm:$0xf]
      %v182 = vld [vmem:[%s1 + $0x28] sm:$0xf]
      %v183 = vld [vmem:[%s1 + $0x2c] sm:$0xf]
      %v184 = vld [vmem:[%s1 + $0x30] sm:$0xf]
      %v185 = vld [vmem:[%s1 + $0x34] sm:$0xf]
      %v186 = vld [vmem:[%s1 + $0x38] sm:$0xf]
      %v187 = vld [vmem:[%s1 + $0x3c] sm:$0xf]
      %v188 = vld [vmem:[%s1 + $0x40] sm:$0xf]
      %v189 = vld [vmem:[%s1 + $0x44] sm:$0xf]
      %v190 = vld [vmem:[%s1 + $0x48] sm:$0xf]
      %v191 = vld [vmem:[%s1 + $0x4c] sm:$0xf]
      %v192 = vld [vmem:[%s1 + $0x50] sm:$0xf]
      %v193 = vld [vmem:[%s1 + $0x54] sm:$0xf]
      %v194 = vld [vmem:[%s1 + $0x58] sm:$0xf]
      %v195 = vld [vmem:[%s1 + $0x5c] sm:$0xf]
      %v196 = vld [vmem:[%s1 + $0x60] sm:$0xf]
      %v197 = vld [vmem:[%s1 + $0x64] sm:$0xf]
      %v198 = vld [vmem:[%s1 + $0x68] sm:$0xf]
      %v199 = vld [vmem:[%s1 + $0x6c] sm:$0xf]
      %v200 = vld [vmem:[%s1 + $0x70] sm:$0xf]
      %v201 = vld [vmem:[%s1 + $0x74] sm:$0xf]
      %v202 = vld [vmem:[%s1 + $0x78] sm:$0xf]
      %v203 = vld [vmem:[%s1 + $0x7c] sm:$0xf]
      %v204 = vld [vmem:[%s1 + $0x80] sm:$0xf]
      %v205 = vld [vmem:[%s1 + $0x84] sm:$0xf]
      %v206 = vld [vmem:[%s1 + $0x88] sm:$0xf]
      %v207 = vld [vmem:[%s1 + $0x8c] sm:$0xf]
      %v208 = vld [vmem:[%s1 + $0x90] sm:$0xf]
      %v209 = vld [vmem:[%s1 + $0x94] sm:$0xf]
      %v210 = vld [vmem:[%s1 + $0x98] sm:$0xf]
      %v211 = vld [vmem:[%s1 + $0x9c] sm:$0xf]
      %v212 = vld [vmem:[%s1 + $0xa0] sm:$0xf]
      %v213 = vld [vmem:[%s1 + $0xa4] sm:$0xf]
      %v214 = vld [vmem:[%s1 + $0xa8] sm:$0xf]
      %v215 = vld [vmem:[%s1 + $0xac] sm:$0xf]
      %v216 = vld [vmem:[%s1 + $0xb0] sm:$0xf]
      %v217 = vld [vmem:[%s1 + $0xb4] sm:$0xf]
      %v218 = vld [vmem:[%s1 + $0xb8] sm:$0xf]
      %v219 = vld [vmem:[%s1 + $0xbc] sm:$0xf]
      %v220 = vld [vmem:[%s1 + $0xc0] sm:$0xf]
      %v221 = vld [vmem:[%s1 + $0xc4] sm:$0xf]
      %v222 = vld [vmem:[%s1 + $0xc8] sm:$0xf]
      %v223 = vld [vmem:[%s1 + $0xcc] sm:$0xf]
      %v224 = vld [vmem:[%s1 + $0xd0] sm:$0xf]
      %v225 = vld [vmem:[%s1 + $0xd4] sm:$0xf]
      %v226 = vld [vmem:[%s1 + $0xd8] sm:$0xf]
      %v227 = vld [vmem:[%s1 + $0xdc] sm:$0xf]
      %v228 = vld [vmem:[%s1 + $0xe0] sm:$0xf]
      %v229 = vld [vmem:[%s1 + $0xe4] sm:$0xf]
      %v230 = vld [vmem:[%s1 + $0xe8] sm:$0xf]
      %v231 = vld [vmem:[%s1 + $0xec] sm:$0xf]
      %v232 = vld [vmem:[%s1 + $0xf0] sm:$0xf]
      %v233 = vld [vmem:[%s1 + $0xf4] sm:$0xf]
      %v234 = vld [vmem:[%s1 + $0xf8] sm:$0xf]
      %v235 = vld [vmem:[%s1 + $0xfc] sm:$0xf]
      %v236 = vld [vmem:[%s1 + $0x100] sm:$0xf]
      %v237 = vld [vmem:[%s1 + $0x104] sm:$0xf]
      %v238 = vld [vmem:[%s1 + $0x108] sm:$0xf]
      %v239 = vld [vmem:[%s1 + $0x10c] sm:$0xf]
      %v240 = vld [vmem:[%s1 + $0x110] sm:$0xf]
      %v241 = vld [vmem:[%s1 + $0x114] sm:$0xf]
      %v242 = vld [vmem:[%s1 + $0x118] sm:$0xf]
      %v243 = vld [vmem:[%s1 + $0x11c] sm:$0xf]
      %v244 = vld [vmem:[%s1 + $0x120] sm:$0xf]
      %v245 = vld [vmem:[%s1 + $0x124] sm:$0xf]
      %v246 = vld [vmem:[%s1 + $0x128] sm:$0xf]
      %v247 = vld [vmem:[%s1 + $0x12c] sm:$0xf]
      %v248 = vld [vmem:[%s1 + $0x130] sm:$0xf]
      %v249 = vld [vmem:[%s1 + $0x134] sm:$0xf]
      %v250 = vld [vmem:[%s1 + $0x138] sm:$0xf]
      %v251 = vld [vmem:[%s1 + $0x13c] sm:$0xf]
      %v252 = vld [vmem:[%s1 + $0x140] sm:$0xf]
      %v253 = vld [vmem:[%s1 + $0x144] sm:$0xf]
      %v254 = vld [vmem:[%s1 + $0x148] sm:$0xf]
      %v255 = vld [vmem:[%s1 + $0x14c] sm:$0xf]
      %v256 = vld [vmem:[%s1 + $0x150] sm:$0xf]
      %v257 = vld [vmem:[%s1 + $0x154] sm:$0xf]
      %v258 = vld [vmem:[%s1 + $0x158] sm:$0xf]
      %v259 = vld [vmem:[%s1 + $0x15c] sm:$0xf]
      %v260 = vld [vmem:[%s1 + $0x160] sm:$0xf]
      %v261 = vld [vmem:[%s1 + $0x164] sm:$0xf]
      %v262 = vld [vmem:[%s1 + $0x168] sm:$0xf]
      %v263 = vld [vmem:[%s1 + $0x16c] sm:$0xf]
      %v264 = vld [vmem:[%s1 + $0x170] sm:$0xf]
      %v265 = vld [vmem:[%s1 + $0x174] sm:$0xf]
      %v266 = vld [vmem:[%s1 + $0x178] sm:$0xf]
      %v267 = vld [vmem:[%s1 + $0x17c] sm:$0xf]
      %v268 = vld [vmem:[%s1 + $0x180] sm:$0xf]
      %v269 = vld [vmem:[%s1 + $0x184] sm:$0xf]
      %v270 = vld [vmem:[%s1 + $0x188] sm:$0xf]
      %v271 = vld [vmem:[%s1 + $0x18c] sm:$0xf]
      %v272 = vld [vmem:[%s2] sm:$0x1]
      %v273 = vld [vmem:[%s165] sm:$0xff]
      %v274 = vld [vmem:[%s165 + $0x8] sm:$0xff]
      %v275 = vld [vmem:[%s165 + $0x10] sm:$0xff]
      %v276 = vld [vmem:[%s165 + $0x18] sm:$0xf]
      %v277 = vld [vmem:[%s165 + $0x1c] sm:$0xff]
      %v278 = vld [vmem:[%s165 + $0x24] sm:$0xff]
      %v279 = vld [vmem:[%s165 + $0x2c] sm:$0xff]
      %v280 = vld [vmem:[%s165 + $0x34] sm:$0xf]
      %v282 = vlaneseq
      %v283 = vshrl.u32 %v282, 7
      %v284 = vsub.s32 0, %v283
      %v285 = vrot.slane %v272, %v284
      %v295 = vunpack.c.l.b16 %v273
      %v296 = vunpack.c.h.b16 %v273
      %v297 = vunpack.c.l.b16 %v274
      %v298 = vunpack.c.h.b16 %v274
      %v299 = vunpack.c.l.b16 %v275
      %v300 = vunpack.c.h.b16 %v275
      %v301 = vunpack.c.l.b16 %v276
      %v302 = vunpack.c.l.b16 %v277
      %v303 = vunpack.c.h.b16 %v277
      %v304 = vunpack.c.l.b16 %v278
      %v305 = vunpack.c.h.b16 %v278
      %v306 = vunpack.c.l.b16 %v279
      %v307 = vunpack.c.h.b16 %v279
      %v308 = vunpack.c.l.b16 %v280
      %v309 = vpack.c.b16 %v302, %v295
      %v310 = vpack.c.b16 %v303, %v296
      %v311 = vpack.c.b16 %v304, %v297
      %v312 = vpack.c.b16 %v305, %v298
      %v313 = vpack.c.b16 %v306, %v299
      %v314 = vpack.c.b16 %v307, %v300
      %v315 = vpack.c.b16 %v308, %v301
      %v422 = vunpack.c.l.b16 %v172
      %v423 = vunpack.c.l.b16 %v173
      %v424 = vunpack.c.l.b16 %v174
      %v425 = vunpack.c.l.b16 %v175
      %v426 = vunpack.c.l.b16 %v176
      %v427 = vunpack.c.l.b16 %v177
      %v428 = vunpack.c.l.b16 %v178
      %v429 = vunpack.c.l.b16 %v179
      %v430 = vunpack.c.l.b16 %v180
      %v431 = vunpack.c.l.b16 %v181
      %v432 = vunpack.c.l.b16 %v182
      %v433 = vunpack.c.l.b16 %v183
      %v434 = vunpack.c.l.b16 %v184
      %v435 = vunpack.c.l.b16 %v185
      %v436 = vunpack.c.l.b16 %v186
      %v437 = vunpack.c.l.b16 %v187
      %v438 = vunpack.c.l.b16 %v188
      %v439 = vunpack.c.l.b16 %v189
      %v440 = vunpack.c.l.b16 %v190
      %v441 = vunpack.c.l.b16 %v191
      %v442 = vunpack.c.l.b16 %v192
      %v443 = vunpack.c.l.b16 %v193
      %v444 = vunpack.c.l.b16 %v194
      %v445 = vunpack.c.l.b16 %v195
      %v446 = vunpack.c.l.b16 %v196
      %v447 = vunpack.c.l.b16 %v197
      %v448 = vunpack.c.l.b16 %v198
      %v449 = vunpack.c.l.b16 %v199
      %v450 = vunpack.c.l.b16 %v200
      %v451 = vunpack.c.l.b16 %v201
      %v452 = vunpack.c.l.b16 %v202
      %v453 = vunpack.c.l.b16 %v203
      %v454 = vunpack.c.l.b16 %v204
      %v455 = vunpack.c.l.b16 %v205
      %v456 = vunpack.c.l.b16 %v206
      %v457 = vunpack.c.l.b16 %v207
      %v458 = vunpack.c.l.b16 %v208
      %v459 = vunpack.c.l.b16 %v209
      %v460 = vunpack.c.l.b16 %v210
      %v461 = vunpack.c.l.b16 %v211
      %v462 = vunpack.c.l.b16 %v212
      %v463 = vunpack.c.l.b16 %v213
      %v464 = vunpack.c.l.b16 %v214
      %v465 = vunpack.c.l.b16 %v215
      %v466 = vunpack.c.l.b16 %v216
      %v467 = vunpack.c.l.b16 %v217
      %v468 = vunpack.c.l.b16 %v218
      %v469 = vunpack.c.l.b16 %v219
      %v470 = vunpack.c.l.b16 %v220
      %v471 = vunpack.c.l.b16 %v221
      %v472 = vunpack.c.l.b16 %v222
      %v473 = vunpack.c.l.b16 %v223
      %v474 = vunpack.c.l.b16 %v224
      %v475 = vunpack.c.l.b16 %v225
      %v476 = vunpack.c.l.b16 %v226
      %v477 = vunpack.c.l.b16 %v227
      %v478 = vunpack.c.l.b16 %v228
      %v479 = vunpack.c.l.b16 %v229
      %v480 = vunpack.c.l.b16 %v230
      %v481 = vunpack.c.l.b16 %v231
      %v482 = vunpack.c.l.b16 %v232
      %v483 = vunpack.c.l.b16 %v233
      %v484 = vunpack.c.l.b16 %v234
      %v485 = vunpack.c.l.b16 %v235
      %v486 = vunpack.c.l.b16 %v236
      %v487 = vunpack.c.l.b16 %v237
      %v488 = vunpack.c.l.b16 %v238
      %v489 = vunpack.c.l.b16 %v239
      %v490 = vunpack.c.l.b16 %v240
      %v491 = vunpack.c.l.b16 %v241
      %v492 = vunpack.c.l.b16 %v242
      %v493 = vunpack.c.l.b16 %v243
      %v494 = vunpack.c.l.b16 %v244
      %v495 = vunpack.c.l.b16 %v245
      %v496 = vunpack.c.l.b16 %v246
      %v497 = vunpack.c.l.b16 %v247
      %v498 = vunpack.c.l.b16 %v248
      %v499 = vunpack.c.l.b16 %v249
      %v500 = vunpack.c.l.b16 %v250
      %v501 = vunpack.c.l.b16 %v251
      %v502 = vunpack.c.l.b16 %v252
      %v503 = vunpack.c.l.b16 %v253
      %v504 = vunpack.c.l.b16 %v254
      %v505 = vunpack.c.l.b16 %v255
      %v506 = vunpack.c.l.b16 %v256
      %v507 = vunpack.c.l.b16 %v257
      %v508 = vunpack.c.l.b16 %v258
      %v509 = vunpack.c.l.b16 %v259
      %v510 = vunpack.c.l.b16 %v260
      %v511 = vunpack.c.l.b16 %v261
      %v512 = vunpack.c.l.b16 %v262
      %v513 = vunpack.c.l.b16 %v263
      %v514 = vunpack.c.l.b16 %v264
      %v515 = vunpack.c.l.b16 %v265
      %v516 = vunpack.c.l.b16 %v266
      %v517 = vunpack.c.l.b16 %v267
      %v518 = vunpack.c.l.b16 %v268
      %v519 = vunpack.c.l.b16 %v269
      %v520 = vunpack.c.l.b16 %v270
      %v521 = vunpack.c.l.b16 %v271
      %v522 = vpack.c.b16 %v423, %v422
      %v523 = vpack.c.b16 %v425, %v424
      %v524 = vpack.c.b16 %v427, %v426
      %v525 = vpack.c.b16 %v429, %v428
      %v526 = vpack.c.b16 %v431, %v430
      %v527 = vpack.c.b16 %v433, %v432
      %v528 = vpack.c.b16 %v435, %v434
      %v529 = vpack.c.b16 %v437, %v436
      %v530 = vpack.c.b16 %v439, %v438
      %v531 = vpack.c.b16 %v441, %v440
      %v532 = vpack.c.b16 %v443, %v442
      %v533 = vpack.c.b16 %v445, %v444
      %v534 = vpack.c.b16 %v447, %v446
      %v535 = vpack.c.b16 %v449, %v448
      %v536 = vpack.c.b16 %v451, %v450
      %v537 = vpack.c.b16 %v453, %v452
      %v538 = vpack.c.b16 %v455, %v454
      %v539 = vpack.c.b16 %v457, %v456
      %v540 = vpack.c.b16 %v459, %v458
      %v541 = vpack.c.b16 %v461, %v460
      %v542 = vpack.c.b16 %v463, %v462
      %v543 = vpack.c.b16 %v465, %v464
      %v544 = vpack.c.b16 %v467, %v466
      %v545 = vpack.c.b16 %v469, %v468
      %v546 = vpack.c.b16 %v471, %v470
      %v547 = vpack.c.b16 %v473, %v472
      %v548 = vpack.c.b16 %v475, %v474
      %v549 = vpack.c.b16 %v477, %v476
      %v550 = vpack.c.b16 %v479, %v478
      %v551 = vpack.c.b16 %v481, %v480
      %v552 = vpack.c.b16 %v483, %v482
      %v553 = vpack.c.b16 %v485, %v484
      %v554 = vpack.c.b16 %v487, %v486
      %v555 = vpack.c.b16 %v489, %v488
      %v556 = vpack.c.b16 %v491, %v490
      %v557 = vpack.c.b16 %v493, %v492
      %v558 = vpack.c.b16 %v495, %v494
      %v559 = vpack.c.b16 %v497, %v496
      %v560 = vpack.c.b16 %v499, %v498
      %v561 = vpack.c.b16 %v501, %v500
      %v562 = vpack.c.b16 %v503, %v502
      %v563 = vpack.c.b16 %v505, %v504
      %v564 = vpack.c.b16 %v507, %v506
      %v565 = vpack.c.b16 %v509, %v508
      %v566 = vpack.c.b16 %v511, %v510
      %v567 = vpack.c.b16 %v513, %v512
      %v568 = vpack.c.b16 %v515, %v514
      %v569 = vpack.c.b16 %v517, %v516
      %v570 = vpack.c.b16 %v519, %v518
      %v571 = vpack.c.b16 %v521, %v520
      %vm622 = vcmask 261120
      %v624 = vsel %vm622, %v315, 0
      %626 = vmatprep.subr.bf16.mxu0 0
      %627 = vmatpush1.bf16.msra.mxu0 %v529
      %628 = vmatprep.subr.bf16.mxu0 0
      %629 = vmatpush1.bf16.msra.mxu0 %v528
      %630 = vmatprep.subr.bf16.mxu0 0
      %631 = vmatpush1.bf16.msra.mxu0 %v527
      %632 = vmatprep.subr.bf16.mxu0 0
      %633 = vmatpush1.bf16.msra.mxu0 %v526
      %634 = vmatprep.subr.bf16.mxu0 0
      %635 = vmatpush1.bf16.msra.mxu0 %v525
      %636 = vmatprep.subr.bf16.mxu0 0
      %637 = vmatpush1.bf16.msra.mxu0 %v524
      %638 = vmatprep.subr.bf16.mxu0 0
      %639 = vmatpush1.bf16.msra.mxu0 %v523
      %640 = vmatprep.subr.bf16.mxu0 0
      %641 = vmatpush1.bf16.msra.mxu0 %v522
      %642 = vmatprep.subr.bf16.mxu0 0
      %643 = vmatpush2.bf16.msra.mxu0 %v537
      %644 = vmatprep.subr.bf16.mxu0 0
      %645 = vmatpush2.bf16.msra.mxu0 %v536
      %646 = vmatprep.subr.bf16.mxu0 0
      %647 = vmatpush2.bf16.msra.mxu0 %v535
      %648 = vmatprep.subr.bf16.mxu0 0
      %649 = vmatpush2.bf16.msra.mxu0 %v534
      %650 = vmatprep.subr.bf16.mxu0 0
      %651 = vmatpush2.bf16.msra.mxu0 %v533
      %652 = vmatprep.subr.bf16.mxu0 0
      %653 = vmatpush2.bf16.msra.mxu0 %v532
      %654 = vmatprep.subr.bf16.mxu0 0
      %655 = vmatpush2.bf16.msra.mxu0 %v531
      %656 = vmatprep.subr.bf16.mxu0 0
      %657 = vmatpush2.bf16.msra.mxu0 %v530
      %658 = vmatprep.mubr.bf16.mxu0 %v310
      %659 = vmatmul.mubr.bf16.gmra.mxu0 %v309
      %v660 = vpop.f32.mrf.mxu0
      %v661 = vadd.f32 %v285, %v660
      %v662 = vpop.f32.mrf.mxu0
      %v663 = vpop.f32.mrf.mxu0
      %v664 = vadd.f32 %v285, %v663
      %v665 = vpop.f32.mrf.mxu0
      %666 = vdwg.mxu0
      %667 = vmatprep.subr.bf16.mxu0 0
      %668 = vmatpush1.bf16.msra.mxu0 %v545
      %669 = vmatprep.subr.bf16.mxu0 0
      %670 = vmatpush1.bf16.msra.mxu0 %v544
      %671 = vmatprep.subr.bf16.mxu0 0
      %672 = vmatpush1.bf16.msra.mxu0 %v543
      %673 = vmatprep.subr.bf16.mxu0 0
      %674 = vmatpush1.bf16.msra.mxu0 %v542
      %675 = vmatprep.subr.bf16.mxu0 0
      %676 = vmatpush1.bf16.msra.mxu0 %v541
      %677 = vmatprep.subr.bf16.mxu0 0
      %678 = vmatpush1.bf16.msra.mxu0 %v540
      %679 = vmatprep.subr.bf16.mxu0 0
      %680 = vmatpush1.bf16.msra.mxu0 %v539
      %681 = vmatprep.subr.bf16.mxu0 0
      %682 = vmatpush1.bf16.msra.mxu0 %v538
      %683 = vmatprep.subr.bf16.mxu0 0
      %684 = vmatpush2.bf16.msra.mxu0 %v553
      %685 = vmatprep.subr.bf16.mxu0 0
      %686 = vmatpush2.bf16.msra.mxu0 %v552
      %687 = vmatprep.subr.bf16.mxu0 0
      %688 = vmatpush2.bf16.msra.mxu0 %v551
      %689 = vmatprep.subr.bf16.mxu0 0
      %690 = vmatpush2.bf16.msra.mxu0 %v550
      %691 = vmatprep.subr.bf16.mxu0 0
      %692 = vmatpush2.bf16.msra.mxu0 %v549
      %693 = vmatprep.subr.bf16.mxu0 0
      %694 = vmatpush2.bf16.msra.mxu0 %v548
      %695 = vmatprep.subr.bf16.mxu0 0
      %696 = vmatpush2.bf16.msra.mxu0 %v547
      %697 = vmatprep.subr.bf16.mxu0 0
      %698 = vmatpush2.bf16.msra.mxu0 %v546
      %699 = vmatprep.mubr.bf16.mxu0 %v312
      %700 = vmatmul.mubr.bf16.gmra.mxu0 %v311
      %v701 = vpop.f32.mrf.mxu0
      %v702 = vadd.f32 %v661, %v701
      %v703 = vpop.f32.mrf.mxu0
      %v704 = vpop.f32.mrf.mxu0
      %v705 = vadd.f32 %v664, %v704
      %v706 = vpop.f32.mrf.mxu0
      %707 = vdwg.mxu0
      %708 = vmatprep.subr.bf16.mxu0 0
      %709 = vmatpush1.bf16.msra.mxu0 %v561
      %710 = vmatprep.subr.bf16.mxu0 0
      %711 = vmatpush1.bf16.msra.mxu0 %v560
      %712 = vmatprep.subr.bf16.mxu0 0
      %713 = vmatpush1.bf16.msra.mxu0 %v559
      %714 = vmatprep.subr.bf16.mxu0 0
      %715 = vmatpush1.bf16.msra.mxu0 %v558
      %716 = vmatprep.subr.bf16.mxu0 0
      %717 = vmatpush1.bf16.msra.mxu0 %v557
      %718 = vmatprep.subr.bf16.mxu0 0
      %719 = vmatpush1.bf16.msra.mxu0 %v556
      %720 = vmatprep.subr.bf16.mxu0 0
      %721 = vmatpush1.bf16.msra.mxu0 %v555
      %722 = vmatprep.subr.bf16.mxu0 0
      %723 = vmatpush1.bf16.msra.mxu0 %v554
      %724 = vmatprep.subr.bf16.mxu0 0
      %725 = vmatpush2.bf16.msra.mxu0 %v569
      %726 = vmatprep.subr.bf16.mxu0 0
      %727 = vmatpush2.bf16.msra.mxu0 %v568
      %728 = vmatprep.subr.bf16.mxu0 0
      %729 = vmatpush2.bf16.msra.mxu0 %v567
      %730 = vmatprep.subr.bf16.mxu0 0
      %731 = vmatpush2.bf16.msra.mxu0 %v566
      %732 = vmatprep.subr.bf16.mxu0 0
      %733 = vmatpush2.bf16.msra.mxu0 %v565
      %734 = vmatprep.subr.bf16.mxu0 0
      %735 = vmatpush2.bf16.msra.mxu0 %v564
      %736 = vmatprep.subr.bf16.mxu0 0
      %737 = vmatpush2.bf16.msra.mxu0 %v563
      %738 = vmatprep.subr.bf16.mxu0 0
      %739 = vmatpush2.bf16.msra.mxu0 %v562
      %740 = vmatprep.mubr.bf16.mxu0 %v314
      %741 = vmatmul.mubr.bf16.gmra.mxu0 %v313
      %v742 = vpop.f32.mrf.mxu0
      %v743 = vadd.f32 %v702, %v742
      %v744 = vpop.f32.mrf.mxu0
      %v745 = vpop.f32.mrf.mxu0
      %v746 = vadd.f32 %v705, %v745
      %v747 = vpop.f32.mrf.mxu0
      %748 = vdwg.mxu0
      %749 = vmatprep.subr.bf16.mxu0 0
      %750 = vmatpush1.bf16.msra.mxu0 0
      %751 = vmatprep.subr.bf16.mxu0 0
      %752 = vmatpush1.bf16.msra.mxu0 0
      %753 = vmatprep.subr.bf16.mxu0 0
      %754 = vmatpush1.bf16.msra.mxu0 0
      %755 = vmatprep.subr.bf16.mxu0 0
      %756 = vmatpush1.bf16.msra.mxu0 0
      %757 = vmatprep.subr.bf16.mxu0 0
      %758 = vmatpush1.bf16.msra.mxu0 0
      %759 = vmatprep.subr.bf16.mxu0 0
      %760 = vmatpush1.bf16.msra.mxu0 0
      %761 = vmatprep.subr.bf16.mxu0 0
      %762 = vmatpush1.bf16.msra.mxu0 %v571
      %763 = vmatprep.subr.bf16.mxu0 0
      %764 = vmatpush1.bf16.msra.mxu0 %v570
      %765 = vmatprep.subr.bf16.mxu0 0
      %766 = vmatpush2.bf16.msra.mxu0 0
      %767 = vmatprep.subr.bf16.mxu0 0
      %768 = vmatpush2.bf16.msra.mxu0 0
      %769 = vmatprep.subr.bf16.mxu0 0
      %770 = vmatpush2.bf16.msra.mxu0 0
      %771 = vmatprep.subr.bf16.mxu0 0
      %772 = vmatpush2.bf16.msra.mxu0 0
      %773 = vmatprep.subr.bf16.mxu0 0
      %774 = vmatpush2.bf16.msra.mxu0 0
      %775 = vmatprep.subr.bf16.mxu0 0
      %776 = vmatpush2.bf16.msra.mxu0 0
      %777 = vmatprep.subr.bf16.mxu0 0
      %778 = vmatpush2.bf16.msra.mxu0 0
      %779 = vmatprep.subr.bf16.mxu0 0
      %780 = vmatpush2.bf16.msra.mxu0 0
      %781 = vmatprep.mubr.bf16.mxu0 0
      %782 = vmatmul.mubr.bf16.gmra.mxu0 %v624
      %v783 = vpop.f32.mrf.mxu0
      %v784 = vadd.f32 %v743, %v783
      %v785 = vpop.f32.mrf.mxu0
      %v786 = vpop.f32.mrf.mxu0
      %v787 = vadd.f32 %v746, %v786
      %v788 = vpop.f32.mrf.mxu0
      %789 = vdwg.mxu0
      %v790 = vmax.f32 %v784, 0.0
      %v791 = vmax.f32 %v787, 0.0
      %s792 = scalar_lea.vmem %s165, 56
      %v793 = vld [vmem:[%s792] sm:$0xff]
      %v794 = vld [vmem:[%s792 + $0x8] sm:$0xff]
      %v795 = vld [vmem:[%s792 + $0x10] sm:$0xff]
      %v796 = vld [vmem:[%s792 + $0x18] sm:$0xf]
      %v797 = vld [vmem:[%s792 + $0x1c] sm:$0xff]
      %v798 = vld [vmem:[%s792 + $0x24] sm:$0xff]
      %v799 = vld [vmem:[%s792 + $0x2c] sm:$0xff]
      %v800 = vld [vmem:[%s792 + $0x34] sm:$0xf]
      %v809 = vunpack.c.l.b16 %v793
      %v810 = vunpack.c.h.b16 %v793
      %v811 = vunpack.c.l.b16 %v794
      %v812 = vunpack.c.h.b16 %v794
      %v813 = vunpack.c.l.b16 %v795
      %v814 = vunpack.c.h.b16 %v795
      %v815 = vunpack.c.l.b16 %v796
      %v816 = vunpack.c.l.b16 %v797
      %v817 = vunpack.c.h.b16 %v797
      %v818 = vunpack.c.l.b16 %v798
      %v819 = vunpack.c.h.b16 %v798
      %v820 = vunpack.c.l.b16 %v799
      %v821 = vunpack.c.h.b16 %v799
      %v822 = vunpack.c.l.b16 %v800
      %v823 = vpack.c.b16 %v816, %v809
      %v824 = vpack.c.b16 %v817, %v810
      %v825 = vpack.c.b16 %v818, %v811
      %v826 = vpack.c.b16 %v819, %v812
      %v827 = vpack.c.b16 %v820, %v813
      %v828 = vpack.c.b16 %v821, %v814
      %v829 = vpack.c.b16 %v822, %v815
      %v837 = vsel %vm622, %v829, 0
      %839 = vmatprep.subr.bf16.mxu0 0
      %840 = vmatpush1.bf16.msra.mxu0 %v529
      %841 = vmatprep.subr.bf16.mxu0 0
      %842 = vmatpush1.bf16.msra.mxu0 %v528
      %843 = vmatprep.subr.bf16.mxu0 0
      %844 = vmatpush1.bf16.msra.mxu0 %v527
      %845 = vmatprep.subr.bf16.mxu0 0
      %846 = vmatpush1.bf16.msra.mxu0 %v526
      %847 = vmatprep.subr.bf16.mxu0 0
      %848 = vmatpush1.bf16.msra.mxu0 %v525
      %849 = vmatprep.subr.bf16.mxu0 0
      %850 = vmatpush1.bf16.msra.mxu0 %v524
      %851 = vmatprep.subr.bf16.mxu0 0
      %852 = vmatpush1.bf16.msra.mxu0 %v523
      %853 = vmatprep.subr.bf16.mxu0 0
      %854 = vmatpush1.bf16.msra.mxu0 %v522
      %855 = vmatprep.subr.bf16.mxu0 0
      %856 = vmatpush2.bf16.msra.mxu0 %v537
      %857 = vmatprep.subr.bf16.mxu0 0
      %858 = vmatpush2.bf16.msra.mxu0 %v536
      %859 = vmatprep.subr.bf16.mxu0 0
      %860 = vmatpush2.bf16.msra.mxu0 %v535
      %861 = vmatprep.subr.bf16.mxu0 0
      %862 = vmatpush2.bf16.msra.mxu0 %v534
      %863 = vmatprep.subr.bf16.mxu0 0
      %864 = vmatpush2.bf16.msra.mxu0 %v533
      %865 = vmatprep.subr.bf16.mxu0 0
      %866 = vmatpush2.bf16.msra.mxu0 %v532
      %867 = vmatprep.subr.bf16.mxu0 0
      %868 = vmatpush2.bf16.msra.mxu0 %v531
      %869 = vmatprep.subr.bf16.mxu0 0
      %870 = vmatpush2.bf16.msra.mxu0 %v530
      %871 = vmatprep.mubr.bf16.mxu0 %v824
      %872 = vmatmul.mubr.bf16.gmra.mxu0 %v823
      %v873 = vpop.f32.mrf.mxu0
      %v874 = vadd.f32 %v285, %v873
      %v875 = vpop.f32.mrf.mxu0
      %v876 = vpop.f32.mrf.mxu0
      %v877 = vadd.f32 %v285, %v876
      %v878 = vpop.f32.mrf.mxu0
      %879 = vdwg.mxu0
      %880 = vmatprep.subr.bf16.mxu0 0
      %881 = vmatpush1.bf16.msra.mxu0 %v545
      %882 = vmatprep.subr.bf16.mxu0 0
      %883 = vmatpush1.bf16.msra.mxu0 %v544
      %884 = vmatprep.subr.bf16.mxu0 0
      %885 = vmatpush1.bf16.msra.mxu0 %v543
      %886 = vmatprep.subr.bf16.mxu0 0
      %887 = vmatpush1.bf16.msra.mxu0 %v542
      %888 = vmatprep.subr.bf16.mxu0 0
      %889 = vmatpush1.bf16.msra.mxu0 %v541
      %890 = vmatprep.subr.bf16.mxu0 0
      %891 = vmatpush1.bf16.msra.mxu0 %v540
      %892 = vmatprep.subr.bf16.mxu0 0
      %893 = vmatpush1.bf16.msra.mxu0 %v539
      %894 = vmatprep.subr.bf16.mxu0 0
      %895 = vmatpush1.bf16.msra.mxu0 %v538
      %896 = vmatprep.subr.bf16.mxu0 0
      %897 = vmatpush2.bf16.msra.mxu0 %v553
      %898 = vmatprep.subr.bf16.mxu0 0
      %899 = vmatpush2.bf16.msra.mxu0 %v552
      %900 = vmatprep.subr.bf16.mxu0 0
      %901 = vmatpush2.bf16.msra.mxu0 %v551
      %902 = vmatprep.subr.bf16.mxu0 0
      %903 = vmatpush2.bf16.msra.mxu0 %v550
      %904 = vmatprep.subr.bf16.mxu0 0
      %905 = vmatpush2.bf16.msra.mxu0 %v549
      %906 = vmatprep.subr.bf16.mxu0 0
      %907 = vmatpush2.bf16.msra.mxu0 %v548
      %908 = vmatprep.subr.bf16.mxu0 0
      %909 = vmatpush2.bf16.msra.mxu0 %v547
      %910 = vmatprep.subr.bf16.mxu0 0
      %911 = vmatpush2.bf16.msra.mxu0 %v546
      %912 = vmatprep.mubr.bf16.mxu0 %v826
      %913 = vmatmul.mubr.bf16.gmra.mxu0 %v825
      %v914 = vpop.f32.mrf.mxu0
      %v915 = vadd.f32 %v874, %v914
      %v916 = vpop.f32.mrf.mxu0
      %v917 = vpop.f32.mrf.mxu0
      %v918 = vadd.f32 %v877, %v917
      %v919 = vpop.f32.mrf.mxu0
      %920 = vdwg.mxu0
      %921 = vmatprep.subr.bf16.mxu0 0
      %922 = vmatpush1.bf16.msra.mxu0 %v561
      %923 = vmatprep.subr.bf16.mxu0 0
      %924 = vmatpush1.bf16.msra.mxu0 %v560
      %925 = vmatprep.subr.bf16.mxu0 0
      %926 = vmatpush1.bf16.msra.mxu0 %v559
      %927 = vmatprep.subr.bf16.mxu0 0
      %928 = vmatpush1.bf16.msra.mxu0 %v558
      %929 = vmatprep.subr.bf16.mxu0 0
      %930 = vmatpush1.bf16.msra.mxu0 %v557
      %931 = vmatprep.subr.bf16.mxu0 0
      %932 = vmatpush1.bf16.msra.mxu0 %v556
      %933 = vmatprep.subr.bf16.mxu0 0
      %934 = vmatpush1.bf16.msra.mxu0 %v555
      %935 = vmatprep.subr.bf16.mxu0 0
      %936 = vmatpush1.bf16.msra.mxu0 %v554
      %937 = vmatprep.subr.bf16.mxu0 0
      %938 = vmatpush2.bf16.msra.mxu0 %v569
      %939 = vmatprep.subr.bf16.mxu0 0
      %940 = vmatpush2.bf16.msra.mxu0 %v568
      %941 = vmatprep.subr.bf16.mxu0 0
      %942 = vmatpush2.bf16.msra.mxu0 %v567
      %943 = vmatprep.subr.bf16.mxu0 0
      %944 = vmatpush2.bf16.msra.mxu0 %v566
      %945 = vmatprep.subr.bf16.mxu0 0
      %946 = vmatpush2.bf16.msra.mxu0 %v565
      %947 = vmatprep.subr.bf16.mxu0 0
      %948 = vmatpush2.bf16.msra.mxu0 %v564
      %949 = vmatprep.subr.bf16.mxu0 0
      %950 = vmatpush2.bf16.msra.mxu0 %v563
      %951 = vmatprep.subr.bf16.mxu0 0
      %952 = vmatpush2.bf16.msra.mxu0 %v562
      %953 = vmatprep.mubr.bf16.mxu0 %v828
      %954 = vmatmul.mubr.bf16.gmra.mxu0 %v827
      %v955 = vpop.f32.mrf.mxu0
      %v956 = vadd.f32 %v915, %v955
      %v957 = vpop.f32.mrf.mxu0
      %v958 = vpop.f32.mrf.mxu0
      %v959 = vadd.f32 %v918, %v958
      %v960 = vpop.f32.mrf.mxu0
      %961 = vdwg.mxu0
      %962 = vmatprep.subr.bf16.mxu0 0
      %963 = vmatpush1.bf16.msra.mxu0 0
      %964 = vmatprep.subr.bf16.mxu0 0
      %965 = vmatpush1.bf16.msra.mxu0 0
      %966 = vmatprep.subr.bf16.mxu0 0
      %967 = vmatpush1.bf16.msra.mxu0 0
      %968 = vmatprep.subr.bf16.mxu0 0
      %969 = vmatpush1.bf16.msra.mxu0 0
      %970 = vmatprep.subr.bf16.mxu0 0
      %971 = vmatpush1.bf16.msra.mxu0 0
      %972 = vmatprep.subr.bf16.mxu0 0
      %973 = vmatpush1.bf16.msra.mxu0 0
      %974 = vmatprep.subr.bf16.mxu0 0
      %975 = vmatpush1.bf16.msra.mxu0 %v571
      %976 = vmatprep.subr.bf16.mxu0 0
      %977 = vmatpush1.bf16.msra.mxu0 %v570
      %978 = vmatprep.subr.bf16.mxu0 0
      %979 = vmatpush2.bf16.msra.mxu0 0
      %980 = vmatprep.subr.bf16.mxu0 0
      %981 = vmatpush2.bf16.msra.mxu0 0
      %982 = vmatprep.subr.bf16.mxu0 0
      %983 = vmatpush2.bf16.msra.mxu0 0
      %984 = vmatprep.subr.bf16.mxu0 0
      %985 = vmatpush2.bf16.msra.mxu0 0
      %986 = vmatprep.subr.bf16.mxu0 0
      %987 = vmatpush2.bf16.msra.mxu0 0
      %988 = vmatprep.subr.bf16.mxu0 0
      %989 = vmatpush2.bf16.msra.mxu0 0
      %990 = vmatprep.subr.bf16.mxu0 0
      %991 = vmatpush2.bf16.msra.mxu0 0
      %992 = vmatprep.subr.bf16.mxu0 0
      %993 = vmatpush2.bf16.msra.mxu0 0
      %994 = vmatprep.mubr.bf16.mxu0 0
      %995 = vmatmul.mubr.bf16.gmra.mxu0 %v837
      %v996 = vpop.f32.mrf.mxu0
      %v997 = vadd.f32 %v956, %v996
      %v998 = vpop.f32.mrf.mxu0
      %v999 = vpop.f32.mrf.mxu0
      %v1000 = vadd.f32 %v959, %v999
      %v1001 = vpop.f32.mrf.mxu0
      %1002 = vdwg.mxu0
      %v1003 = vmax.f32 %v997, 0.0
      %v1004 = vmax.f32 %v1000, 0.0
      %v1005 = vmax.f32 %v790, %v1003
      %v1006 = vmax.f32 %v791, %v1004
      %s1007 = scalar_lea.vmem %s165, 112
      %v1008 = vld [vmem:[%s1007] sm:$0xff]
      %v1009 = vld [vmem:[%s1007 + $0x8] sm:$0xff]
      %v1010 = vld [vmem:[%s1007 + $0x10] sm:$0xff]
      %v1011 = vld [vmem:[%s1007 + $0x18] sm:$0xf]
      %v1012 = vld [vmem:[%s1007 + $0x1c] sm:$0xff]
      %v1013 = vld [vmem:[%s1007 + $0x24] sm:$0xff]
      %v1014 = vld [vmem:[%s1007 + $0x2c] sm:$0xff]
      %v1015 = vld [vmem:[%s1007 + $0x34] sm:$0xf]
      %v1024 = vunpack.c.l.b16 %v1008
      %v1025 = vunpack.c.h.b16 %v1008
      %v1026 = vunpack.c.l.b16 %v1009
      %v1027 = vunpack.c.h.b16 %v1009
      %v1028 = vunpack.c.l.b16 %v1010
      %v1029 = vunpack.c.h.b16 %v1010
      %v1030 = vunpack.c.l.b16 %v1011
      %v1031 = vunpack.c.l.b16 %v1012
      %v1032 = vunpack.c.h.b16 %v1012
      %v1033 = vunpack.c.l.b16 %v1013
      %v1034 = vunpack.c.h.b16 %v1013
      %v1035 = vunpack.c.l.b16 %v1014
      %v1036 = vunpack.c.h.b16 %v1014
      %v1037 = vunpack.c.l.b16 %v1015
      %v1038 = vpack.c.b16 %v1031, %v1024
      %v1039 = vpack.c.b16 %v1032, %v1025
      %v1040 = vpack.c.b16 %v1033, %v1026
      %v1041 = vpack.c.b16 %v1034, %v1027
      %v1042 = vpack.c.b16 %v1035, %v1028
      %v1043 = vpack.c.b16 %v1036, %v1029
      %v1044 = vpack.c.b16 %v1037, %v1030
      %v1052 = vsel %vm622, %v1044, 0
      %1054 = vmatprep.subr.bf16.mxu0 0
      %1055 = vmatpush1.bf16.msra.mxu0 %v529
      %1056 = vmatprep.subr.bf16.mxu0 0
      %1057 = vmatpush1.bf16.msra.mxu0 %v528
      %1058 = vmatprep.subr.bf16.mxu0 0
      %1059 = vmatpush1.bf16.msra.mxu0 %v527
      %1060 = vmatprep.subr.bf16.mxu0 0
      %1061 = vmatpush1.bf16.msra.mxu0 %v526
      %1062 = vmatprep.subr.bf16.mxu0 0
      %1063 = vmatpush1.bf16.msra.mxu0 %v525
      %1064 = vmatprep.subr.bf16.mxu0 0
      %1065 = vmatpush1.bf16.msra.mxu0 %v524
      %1066 = vmatprep.subr.bf16.mxu0 0
      %1067 = vmatpush1.bf16.msra.mxu0 %v523
      %1068 = vmatprep.subr.bf16.mxu0 0
      %1069 = vmatpush1.bf16.msra.mxu0 %v522
      %1070 = vmatprep.subr.bf16.mxu0 0
      %1071 = vmatpush2.bf16.msra.mxu0 %v537
      %1072 = vmatprep.subr.bf16.mxu0 0
      %1073 = vmatpush2.bf16.msra.mxu0 %v536
      %1074 = vmatprep.subr.bf16.mxu0 0
      %1075 = vmatpush2.bf16.msra.mxu0 %v535
      %1076 = vmatprep.subr.bf16.mxu0 0
      %1077 = vmatpush2.bf16.msra.mxu0 %v534
      %1078 = vmatprep.subr.bf16.mxu0 0
      %1079 = vmatpush2.bf16.msra.mxu0 %v533
      %1080 = vmatprep.subr.bf16.mxu0 0
      %1081 = vmatpush2.bf16.msra.mxu0 %v532
      %1082 = vmatprep.subr.bf16.mxu0 0
      %1083 = vmatpush2.bf16.msra.mxu0 %v531
      %1084 = vmatprep.subr.bf16.mxu0 0
      %1085 = vmatpush2.bf16.msra.mxu0 %v530
      %1086 = vmatprep.mubr.bf16.mxu0 %v1039
      %1087 = vmatmul.mubr.bf16.gmra.mxu0 %v1038
      %v1088 = vpop.f32.mrf.mxu0
      %v1089 = vadd.f32 %v285, %v1088
      %v1090 = vpop.f32.mrf.mxu0
      %v1091 = vpop.f32.mrf.mxu0
      %v1092 = vadd.f32 %v285, %v1091
      %v1093 = vpop.f32.mrf.mxu0
      %1094 = vdwg.mxu0
      %1095 = vmatprep.subr.bf16.mxu0 0
      %1096 = vmatpush1.bf16.msra.mxu0 %v545
      %1097 = vmatprep.subr.bf16.mxu0 0
      %1098 = vmatpush1.bf16.msra.mxu0 %v544
      %1099 = vmatprep.subr.bf16.mxu0 0
      %1100 = vmatpush1.bf16.msra.mxu0 %v543
      %1101 = vmatprep.subr.bf16.mxu0 0
      %1102 = vmatpush1.bf16.msra.mxu0 %v542
      %1103 = vmatprep.subr.bf16.mxu0 0
      %1104 = vmatpush1.bf16.msra.mxu0 %v541
      %1105 = vmatprep.subr.bf16.mxu0 0
      %1106 = vmatpush1.bf16.msra.mxu0 %v540
      %1107 = vmatprep.subr.bf16.mxu0 0
      %1108 = vmatpush1.bf16.msra.mxu0 %v539
      %1109 = vmatprep.subr.bf16.mxu0 0
      %1110 = vmatpush1.bf16.msra.mxu0 %v538
      %1111 = vmatprep.subr.bf16.mxu0 0
      %1112 = vmatpush2.bf16.msra.mxu0 %v553
      %1113 = vmatprep.subr.bf16.mxu0 0
      %1114 = vmatpush2.bf16.msra.mxu0 %v552
      %1115 = vmatprep.subr.bf16.mxu0 0
      %1116 = vmatpush2.bf16.msra.mxu0 %v551
      %1117 = vmatprep.subr.bf16.mxu0 0
      %1118 = vmatpush2.bf16.msra.mxu0 %v550
      %1119 = vmatprep.subr.bf16.mxu0 0
      %1120 = vmatpush2.bf16.msra.mxu0 %v549
      %1121 = vmatprep.subr.bf16.mxu0 0
      %1122 = vmatpush2.bf16.msra.mxu0 %v548
      %1123 = vmatprep.subr.bf16.mxu0 0
      %1124 = vmatpush2.bf16.msra.mxu0 %v547
      %1125 = vmatprep.subr.bf16.mxu0 0
      %1126 = vmatpush2.bf16.msra.mxu0 %v546
      %1127 = vmatprep.mubr.bf16.mxu0 %v1041
      %1128 = vmatmul.mubr.bf16.gmra.mxu0 %v1040
      %v1129 = vpop.f32.mrf.mxu0
      %v1130 = vadd.f32 %v1089, %v1129
      %v1131 = vpop.f32.mrf.mxu0
      %v1132 = vpop.f32.mrf.mxu0
      %v1133 = vadd.f32 %v1092, %v1132
      %v1134 = vpop.f32.mrf.mxu0
      %1135 = vdwg.mxu0
      %1136 = vmatprep.subr.bf16.mxu0 0
      %1137 = vmatpush1.bf16.msra.mxu0 %v561
      %1138 = vmatprep.subr.bf16.mxu0 0
      %1139 = vmatpush1.bf16.msra.mxu0 %v560
      %1140 = vmatprep.subr.bf16.mxu0 0
      %1141 = vmatpush1.bf16.msra.mxu0 %v559
      %1142 = vmatprep.subr.bf16.mxu0 0
      %1143 = vmatpush1.bf16.msra.mxu0 %v558
      %1144 = vmatprep.subr.bf16.mxu0 0
      %1145 = vmatpush1.bf16.msra.mxu0 %v557
      %1146 = vmatprep.subr.bf16.mxu0 0
      %1147 = vmatpush1.bf16.msra.mxu0 %v556
      %1148 = vmatprep.subr.bf16.mxu0 0
      %1149 = vmatpush1.bf16.msra.mxu0 %v555
      %1150 = vmatprep.subr.bf16.mxu0 0
      %1151 = vmatpush1.bf16.msra.mxu0 %v554
      %1152 = vmatprep.subr.bf16.mxu0 0
      %1153 = vmatpush2.bf16.msra.mxu0 %v569
      %1154 = vmatprep.subr.bf16.mxu0 0
      %1155 = vmatpush2.bf16.msra.mxu0 %v568
      %1156 = vmatprep.subr.bf16.mxu0 0
      %1157 = vmatpush2.bf16.msra.mxu0 %v567
      %1158 = vmatprep.subr.bf16.mxu0 0
      %1159 = vmatpush2.bf16.msra.mxu0 %v566
      %1160 = vmatprep.subr.bf16.mxu0 0
      %1161 = vmatpush2.bf16.msra.mxu0 %v565
      %1162 = vmatprep.subr.bf16.mxu0 0
      %1163 = vmatpush2.bf16.msra.mxu0 %v564
      %1164 = vmatprep.subr.bf16.mxu0 0
      %1165 = vmatpush2.bf16.msra.mxu0 %v563
      %1166 = vmatprep.subr.bf16.mxu0 0
      %1167 = vmatpush2.bf16.msra.mxu0 %v562
      %1168 = vmatprep.mubr.bf16.mxu0 %v1043
      %1169 = vmatmul.mubr.bf16.gmra.mxu0 %v1042
      %v1170 = vpop.f32.mrf.mxu0
      %v1171 = vadd.f32 %v1130, %v1170
      %v1172 = vpop.f32.mrf.mxu0
      %v1173 = vpop.f32.mrf.mxu0
      %v1174 = vadd.f32 %v1133, %v1173
      %v1175 = vpop.f32.mrf.mxu0
      %1176 = vdwg.mxu0
      %1177 = vmatprep.subr.bf16.mxu0 0
      %1178 = vmatpush1.bf16.msra.mxu0 0
      %1179 = vmatprep.subr.bf16.mxu0 0
      %1180 = vmatpush1.bf16.msra.mxu0 0
      %1181 = vmatprep.subr.bf16.mxu0 0
      %1182 = vmatpush1.bf16.msra.mxu0 0
      %1183 = vmatprep.subr.bf16.mxu0 0
      %1184 = vmatpush1.bf16.msra.mxu0 0
      %1185 = vmatprep.subr.bf16.mxu0 0
      %1186 = vmatpush1.bf16.msra.mxu0 0
      %1187 = vmatprep.subr.bf16.mxu0 0
      %1188 = vmatpush1.bf16.msra.mxu0 0
      %1189 = vmatprep.subr.bf16.mxu0 0
      %1190 = vmatpush1.bf16.msra.mxu0 %v571
      %1191 = vmatprep.subr.bf16.mxu0 0
      %1192 = vmatpush1.bf16.msra.mxu0 %v570
      %1193 = vmatprep.subr.bf16.mxu0 0
      %1194 = vmatpush2.bf16.msra.mxu0 0
      %1195 = vmatprep.subr.bf16.mxu0 0
      %1196 = vmatpush2.bf16.msra.mxu0 0
      %1197 = vmatprep.subr.bf16.mxu0 0
      %1198 = vmatpush2.bf16.msra.mxu0 0
      %1199 = vmatprep.subr.bf16.mxu0 0
      %1200 = vmatpush2.bf16.msra.mxu0 0
      %1201 = vmatprep.subr.bf16.mxu0 0
      %1202 = vmatpush2.bf16.msra.mxu0 0
      %1203 = vmatprep.subr.bf16.mxu0 0
      %1204 = vmatpush2.bf16.msra.mxu0 0
      %1205 = vmatprep.subr.bf16.mxu0 0
      %1206 = vmatpush2.bf16.msra.mxu0 0
      %1207 = vmatprep.subr.bf16.mxu0 0
      %1208 = vmatpush2.bf16.msra.mxu0 0
      %1209 = vmatprep.mubr.bf16.mxu0 0
      %1210 = vmatmul.mubr.bf16.gmra.mxu0 %v1052
      %v1211 = vpop.f32.mrf.mxu0
      %v1212 = vadd.f32 %v1171, %v1211
      %v1213 = vpop.f32.mrf.mxu0
      %v1214 = vpop.f32.mrf.mxu0
      %v1215 = vadd.f32 %v1174, %v1214
      %v1216 = vpop.f32.mrf.mxu0
      %1217 = vdwg.mxu0
      %v1218 = vmax.f32 %v1212, 0.0
      %v1219 = vmax.f32 %v1215, 0.0
      %s1220 = scalar_lea.vmem %s165, 168
      %v1221 = vld [vmem:[%s1220] sm:$0xff]
      %v1222 = vld [vmem:[%s1220 + $0x8] sm:$0xff]
      %v1223 = vld [vmem:[%s1220 + $0x10] sm:$0xff]
      %v1224 = vld [vmem:[%s1220 + $0x18] sm:$0xf]
      %v1225 = vld [vmem:[%s1220 + $0x1c] sm:$0xff]
      %v1226 = vld [vmem:[%s1220 + $0x24] sm:$0xff]
      %v1227 = vld [vmem:[%s1220 + $0x2c] sm:$0xff]
      %v1228 = vld [vmem:[%s1220 + $0x34] sm:$0xf]
      %v1237 = vunpack.c.l.b16 %v1221
      %v1238 = vunpack.c.h.b16 %v1221
      %v1239 = vunpack.c.l.b16 %v1222
      %v1240 = vunpack.c.h.b16 %v1222
      %v1241 = vunpack.c.l.b16 %v1223
      %v1242 = vunpack.c.h.b16 %v1223
      %v1243 = vunpack.c.l.b16 %v1224
      %v1244 = vunpack.c.l.b16 %v1225
      %v1245 = vunpack.c.h.b16 %v1225
      %v1246 = vunpack.c.l.b16 %v1226
      %v1247 = vunpack.c.h.b16 %v1226
      %v1248 = vunpack.c.l.b16 %v1227
      %v1249 = vunpack.c.h.b16 %v1227
      %v1250 = vunpack.c.l.b16 %v1228
      %v1251 = vpack.c.b16 %v1244, %v1237
      %v1252 = vpack.c.b16 %v1245, %v1238
      %v1253 = vpack.c.b16 %v1246, %v1239
      %v1254 = vpack.c.b16 %v1247, %v1240
      %v1255 = vpack.c.b16 %v1248, %v1241
      %v1256 = vpack.c.b16 %v1249, %v1242
      %v1257 = vpack.c.b16 %v1250, %v1243
      %v1265 = vsel %vm622, %v1257, 0
      %1267 = vmatprep.subr.bf16.mxu0 0
      %1268 = vmatpush1.bf16.msra.mxu0 %v529
      %1269 = vmatprep.subr.bf16.mxu0 0
      %1270 = vmatpush1.bf16.msra.mxu0 %v528
      %1271 = vmatprep.subr.bf16.mxu0 0
      %1272 = vmatpush1.bf16.msra.mxu0 %v527
      %1273 = vmatprep.subr.bf16.mxu0 0
      %1274 = vmatpush1.bf16.msra.mxu0 %v526
      %1275 = vmatprep.subr.bf16.mxu0 0
      %1276 = vmatpush1.bf16.msra.mxu0 %v525
      %1277 = vmatprep.subr.bf16.mxu0 0
      %1278 = vmatpush1.bf16.msra.mxu0 %v524
      %1279 = vmatprep.subr.bf16.mxu0 0
      %1280 = vmatpush1.bf16.msra.mxu0 %v523
      %1281 = vmatprep.subr.bf16.mxu0 0
      %1282 = vmatpush1.bf16.msra.mxu0 %v522
      %1283 = vmatprep.subr.bf16.mxu0 0
      %1284 = vmatpush2.bf16.msra.mxu0 %v537
      %1285 = vmatprep.subr.bf16.mxu0 0
      %1286 = vmatpush2.bf16.msra.mxu0 %v536
      %1287 = vmatprep.subr.bf16.mxu0 0
      %1288 = vmatpush2.bf16.msra.mxu0 %v535
      %1289 = vmatprep.subr.bf16.mxu0 0
      %1290 = vmatpush2.bf16.msra.mxu0 %v534
      %1291 = vmatprep.subr.bf16.mxu0 0
      %1292 = vmatpush2.bf16.msra.mxu0 %v533
      %1293 = vmatprep.subr.bf16.mxu0 0
      %1294 = vmatpush2.bf16.msra.mxu0 %v532
      %1295 = vmatprep.subr.bf16.mxu0 0
      %1296 = vmatpush2.bf16.msra.mxu0 %v531
      %1297 = vmatprep.subr.bf16.mxu0 0
      %1298 = vmatpush2.bf16.msra.mxu0 %v530
      %1299 = vmatprep.mubr.bf16.mxu0 %v1252
      %1300 = vmatmul.mubr.bf16.gmra.mxu0 %v1251
      %v1301 = vpop.f32.mrf.mxu0
      %v1302 = vadd.f32 %v285, %v1301
      %v1303 = vpop.f32.mrf.mxu0
      %v1304 = vpop.f32.mrf.mxu0
      %v1305 = vadd.f32 %v285, %v1304
      %v1306 = vpop.f32.mrf.mxu0
      %1307 = vdwg.mxu0
      %1308 = vmatprep.subr.bf16.mxu0 0
      %1309 = vmatpush1.bf16.msra.mxu0 %v545
      %1310 = vmatprep.subr.bf16.mxu0 0
      %1311 = vmatpush1.bf16.msra.mxu0 %v544
      %1312 = vmatprep.subr.bf16.mxu0 0
      %1313 = vmatpush1.bf16.msra.mxu0 %v543
      %1314 = vmatprep.subr.bf16.mxu0 0
      %1315 = vmatpush1.bf16.msra.mxu0 %v542
      %1316 = vmatprep.subr.bf16.mxu0 0
      %1317 = vmatpush1.bf16.msra.mxu0 %v541
      %1318 = vmatprep.subr.bf16.mxu0 0
      %1319 = vmatpush1.bf16.msra.mxu0 %v540
      %1320 = vmatprep.subr.bf16.mxu0 0
      %1321 = vmatpush1.bf16.msra.mxu0 %v539
      %1322 = vmatprep.subr.bf16.mxu0 0
      %1323 = vmatpush1.bf16.msra.mxu0 %v538
      %1324 = vmatprep.subr.bf16.mxu0 0
      %1325 = vmatpush2.bf16.msra.mxu0 %v553
      %1326 = vmatprep.subr.bf16.mxu0 0
      %1327 = vmatpush2.bf16.msra.mxu0 %v552
      %1328 = vmatprep.subr.bf16.mxu0 0
      %1329 = vmatpush2.bf16.msra.mxu0 %v551
      %1330 = vmatprep.subr.bf16.mxu0 0
      %1331 = vmatpush2.bf16.msra.mxu0 %v550
      %1332 = vmatprep.subr.bf16.mxu0 0
      %1333 = vmatpush2.bf16.msra.mxu0 %v549
      %1334 = vmatprep.subr.bf16.mxu0 0
      %1335 = vmatpush2.bf16.msra.mxu0 %v548
      %1336 = vmatprep.subr.bf16.mxu0 0
      %1337 = vmatpush2.bf16.msra.mxu0 %v547
      %1338 = vmatprep.subr.bf16.mxu0 0
      %1339 = vmatpush2.bf16.msra.mxu0 %v546
      %1340 = vmatprep.mubr.bf16.mxu0 %v1254
      %1341 = vmatmul.mubr.bf16.gmra.mxu0 %v1253
      %v1342 = vpop.f32.mrf.mxu0
      %v1343 = vadd.f32 %v1302, %v1342
      %v1344 = vpop.f32.mrf.mxu0
      %v1345 = vpop.f32.mrf.mxu0
      %v1346 = vadd.f32 %v1305, %v1345
      %v1347 = vpop.f32.mrf.mxu0
      %1348 = vdwg.mxu0
      %1349 = vmatprep.subr.bf16.mxu0 0
      %1350 = vmatpush1.bf16.msra.mxu0 %v561
      %1351 = vmatprep.subr.bf16.mxu0 0
      %1352 = vmatpush1.bf16.msra.mxu0 %v560
      %1353 = vmatprep.subr.bf16.mxu0 0
      %1354 = vmatpush1.bf16.msra.mxu0 %v559
      %1355 = vmatprep.subr.bf16.mxu0 0
      %1356 = vmatpush1.bf16.msra.mxu0 %v558
      %1357 = vmatprep.subr.bf16.mxu0 0
      %1358 = vmatpush1.bf16.msra.mxu0 %v557
      %1359 = vmatprep.subr.bf16.mxu0 0
      %1360 = vmatpush1.bf16.msra.mxu0 %v556
      %1361 = vmatprep.subr.bf16.mxu0 0
      %1362 = vmatpush1.bf16.msra.mxu0 %v555
      %1363 = vmatprep.subr.bf16.mxu0 0
      %1364 = vmatpush1.bf16.msra.mxu0 %v554
      %1365 = vmatprep.subr.bf16.mxu0 0
      %1366 = vmatpush2.bf16.msra.mxu0 %v569
      %1367 = vmatprep.subr.bf16.mxu0 0
      %1368 = vmatpush2.bf16.msra.mxu0 %v568
      %1369 = vmatprep.subr.bf16.mxu0 0
      %1370 = vmatpush2.bf16.msra.mxu0 %v567
      %1371 = vmatprep.subr.bf16.mxu0 0
      %1372 = vmatpush2.bf16.msra.mxu0 %v566
      %1373 = vmatprep.subr.bf16.mxu0 0
      %1374 = vmatpush2.bf16.msra.mxu0 %v565
      %1375 = vmatprep.subr.bf16.mxu0 0
      %1376 = vmatpush2.bf16.msra.mxu0 %v564
      %1377 = vmatprep.subr.bf16.mxu0 0
      %1378 = vmatpush2.bf16.msra.mxu0 %v563
      %1379 = vmatprep.subr.bf16.mxu0 0
      %1380 = vmatpush2.bf16.msra.mxu0 %v562
      %1381 = vmatprep.mubr.bf16.mxu0 %v1256
      %1382 = vmatmul.mubr.bf16.gmra.mxu0 %v1255
      %v1383 = vpop.f32.mrf.mxu0
      %v1384 = vadd.f32 %v1343, %v1383
      %v1385 = vpop.f32.mrf.mxu0
      %v1386 = vpop.f32.mrf.mxu0
      %v1387 = vadd.f32 %v1346, %v1386
      %v1388 = vpop.f32.mrf.mxu0
      %1389 = vdwg.mxu0
      %1390 = vmatprep.subr.bf16.mxu0 0
      %1391 = vmatpush1.bf16.msra.mxu0 0
      %1392 = vmatprep.subr.bf16.mxu0 0
      %1393 = vmatpush1.bf16.msra.mxu0 0
      %1394 = vmatprep.subr.bf16.mxu0 0
      %1395 = vmatpush1.bf16.msra.mxu0 0
      %1396 = vmatprep.subr.bf16.mxu0 0
      %1397 = vmatpush1.bf16.msra.mxu0 0
      %1398 = vmatprep.subr.bf16.mxu0 0
      %1399 = vmatpush1.bf16.msra.mxu0 0
      %1400 = vmatprep.subr.bf16.mxu0 0
      %1401 = vmatpush1.bf16.msra.mxu0 0
      %1402 = vmatprep.subr.bf16.mxu0 0
      %1403 = vmatpush1.bf16.msra.mxu0 %v571
      %1404 = vmatprep.subr.bf16.mxu0 0
      %1405 = vmatpush1.bf16.msra.mxu0 %v570
      %1406 = vmatprep.subr.bf16.mxu0 0
      %1407 = vmatpush2.bf16.msra.mxu0 0
      %1408 = vmatprep.subr.bf16.mxu0 0
      %1409 = vmatpush2.bf16.msra.mxu0 0
      %1410 = vmatprep.subr.bf16.mxu0 0
      %1411 = vmatpush2.bf16.msra.mxu0 0
      %1412 = vmatprep.subr.bf16.mxu0 0
      %1413 = vmatpush2.bf16.msra.mxu0 0
      %1414 = vmatprep.subr.bf16.mxu0 0
      %1415 = vmatpush2.bf16.msra.mxu0 0
      %1416 = vmatprep.subr.bf16.mxu0 0
      %1417 = vmatpush2.bf16.msra.mxu0 0
      %1418 = vmatprep.subr.bf16.mxu0 0
      %1419 = vmatpush2.bf16.msra.mxu0 0
      %1420 = vmatprep.subr.bf16.mxu0 0
      %1421 = vmatpush2.bf16.msra.mxu0 0
      %1422 = vmatprep.mubr.bf16.mxu0 0
      %1423 = vmatmul.mubr.bf16.gmra.mxu0 %v1265
      %v1424 = vpop.f32.mrf.mxu0
      %v1425 = vadd.f32 %v1384, %v1424
      %v1426 = vpop.f32.mrf.mxu0
      %v1427 = vpop.f32.mrf.mxu0
      %v1428 = vadd.f32 %v1387, %v1427
      %v1429 = vpop.f32.mrf.mxu0
      %1430 = vdwg.mxu0
      %v1431 = vmax.f32 %v1425, 0.0
      %v1432 = vmax.f32 %v1428, 0.0
      %v1433 = vmax.f32 %v1218, %v1431
      %v1434 = vmax.f32 %v1219, %v1432
      %v1435 = vmax.f32 %v1005, %v1433
      %v1436 = vmax.f32 %v1006, %v1434
      %v1437 = vpack.c.bf16 %v1436, %v1435
      %v1439 = vunpack.c.l.b16 %v1437
      %v1440 = vunpack.c.h.b16 %v1437
      %v1441 = vpack.c.b16 %v1439, %v1439
      %v1442 = vpack.c.b16 %v1440, %v1440
      %vm1445 = vcmask 519168
      %1446 = vst.msk [vmem:[%s170] sm:$0xf] %vm1445, %v1441
      %1447 = vst.msk [vmem:[%s170 + $0x4] sm:$0xf] %vm1445, %v1442
      %p1448 = scmp.lt.s32.totalorder %s14, 1
      %s1449 = scalar_select %p1448, %s14, 1
      %s1450 = smul.addr %s1449, 2
      %s1451 = smul.addr %s1450, 4
      %s1452 = scalar_lea.vmem %s3, %s1451
      // Predicated region
      $region33: #{cnn_forward.4} parent=31 // pred_check
        %p1453 = pneg %p100
      $region34: #{cnn_forward.4} parent=31 // pred_check_branch
        %1455 = sbr.rel (%p1453) target = $region36
      $region35: #{cnn_forward.4} parent=31 // pred_region
        _
      $region36: #{cnn_forward.4} parent=31 // pred_fallthru
        _
    $region32: #{cnn_forward.4} parent=5 // pred_fallthru
      _
    %p1456 = scmp.le.s32.totalorder 2, %s9
    // Predicated region
    $region37: #{cnn_forward.4} parent=5 // pred_check
      %p1457 = pneg %p1456
    $region38: #{cnn_forward.4} parent=5 // pred_check_branch
      %1459 = sbr.rel (%p1457) target = $region40
    $region39: #{cnn_forward.4} parent=5 // pred_region
      %s1460 = ssub.s32 %s9, 2
      // Predicated region
      $region41: #{cnn_forward.4} parent=39 // pred_check
        %p1461 = pneg %p106
      $region42: #{cnn_forward.4} parent=39 // pred_check_branch
        %1463 = sbr.rel (%p1461) target = $region44
      $region43: #{cnn_forward.4} parent=39 // pred_region
        %p1464 = scmp.lt.s32.totalorder %s15, 1
        %s1465 = scalar_select %p1464, %s15, 1
        %s1466 = smul.addr %s1465, 2
        %s1467 = smul.addr %s1466, 4
        %s1468 = scalar_lea.vmem %s3, %s1467
      $region44: #{cnn_forward.4} parent=39 // pred_fallthru
        _
    $region40: #{cnn_forward.4} parent=5 // pred_fallthru
      _
  $region6: #{cnn_forward.4} parent=0 // loop_footer
    %s13 = sadd.s32 1, %s9
  $region7: #{cnn_forward.4} parent=0 // loop_footer_branch
    %8 = sbr.rel target = $region3
  $region8: #{cnn_forward.4} parent=0 // loop_exit
    _

// kernel: cnn_forward.5
$region0: #{cnn_forward.5}
  #allocation0 [shape = 'u32[]', space=smem, size = 0x4, offset = 0x4, fixed_abs, tag = 'smem constant byte address 0x4 - core index']
  #allocation1 [shape = 'u32[144,128]{1,0:T(1,128)}', space=vmem, size = 0x12000, scoped, tag = 'internal scratch']
  %s0 = inlined_call_operand.vmem [shape: bf16[8,1024], index: 0, kind: input, shape index: {}]
  %s1 = inlined_call_operand.vmem [shape: bf16[1024,512], index: 1, kind: input, shape index: {}]
  %s2 = inlined_call_operand.vmem [shape: f32[1,512], index: 2, kind: input, shape index: {}]
  %s3 = inlined_call_operand.vmem [shape: bf16[512,128], index: 3, kind: input, shape index: {}]
  %s4 = inlined_call_operand.vmem [shape: f32[1,128], index: 4, kind: input, shape index: {}]
  %s5 = inlined_call_operand.vmem [shape: f32[8,128], index: 5, kind: output, shape index: {}]
  %s6 = sld [smem:[#allocation0]]
  $region30: #{cnn_forward.5} parent=0
    _
  %s8 = ssub.s32 1, %s6
  %s9 = scalar_select 0, %s8, %s6
  // Predicated region
  $region2: #{cnn_forward.5} parent=0 // pred_check
    _
  $region3: #{cnn_forward.5} parent=0 // pred_check_branch
    %11 = sbr.rel (0) target = $region5
  $region4: #{cnn_forward.5} parent=0 // pred_region
    _
  $region5: #{cnn_forward.5} parent=0 // pred_fallthru
    _
  // Predicated region
  $region6: #{cnn_forward.5} parent=0 // pred_check
    _
  $region7: #{cnn_forward.5} parent=0 // pred_check_branch
    %13 = sbr.rel (0) target = $region9
  $region8: #{cnn_forward.5} parent=0 // pred_region
    _
  $region9: #{cnn_forward.5} parent=0 // pred_fallthru
    _
  // Predicated region
  $region10: #{cnn_forward.5} parent=0 // pred_check
    _
  $region11: #{cnn_forward.5} parent=0 // pred_check_branch
    %15 = sbr.rel (0) target = $region13
  $region12: #{cnn_forward.5} parent=0 // pred_region
    _
  $region13: #{cnn_forward.5} parent=0 // pred_fallthru
    _
  // Predicated region
  $region14: #{cnn_forward.5} parent=0 // pred_check
    _
  $region15: #{cnn_forward.5} parent=0 // pred_check_branch
    %17 = sbr.rel (0) target = $region17
  $region16: #{cnn_forward.5} parent=0 // pred_region
    _
  $region17: #{cnn_forward.5} parent=0 // pred_fallthru
    _
  // Predicated region
  $region18: #{cnn_forward.5} parent=0 // pred_check
    _
  $region19: #{cnn_forward.5} parent=0 // pred_check_branch
    %19 = sbr.rel (0) target = $region21
  $region20: #{cnn_forward.5} parent=0 // pred_region
    _
  $region21: #{cnn_forward.5} parent=0 // pred_fallthru
    _
  %v21 = vld [vmem:[%s0] sm:$0xff]
  %v22 = vld [vmem:[%s0 + $0x8] sm:$0xff]
  %v23 = vld [vmem:[%s0 + $0x10] sm:$0xff]
  %v24 = vld [vmem:[%s0 + $0x18] sm:$0xff]
  %v25 = vld [vmem:[%s1] sm:$0xff]
  %v26 = vld [vmem:[%s1 + $0x8] sm:$0xff]
  %v27 = vld [vmem:[%s1 + $0x10] sm:$0xff]
  %v28 = vld [vmem:[%s1 + $0x18] sm:$0xff]
  %v29 = vld [vmem:[%s1 + $0x20] sm:$0xff]
  %v30 = vld [vmem:[%s1 + $0x28] sm:$0xff]
  %v31 = vld [vmem:[%s1 + $0x30] sm:$0xff]
  %v32 = vld [vmem:[%s1 + $0x38] sm:$0xff]
  %v33 = vld [vmem:[%s1 + $0x40] sm:$0xff]
  %v34 = vld [vmem:[%s1 + $0x48] sm:$0xff]
  %v35 = vld [vmem:[%s1 + $0x50] sm:$0xff]
  %v36 = vld [vmem:[%s1 + $0x58] sm:$0xff]
  %v37 = vld [vmem:[%s1 + $0x60] sm:$0xff]
  %v38 = vld [vmem:[%s1 + $0x68] sm:$0xff]
  %v39 = vld [vmem:[%s1 + $0x70] sm:$0xff]
  %v40 = vld [vmem:[%s1 + $0x78] sm:$0xff]
  %v41 = vld [vmem:[%s1 + $0x80] sm:$0xff]
  %v42 = vld [vmem:[%s1 + $0x88] sm:$0xff]
  %v43 = vld [vmem:[%s1 + $0x90] sm:$0xff]
  %v44 = vld [vmem:[%s1 + $0x98] sm:$0xff]
  %v45 = vld [vmem:[%s1 + $0xa0] sm:$0xff]
  %v46 = vld [vmem:[%s1 + $0xa8] sm:$0xff]
  %v47 = vld [vmem:[%s1 + $0xb0] sm:$0xff]
  %v48 = vld [vmem:[%s1 + $0xb8] sm:$0xff]
  %v49 = vld [vmem:[%s1 + $0xc0] sm:$0xff]
  %v50 = vld [vmem:[%s1 + $0xc8] sm:$0xff]
  %v51 = vld [vmem:[%s1 + $0xd0] sm:$0xff]
  %v52 = vld [vmem:[%s1 + $0xd8] sm:$0xff]
  %v53 = vld [vmem:[%s1 + $0xe0] sm:$0xff]
  %v54 = vld [vmem:[%s1 + $0xe8] sm:$0xff]
  %v55 = vld [vmem:[%s1 + $0xf0] sm:$0xff]
  %v56 = vld [vmem:[%s1 + $0xf8] sm:$0xff]
  %v57 = vld [vmem:[%s1 + $0x100] sm:$0xff]
  %v58 = vld [vmem:[%s1 + $0x108] sm:$0xff]
  %v59 = vld [vmem:[%s1 + $0x110] sm:$0xff]
  %v60 = vld [vmem:[%s1 + $0x118] sm:$0xff]
  %v61 = vld [vmem:[%s1 + $0x120] sm:$0xff]
  %v62 = vld [vmem:[%s1 + $0x128] sm:$0xff]
  %v63 = vld [vmem:[%s1 + $0x130] sm:$0xff]
  %v64 = vld [vmem:[%s1 + $0x138] sm:$0xff]
  %v65 = vld [vmem:[%s1 + $0x140] sm:$0xff]
  %v66 = vld [vmem:[%s1 + $0x148] sm:$0xff]
  %v67 = vld [vmem:[%s1 + $0x150] sm:$0xff]
  %v68 = vld [vmem:[%s1 + $0x158] sm:$0xff]
  %v69 = vld [vmem:[%s1 + $0x160] sm:$0xff]
  %v70 = vld [vmem:[%s1 + $0x168] sm:$0xff]
  %v71 = vld [vmem:[%s1 + $0x170] sm:$0xff]
  %v72 = vld [vmem:[%s1 + $0x178] sm:$0xff]
  %v73 = vld [vmem:[%s1 + $0x180] sm:$0xff]
  %v74 = vld [vmem:[%s1 + $0x188] sm:$0xff]
  %v75 = vld [vmem:[%s1 + $0x190] sm:$0xff]
  %v76 = vld [vmem:[%s1 + $0x198] sm:$0xff]
  %v77 = vld [vmem:[%s1 + $0x1a0] sm:$0xff]
  %v78 = vld [vmem:[%s1 + $0x1a8] sm:$0xff]
  %v79 = vld [vmem:[%s1 + $0x1b0] sm:$0xff]
  %v80 = vld [vmem:[%s1 + $0x1b8] sm:$0xff]
  %v81 = vld [vmem:[%s1 + $0x1c0] sm:$0xff]
  %v82 = vld [vmem:[%s1 + $0x1c8] sm:$0xff]
  %v83 = vld [vmem:[%s1 + $0x1d0] sm:$0xff]
  %v84 = vld [vmem:[%s1 + $0x1d8] sm:$0xff]
  %v85 = vld [vmem:[%s1 + $0x1e0] sm:$0xff]
  %v86 = vld [vmem:[%s1 + $0x1e8] sm:$0xff]
  %v87 = vld [vmem:[%s1 + $0x1f0] sm:$0xff]
  %v88 = vld [vmem:[%s1 + $0x1f8] sm:$0xff]
  %v89 = vld [vmem:[%s1 + $0x200] sm:$0xff]
  %v90 = vld [vmem:[%s1 + $0x208] sm:$0xff]
  %v91 = vld [vmem:[%s1 + $0x210] sm:$0xff]
  %v92 = vld [vmem:[%s1 + $0x218] sm:$0xff]
  %v93 = vld [vmem:[%s1 + $0x220] sm:$0xff]
  %v94 = vld [vmem:[%s1 + $0x228] sm:$0xff]
  %v95 = vld [vmem:[%s1 + $0x230] sm:$0xff]
  %v96 = vld [vmem:[%s1 + $0x238] sm:$0xff]
  %v97 = vld [vmem:[%s1 + $0x240] sm:$0xff]
  %v98 = vld [vmem:[%s1 + $0x248] sm:$0xff]
  %v99 = vld [vmem:[%s1 + $0x250] sm:$0xff]
  %v100 = vld [vmem:[%s1 + $0x258] sm:$0xff]
  %v101 = vld [vmem:[%s1 + $0x260] sm:$0xff]
  %v102 = vld [vmem:[%s1 + $0x268] sm:$0xff]
  %v103 = vld [vmem:[%s1 + $0x270] sm:$0xff]
  %v104 = vld [vmem:[%s1 + $0x278] sm:$0xff]
  %v105 = vld [vmem:[%s1 + $0x280] sm:$0xff]
  %v106 = vld [vmem:[%s1 + $0x288] sm:$0xff]
  %v107 = vld [vmem:[%s1 + $0x290] sm:$0xff]
  %v108 = vld [vmem:[%s1 + $0x298] sm:$0xff]
  %v109 = vld [vmem:[%s1 + $0x2a0] sm:$0xff]
  %v110 = vld [vmem:[%s1 + $0x2a8] sm:$0xff]
  %v111 = vld [vmem:[%s1 + $0x2b0] sm:$0xff]
  %v112 = vld [vmem:[%s1 + $0x2b8] sm:$0xff]
  %v113 = vld [vmem:[%s1 + $0x2c0] sm:$0xff]
  %v114 = vld [vmem:[%s1 + $0x2c8] sm:$0xff]
  %v115 = vld [vmem:[%s1 + $0x2d0] sm:$0xff]
  %v116 = vld [vmem:[%s1 + $0x2d8] sm:$0xff]
  %v117 = vld [vmem:[%s1 + $0x2e0] sm:$0xff]
  %v118 = vld [vmem:[%s1 + $0x2e8] sm:$0xff]
  %v119 = vld [vmem:[%s1 + $0x2f0] sm:$0xff]
  %v120 = vld [vmem:[%s1 + $0x2f8] sm:$0xff]
  %v121 = vld [vmem:[%s1 + $0x300] sm:$0xff]
  %v122 = vld [vmem:[%s1 + $0x308] sm:$0xff]
  %v123 = vld [vmem:[%s1 + $0x310] sm:$0xff]
  %v124 = vld [vmem:[%s1 + $0x318] sm:$0xff]
  %v125 = vld [vmem:[%s1 + $0x320] sm:$0xff]
  %v126 = vld [vmem:[%s1 + $0x328] sm:$0xff]
  %v127 = vld [vmem:[%s1 + $0x330] sm:$0xff]
  %v128 = vld [vmem:[%s1 + $0x338] sm:$0xff]
  %v129 = vld [vmem:[%s1 + $0x340] sm:$0xff]
  %v130 = vld [vmem:[%s1 + $0x348] sm:$0xff]
  %v131 = vld [vmem:[%s1 + $0x350] sm:$0xff]
  %v132 = vld [vmem:[%s1 + $0x358] sm:$0xff]
  %v133 = vld [vmem:[%s1 + $0x360] sm:$0xff]
  %v134 = vld [vmem:[%s1 + $0x368] sm:$0xff]
  %v135 = vld [vmem:[%s1 + $0x370] sm:$0xff]
  %v136 = vld [vmem:[%s1 + $0x378] sm:$0xff]
  %v137 = vld [vmem:[%s1 + $0x380] sm:$0xff]
  %v138 = vld [vmem:[%s1 + $0x388] sm:$0xff]
  %v139 = vld [vmem:[%s1 + $0x390] sm:$0xff]
  %v140 = vld [vmem:[%s1 + $0x398] sm:$0xff]
  %v141 = vld [vmem:[%s1 + $0x3a0] sm:$0xff]
  %v142 = vld [vmem:[%s1 + $0x3a8] sm:$0xff]
  %v143 = vld [vmem:[%s1 + $0x3b0] sm:$0xff]
  %v144 = vld [vmem:[%s1 + $0x3b8] sm:$0xff]
  %v145 = vld [vmem:[%s1 + $0x3c0] sm:$0xff]
  %v146 = vld [vmem:[%s1 + $0x3c8] sm:$0xff]
  %v147 = vld [vmem:[%s1 + $0x3d0] sm:$0xff]
  %v148 = vld [vmem:[%s1 + $0x3d8] sm:$0xff]
  %v149 = vld [vmem:[%s1 + $0x3e0] sm:$0xff]
  %v150 = vld [vmem:[%s1 + $0x3e8] sm:$0xff]
  %v151 = vld [vmem:[%s1 + $0x3f0] sm:$0xff]
  %v152 = vld [vmem:[%s1 + $0x3f8] sm:$0xff]
  %v153 = vld [vmem:[%s1 + $0x400] sm:$0xff]
  %v154 = vld [vmem:[%s1 + $0x408] sm:$0xff]
  %v155 = vld [vmem:[%s1 + $0x410] sm:$0xff]
  %v156 = vld [vmem:[%s1 + $0x418] sm:$0xff]
  %v157 = vld [vmem:[%s1 + $0x420] sm:$0xff]
  %v158 = vld [vmem:[%s1 + $0x428] sm:$0xff]
  %v159 = vld [vmem:[%s1 + $0x430] sm:$0xff]
  %v160 = vld [vmem:[%s1 + $0x438] sm:$0xff]
  %v161 = vld [vmem:[%s1 + $0x440] sm:$0xff]
  %v162 = vld [vmem:[%s1 + $0x448] sm:$0xff]
  %v163 = vld [vmem:[%s1 + $0x450] sm:$0xff]
  %v164 = vld [vmem:[%s1 + $0x458] sm:$0xff]
  %v165 = vld [vmem:[%s1 + $0x460] sm:$0xff]
  %v166 = vld [vmem:[%s1 + $0x468] sm:$0xff]
  %v167 = vld [vmem:[%s1 + $0x470] sm:$0xff]
  %v168 = vld [vmem:[%s1 + $0x478] sm:$0xff]
  %v169 = vld [vmem:[%s1 + $0x480] sm:$0xff]
  %v170 = vld [vmem:[%s1 + $0x488] sm:$0xff]
  %v171 = vld [vmem:[%s1 + $0x490] sm:$0xff]
  %v172 = vld [vmem:[%s1 + $0x498] sm:$0xff]
  %v173 = vld [vmem:[%s1 + $0x4a0] sm:$0xff]
  %v174 = vld [vmem:[%s1 + $0x4a8] sm:$0xff]
  %v175 = vld [vmem:[%s1 + $0x4b0] sm:$0xff]
  %v176 = vld [vmem:[%s1 + $0x4b8] sm:$0xff]
  %v177 = vld [vmem:[%s1 + $0x4c0] sm:$0xff]
  %v178 = vld [vmem:[%s1 + $0x4c8] sm:$0xff]
  %v179 = vld [vmem:[%s1 + $0x4d0] sm:$0xff]
  %v180 = vld [vmem:[%s1 + $0x4d8] sm:$0xff]
  %v181 = vld [vmem:[%s1 + $0x4e0] sm:$0xff]
  %v182 = vld [vmem:[%s1 + $0x4e8] sm:$0xff]
  %v183 = vld [vmem:[%s1 + $0x4f0] sm:$0xff]
  %v184 = vld [vmem:[%s1 + $0x4f8] sm:$0xff]
  %v185 = vld [vmem:[%s1 + $0x500] sm:$0xff]
  %v186 = vld [vmem:[%s1 + $0x508] sm:$0xff]
  %v187 = vld [vmem:[%s1 + $0x510] sm:$0xff]
  %v188 = vld [vmem:[%s1 + $0x518] sm:$0xff]
  %v189 = vld [vmem:[%s1 + $0x520] sm:$0xff]
  %v190 = vld [vmem:[%s1 + $0x528] sm:$0xff]
  %v191 = vld [vmem:[%s1 + $0x530] sm:$0xff]
  %v192 = vld [vmem:[%s1 + $0x538] sm:$0xff]
  %v193 = vld [vmem:[%s1 + $0x540] sm:$0xff]
  %v194 = vld [vmem:[%s1 + $0x548] sm:$0xff]
  %v195 = vld [vmem:[%s1 + $0x550] sm:$0xff]
  %v196 = vld [vmem:[%s1 + $0x558] sm:$0xff]
  %v197 = vld [vmem:[%s1 + $0x560] sm:$0xff]
  %v198 = vld [vmem:[%s1 + $0x568] sm:$0xff]
  %v199 = vld [vmem:[%s1 + $0x570] sm:$0xff]
  %v200 = vld [vmem:[%s1 + $0x578] sm:$0xff]
  %v201 = vld [vmem:[%s1 + $0x580] sm:$0xff]
  %v202 = vld [vmem:[%s1 + $0x588] sm:$0xff]
  %v203 = vld [vmem:[%s1 + $0x590] sm:$0xff]
  %v204 = vld [vmem:[%s1 + $0x598] sm:$0xff]
  %v205 = vld [vmem:[%s1 + $0x5a0] sm:$0xff]
  %v206 = vld [vmem:[%s1 + $0x5a8] sm:$0xff]
  %v207 = vld [vmem:[%s1 + $0x5b0] sm:$0xff]
  %v208 = vld [vmem:[%s1 + $0x5b8] sm:$0xff]
  %v209 = vld [vmem:[%s1 + $0x5c0] sm:$0xff]
  %v210 = vld [vmem:[%s1 + $0x5c8] sm:$0xff]
  %v211 = vld [vmem:[%s1 + $0x5d0] sm:$0xff]
  %v212 = vld [vmem:[%s1 + $0x5d8] sm:$0xff]
  %v213 = vld [vmem:[%s1 + $0x5e0] sm:$0xff]
  %v214 = vld [vmem:[%s1 + $0x5e8] sm:$0xff]
  %v215 = vld [vmem:[%s1 + $0x5f0] sm:$0xff]
  %v216 = vld [vmem:[%s1 + $0x5f8] sm:$0xff]
  %v217 = vld [vmem:[%s1 + $0x600] sm:$0xff]
  %v218 = vld [vmem:[%s1 + $0x608] sm:$0xff]
  %v219 = vld [vmem:[%s1 + $0x610] sm:$0xff]
  %v220 = vld [vmem:[%s1 + $0x618] sm:$0xff]
  %v221 = vld [vmem:[%s1 + $0x620] sm:$0xff]
  %v222 = vld [vmem:[%s1 + $0x628] sm:$0xff]
  %v223 = vld [vmem:[%s1 + $0x630] sm:$0xff]
  %v224 = vld [vmem:[%s1 + $0x638] sm:$0xff]
  %v225 = vld [vmem:[%s1 + $0x640] sm:$0xff]
  %v226 = vld [vmem:[%s1 + $0x648] sm:$0xff]
  %v227 = vld [vmem:[%s1 + $0x650] sm:$0xff]
  %v228 = vld [vmem:[%s1 + $0x658] sm:$0xff]
  %v229 = vld [vmem:[%s1 + $0x660] sm:$0xff]
  %v230 = vld [vmem:[%s1 + $0x668] sm:$0xff]
  %v231 = vld [vmem:[%s1 + $0x670] sm:$0xff]
  %v232 = vld [vmem:[%s1 + $0x678] sm:$0xff]
  %v233 = vld [vmem:[%s1 + $0x680] sm:$0xff]
  %v234 = vld [vmem:[%s1 + $0x688] sm:$0xff]
  %v235 = vld [vmem:[%s1 + $0x690] sm:$0xff]
  %v236 = vld [vmem:[%s1 + $0x698] sm:$0xff]
  %v237 = vld [vmem:[%s1 + $0x6a0] sm:$0xff]
  %v238 = vld [vmem:[%s1 + $0x6a8] sm:$0xff]
  %v239 = vld [vmem:[%s1 + $0x6b0] sm:$0xff]
  %v240 = vld [vmem:[%s1 + $0x6b8] sm:$0xff]
  %v241 = vld [vmem:[%s1 + $0x6c0] sm:$0xff]
  %v242 = vld [vmem:[%s1 + $0x6c8] sm:$0xff]
  %v243 = vld [vmem:[%s1 + $0x6d0] sm:$0xff]
  %v244 = vld [vmem:[%s1 + $0x6d8] sm:$0xff]
  %v245 = vld [vmem:[%s1 + $0x6e0] sm:$0xff]
  %v246 = vld [vmem:[%s1 + $0x6e8] sm:$0xff]
  %v247 = vld [vmem:[%s1 + $0x6f0] sm:$0xff]
  %v248 = vld [vmem:[%s1 + $0x6f8] sm:$0xff]
  %v249 = vld [vmem:[%s1 + $0x700] sm:$0xff]
  %v250 = vld [vmem:[%s1 + $0x708] sm:$0xff]
  %v251 = vld [vmem:[%s1 + $0x710] sm:$0xff]
  %v252 = vld [vmem:[%s1 + $0x718] sm:$0xff]
  %v253 = vld [vmem:[%s1 + $0x720] sm:$0xff]
  %v254 = vld [vmem:[%s1 + $0x728] sm:$0xff]
  %v255 = vld [vmem:[%s1 + $0x730] sm:$0xff]
  %v256 = vld [vmem:[%s1 + $0x738] sm:$0xff]
  %v257 = vld [vmem:[%s1 + $0x740] sm:$0xff]
  %v258 = vld [vmem:[%s1 + $0x748] sm:$0xff]
  %v259 = vld [vmem:[%s1 + $0x750] sm:$0xff]
  %v260 = vld [vmem:[%s1 + $0x758] sm:$0xff]
  %v261 = vld [vmem:[%s1 + $0x760] sm:$0xff]
  %v262 = vld [vmem:[%s1 + $0x768] sm:$0xff]
  %v263 = vld [vmem:[%s1 + $0x770] sm:$0xff]
  %v264 = vld [vmem:[%s1 + $0x778] sm:$0xff]
  %v265 = vld [vmem:[%s1 + $0x780] sm:$0xff]
  %v266 = vld [vmem:[%s1 + $0x788] sm:$0xff]
  %v267 = vld [vmem:[%s1 + $0x790] sm:$0xff]
  %v268 = vld [vmem:[%s1 + $0x798] sm:$0xff]
  %v269 = vld [vmem:[%s1 + $0x7a0] sm:$0xff]
  %v270 = vld [vmem:[%s1 + $0x7a8] sm:$0xff]
  %v271 = vld [vmem:[%s1 + $0x7b0] sm:$0xff]
  %v272 = vld [vmem:[%s1 + $0x7b8] sm:$0xff]
  %v273 = vld [vmem:[%s1 + $0x7c0] sm:$0xff]
  %v274 = vld [vmem:[%s1 + $0x7c8] sm:$0xff]
  %v275 = vld [vmem:[%s1 + $0x7d0] sm:$0xff]
  %v276 = vld [vmem:[%s1 + $0x7d8] sm:$0xff]
  %v277 = vld [vmem:[%s1 + $0x7e0] sm:$0xff]
  %v278 = vld [vmem:[%s1 + $0x7e8] sm:$0xff]
  %v279 = vld [vmem:[%s1 + $0x7f0] sm:$0xff]
  %v280 = vld [vmem:[%s1 + $0x7f8] sm:$0xff]
  %v281 = vld [vmem:[%s2] sm:$0xf]
  %v283 = vlaneseq
  %v284 = vshrl.u32 %v283, 7
  %v285 = vsub.s32 0, %v284
  %v286 = vrot.slane %v281, %v285
  %v287 = vlaneseq
  %v288 = vshrl.u32 %v287, 7
  %v289 = vsub.s32 1, %v288
  %v290 = vrot.slane %v281, %v289
  %v291 = vlaneseq
  %v292 = vshrl.u32 %v291, 7
  %v293 = vsub.s32 2, %v292
  %v294 = vrot.slane %v281, %v293
  %v295 = vlaneseq
  %v296 = vshrl.u32 %v295, 7
  %v297 = vsub.s32 3, %v296
  %v298 = vrot.slane %v281, %v297
  %v307 = vunpack.c.l.b16 %v21
  %v308 = vunpack.c.h.b16 %v21
  %v309 = vunpack.c.l.b16 %v22
  %v310 = vunpack.c.h.b16 %v22
  %v311 = vunpack.c.l.b16 %v23
  %v312 = vunpack.c.h.b16 %v23
  %v313 = vunpack.c.l.b16 %v24
  %v314 = vunpack.c.h.b16 %v24
  %v315 = vpack.c.b16 %v307, %v307
  %v316 = vpack.c.b16 %v308, %v308
  %v317 = vpack.c.b16 %v309, %v309
  %v318 = vpack.c.b16 %v310, %v310
  %v319 = vpack.c.b16 %v311, %v311
  %v320 = vpack.c.b16 %v312, %v312
  %v321 = vpack.c.b16 %v313, %v313
  %v322 = vpack.c.b16 %v314, %v314
  %v587 = vunpack.c.l.b16 %v25
  %v588 = vunpack.c.h.b16 %v25
  %v589 = vunpack.c.l.b16 %v26
  %v590 = vunpack.c.h.b16 %v26
  %v591 = vunpack.c.l.b16 %v27
  %v592 = vunpack.c.h.b16 %v27
  %v593 = vunpack.c.l.b16 %v28
  %v594 = vunpack.c.h.b16 %v28
  %v595 = vunpack.c.l.b16 %v29
  %v596 = vunpack.c.h.b16 %v29
  %v597 = vunpack.c.l.b16 %v30
  %v598 = vunpack.c.h.b16 %v30
  %v599 = vunpack.c.l.b16 %v31
  %v600 = vunpack.c.h.b16 %v31
  %v601 = vunpack.c.l.b16 %v32
  %v602 = vunpack.c.h.b16 %v32
  %v603 = vunpack.c.l.b16 %v33
  %v604 = vunpack.c.h.b16 %v33
  %v605 = vunpack.c.l.b16 %v34
  %v606 = vunpack.c.h.b16 %v34
  %v607 = vunpack.c.l.b16 %v35
  %v608 = vunpack.c.h.b16 %v35
  %v609 = vunpack.c.l.b16 %v36
  %v610 = vunpack.c.h.b16 %v36
  %v611 = vunpack.c.l.b16 %v37
  %v612 = vunpack.c.h.b16 %v37
  %v613 = vunpack.c.l.b16 %v38
  %v614 = vunpack.c.h.b16 %v38
  %v615 = vunpack.c.l.b16 %v39
  %v616 = vunpack.c.h.b16 %v39
  %v617 = vunpack.c.l.b16 %v40
  %v618 = vunpack.c.h.b16 %v40
  %v619 = vunpack.c.l.b16 %v41
  %v620 = vunpack.c.h.b16 %v41
  %v621 = vunpack.c.l.b16 %v42
  %v622 = vunpack.c.h.b16 %v42
  %v623 = vunpack.c.l.b16 %v43
  %v624 = vunpack.c.h.b16 %v43
  %v625 = vunpack.c.l.b16 %v44
  %v626 = vunpack.c.h.b16 %v44
  %v627 = vunpack.c.l.b16 %v45
  %v628 = vunpack.c.h.b16 %v45
  %v629 = vunpack.c.l.b16 %v46
  %v630 = vunpack.c.h.b16 %v46
  %v631 = vunpack.c.l.b16 %v47
  %v632 = vunpack.c.h.b16 %v47
  %v633 = vunpack.c.l.b16 %v48
  %v634 = vunpack.c.h.b16 %v48
  %v635 = vunpack.c.l.b16 %v49
  %v636 = vunpack.c.h.b16 %v49
  %v637 = vunpack.c.l.b16 %v50
  %v638 = vunpack.c.h.b16 %v50
  %v639 = vunpack.c.l.b16 %v51
  %v640 = vunpack.c.h.b16 %v51
  %v641 = vunpack.c.l.b16 %v52
  %v642 = vunpack.c.h.b16 %v52
  %v643 = vunpack.c.l.b16 %v53
  %v644 = vunpack.c.h.b16 %v53
  %v645 = vunpack.c.l.b16 %v54
  %v646 = vunpack.c.h.b16 %v54
  %v647 = vunpack.c.l.b16 %v55
  %v648 = vunpack.c.h.b16 %v55
  %v649 = vunpack.c.l.b16 %v56
  %v650 = vunpack.c.h.b16 %v56
  %v651 = vunpack.c.l.b16 %v57
  %v652 = vunpack.c.h.b16 %v57
  %v653 = vunpack.c.l.b16 %v58
  %v654 = vunpack.c.h.b16 %v58
  %v655 = vunpack.c.l.b16 %v59
  %v656 = vunpack.c.h.b16 %v59
  %v657 = vunpack.c.l.b16 %v60
  %v658 = vunpack.c.h.b16 %v60
  %v659 = vunpack.c.l.b16 %v61
  %v660 = vunpack.c.h.b16 %v61
  %v661 = vunpack.c.l.b16 %v62
  %v662 = vunpack.c.h.b16 %v62
  %v663 = vunpack.c.l.b16 %v63
  %v664 = vunpack.c.h.b16 %v63
  %v665 = vunpack.c.l.b16 %v64
  %v666 = vunpack.c.h.b16 %v64
  %v667 = vunpack.c.l.b16 %v65
  %v668 = vunpack.c.h.b16 %v65
  %v669 = vunpack.c.l.b16 %v66
  %v670 = vunpack.c.h.b16 %v66
  %v671 = vunpack.c.l.b16 %v67
  %v672 = vunpack.c.h.b16 %v67
  %v673 = vunpack.c.l.b16 %v68
  %v674 = vunpack.c.h.b16 %v68
  %v675 = vunpack.c.l.b16 %v69
  %v676 = vunpack.c.h.b16 %v69
  %v677 = vunpack.c.l.b16 %v70
  %v678 = vunpack.c.h.b16 %v70
  %v679 = vunpack.c.l.b16 %v71
  %v680 = vunpack.c.h.b16 %v71
  %v681 = vunpack.c.l.b16 %v72
  %v682 = vunpack.c.h.b16 %v72
  %v683 = vunpack.c.l.b16 %v73
  %v684 = vunpack.c.h.b16 %v73
  %v685 = vunpack.c.l.b16 %v74
  %v686 = vunpack.c.h.b16 %v74
  %v687 = vunpack.c.l.b16 %v75
  %v688 = vunpack.c.h.b16 %v75
  %v689 = vunpack.c.l.b16 %v76
  %v690 = vunpack.c.h.b16 %v76
  %v691 = vunpack.c.l.b16 %v77
  %v692 = vunpack.c.h.b16 %v77
  %v693 = vunpack.c.l.b16 %v78
  %v694 = vunpack.c.h.b16 %v78
  %v695 = vunpack.c.l.b16 %v79
  %v696 = vunpack.c.h.b16 %v79
  %v697 = vunpack.c.l.b16 %v80
  %v698 = vunpack.c.h.b16 %v80
  %v699 = vunpack.c.l.b16 %v81
  %v700 = vunpack.c.h.b16 %v81
  %v701 = vunpack.c.l.b16 %v82
  %v702 = vunpack.c.h.b16 %v82
  %v703 = vunpack.c.l.b16 %v83
  %v704 = vunpack.c.h.b16 %v83
  %v705 = vunpack.c.l.b16 %v84
  %v706 = vunpack.c.h.b16 %v84
  %v707 = vunpack.c.l.b16 %v85
  %v708 = vunpack.c.h.b16 %v85
  %v709 = vunpack.c.l.b16 %v86
  %v710 = vunpack.c.h.b16 %v86
  %v711 = vunpack.c.l.b16 %v87
  %v712 = vunpack.c.h.b16 %v87
  %v713 = vunpack.c.l.b16 %v88
  %v714 = vunpack.c.h.b16 %v88
  %v715 = vunpack.c.l.b16 %v89
  %v716 = vunpack.c.h.b16 %v89
  %v717 = vunpack.c.l.b16 %v90
  %v718 = vunpack.c.h.b16 %v90
  %v719 = vunpack.c.l.b16 %v91
  %v720 = vunpack.c.h.b16 %v91
  %v721 = vunpack.c.l.b16 %v92
  %v722 = vunpack.c.h.b16 %v92
  %v723 = vunpack.c.l.b16 %v93
  %v724 = vunpack.c.h.b16 %v93
  %v725 = vunpack.c.l.b16 %v94
  %v726 = vunpack.c.h.b16 %v94
  %v727 = vunpack.c.l.b16 %v95
  %v728 = vunpack.c.h.b16 %v95
  %v729 = vunpack.c.l.b16 %v96
  %v730 = vunpack.c.h.b16 %v96
  %v731 = vunpack.c.l.b16 %v97
  %v732 = vunpack.c.h.b16 %v97
  %v733 = vunpack.c.l.b16 %v98
  %v734 = vunpack.c.h.b16 %v98
  %v735 = vunpack.c.l.b16 %v99
  %v736 = vunpack.c.h.b16 %v99
  %v737 = vunpack.c.l.b16 %v100
  %v738 = vunpack.c.h.b16 %v100
  %v739 = vunpack.c.l.b16 %v101
  %v740 = vunpack.c.h.b16 %v101
  %v741 = vunpack.c.l.b16 %v102
  %v742 = vunpack.c.h.b16 %v102
  %v743 = vunpack.c.l.b16 %v103
  %v744 = vunpack.c.h.b16 %v103
  %v745 = vunpack.c.l.b16 %v104
  %v746 = vunpack.c.h.b16 %v104
  %v747 = vunpack.c.l.b16 %v105
  %v748 = vunpack.c.h.b16 %v105
  %v749 = vunpack.c.l.b16 %v106
  %v750 = vunpack.c.h.b16 %v106
  %v751 = vunpack.c.l.b16 %v107
  %v752 = vunpack.c.h.b16 %v107
  %v753 = vunpack.c.l.b16 %v108
  %v754 = vunpack.c.h.b16 %v108
  %v755 = vunpack.c.l.b16 %v109
  %v756 = vunpack.c.h.b16 %v109
  %v757 = vunpack.c.l.b16 %v110
  %v758 = vunpack.c.h.b16 %v110
  %v759 = vunpack.c.l.b16 %v111
  %v760 = vunpack.c.h.b16 %v111
  %v761 = vunpack.c.l.b16 %v112
  %v762 = vunpack.c.h.b16 %v112
  %v763 = vunpack.c.l.b16 %v113
  %v764 = vunpack.c.h.b16 %v113
  %v765 = vunpack.c.l.b16 %v114
  %v766 = vunpack.c.h.b16 %v114
  %v767 = vunpack.c.l.b16 %v115
  %v768 = vunpack.c.h.b16 %v115
  %v769 = vunpack.c.l.b16 %v116
  %v770 = vunpack.c.h.b16 %v116
  %v771 = vunpack.c.l.b16 %v117
  %v772 = vunpack.c.h.b16 %v117
  %v773 = vunpack.c.l.b16 %v118
  %v774 = vunpack.c.h.b16 %v118
  %v775 = vunpack.c.l.b16 %v119
  %v776 = vunpack.c.h.b16 %v119
  %v777 = vunpack.c.l.b16 %v120
  %v778 = vunpack.c.h.b16 %v120
  %v779 = vunpack.c.l.b16 %v121
  %v780 = vunpack.c.h.b16 %v121
  %v781 = vunpack.c.l.b16 %v122
  %v782 = vunpack.c.h.b16 %v122
  %v783 = vunpack.c.l.b16 %v123
  %v784 = vunpack.c.h.b16 %v123
  %v785 = vunpack.c.l.b16 %v124
  %v786 = vunpack.c.h.b16 %v124
  %v787 = vunpack.c.l.b16 %v125
  %v788 = vunpack.c.h.b16 %v125
  %v789 = vunpack.c.l.b16 %v126
  %v790 = vunpack.c.h.b16 %v126
  %v791 = vunpack.c.l.b16 %v127
  %v792 = vunpack.c.h.b16 %v127
  %v793 = vunpack.c.l.b16 %v128
  %v794 = vunpack.c.h.b16 %v128
  %v795 = vunpack.c.l.b16 %v129
  %v796 = vunpack.c.h.b16 %v129
  %v797 = vunpack.c.l.b16 %v130
  %v798 = vunpack.c.h.b16 %v130
  %v799 = vunpack.c.l.b16 %v131
  %v800 = vunpack.c.h.b16 %v131
  %v801 = vunpack.c.l.b16 %v132
  %v802 = vunpack.c.h.b16 %v132
  %v803 = vunpack.c.l.b16 %v133
  %v804 = vunpack.c.h.b16 %v133
  %v805 = vunpack.c.l.b16 %v134
  %v806 = vunpack.c.h.b16 %v134
  %v807 = vunpack.c.l.b16 %v135
  %v808 = vunpack.c.h.b16 %v135
  %v809 = vunpack.c.l.b16 %v136
  %v810 = vunpack.c.h.b16 %v136
  %v811 = vunpack.c.l.b16 %v137
  %v812 = vunpack.c.h.b16 %v137
  %v813 = vunpack.c.l.b16 %v138
  %v814 = vunpack.c.h.b16 %v138
  %v815 = vunpack.c.l.b16 %v139
  %v816 = vunpack.c.h.b16 %v139
  %v817 = vunpack.c.l.b16 %v140
  %v818 = vunpack.c.h.b16 %v140
  %v819 = vunpack.c.l.b16 %v141
  %v820 = vunpack.c.h.b16 %v141
  %v821 = vunpack.c.l.b16 %v142
  %v822 = vunpack.c.h.b16 %v142
  %v823 = vunpack.c.l.b16 %v143
  %v824 = vunpack.c.h.b16 %v143
  %v825 = vunpack.c.l.b16 %v144
  %v826 = vunpack.c.h.b16 %v144
  %v827 = vunpack.c.l.b16 %v145
  %v828 = vunpack.c.h.b16 %v145
  %v829 = vunpack.c.l.b16 %v146
  %v830 = vunpack.c.h.b16 %v146
  %v831 = vunpack.c.l.b16 %v147
  %v832 = vunpack.c.h.b16 %v147
  %v833 = vunpack.c.l.b16 %v148
  %v834 = vunpack.c.h.b16 %v148
  %v835 = vunpack.c.l.b16 %v149
  %v836 = vunpack.c.h.b16 %v149
  %v837 = vunpack.c.l.b16 %v150
  %v838 = vunpack.c.h.b16 %v150
  %v839 = vunpack.c.l.b16 %v151
  %v840 = vunpack.c.h.b16 %v151
  %v841 = vunpack.c.l.b16 %v152
  %v842 = vunpack.c.h.b16 %v152
  %v843 = vunpack.c.l.b16 %v153
  %v844 = vunpack.c.h.b16 %v153
  %v845 = vunpack.c.l.b16 %v154
  %v846 = vunpack.c.h.b16 %v154
  %v847 = vunpack.c.l.b16 %v155
  %v848 = vunpack.c.h.b16 %v155
  %v849 = vunpack.c.l.b16 %v156
  %v850 = vunpack.c.h.b16 %v156
  %v851 = vunpack.c.l.b16 %v157
  %v852 = vunpack.c.h.b16 %v157
  %v853 = vunpack.c.l.b16 %v158
  %v854 = vunpack.c.h.b16 %v158
  %v855 = vunpack.c.l.b16 %v159
  %v856 = vunpack.c.h.b16 %v159
  %v857 = vunpack.c.l.b16 %v160
  %v858 = vunpack.c.h.b16 %v160
  %v859 = vunpack.c.l.b16 %v161
  %v860 = vunpack.c.h.b16 %v161
  %v861 = vunpack.c.l.b16 %v162
  %v862 = vunpack.c.h.b16 %v162
  %v863 = vunpack.c.l.b16 %v163
  %v864 = vunpack.c.h.b16 %v163
  %v865 = vunpack.c.l.b16 %v164
  %v866 = vunpack.c.h.b16 %v164
  %v867 = vunpack.c.l.b16 %v165
  %v868 = vunpack.c.h.b16 %v165
  %v869 = vunpack.c.l.b16 %v166
  %v870 = vunpack.c.h.b16 %v166
  %v871 = vunpack.c.l.b16 %v167
  %v872 = vunpack.c.h.b16 %v167
  %v873 = vunpack.c.l.b16 %v168
  %v874 = vunpack.c.h.b16 %v168
  %v875 = vunpack.c.l.b16 %v169
  %v876 = vunpack.c.h.b16 %v169
  %v877 = vunpack.c.l.b16 %v170
  %v878 = vunpack.c.h.b16 %v170
  %v879 = vunpack.c.l.b16 %v171
  %v880 = vunpack.c.h.b16 %v171
  %v881 = vunpack.c.l.b16 %v172
  %v882 = vunpack.c.h.b16 %v172
  %v883 = vunpack.c.l.b16 %v173
  %v884 = vunpack.c.h.b16 %v173
  %v885 = vunpack.c.l.b16 %v174
  %v886 = vunpack.c.h.b16 %v174
  %v887 = vunpack.c.l.b16 %v175
  %v888 = vunpack.c.h.b16 %v175
  %v889 = vunpack.c.l.b16 %v176
  %v890 = vunpack.c.h.b16 %v176
  %v891 = vunpack.c.l.b16 %v177
  %v892 = vunpack.c.h.b16 %v177
  %v893 = vunpack.c.l.b16 %v178
  %v894 = vunpack.c.h.b16 %v178
  %v895 = vunpack.c.l.b16 %v179
  %v896 = vunpack.c.h.b16 %v179
  %v897 = vunpack.c.l.b16 %v180
  %v898 = vunpack.c.h.b16 %v180
  %v899 = vunpack.c.l.b16 %v181
  %v900 = vunpack.c.h.b16 %v181
  %v901 = vunpack.c.l.b16 %v182
  %v902 = vunpack.c.h.b16 %v182
  %v903 = vunpack.c.l.b16 %v183
  %v904 = vunpack.c.h.b16 %v183
  %v905 = vunpack.c.l.b16 %v184
  %v906 = vunpack.c.h.b16 %v184
  %v907 = vunpack.c.l.b16 %v185
  %v908 = vunpack.c.h.b16 %v185
  %v909 = vunpack.c.l.b16 %v186
  %v910 = vunpack.c.h.b16 %v186
  %v911 = vunpack.c.l.b16 %v187
  %v912 = vunpack.c.h.b16 %v187
  %v913 = vunpack.c.l.b16 %v188
  %v914 = vunpack.c.h.b16 %v188
  %v915 = vunpack.c.l.b16 %v189
  %v916 = vunpack.c.h.b16 %v189
  %v917 = vunpack.c.l.b16 %v190
  %v918 = vunpack.c.h.b16 %v190
  %v919 = vunpack.c.l.b16 %v191
  %v920 = vunpack.c.h.b16 %v191
  %v921 = vunpack.c.l.b16 %v192
  %v922 = vunpack.c.h.b16 %v192
  %v923 = vunpack.c.l.b16 %v193
  %v924 = vunpack.c.h.b16 %v193
  %v925 = vunpack.c.l.b16 %v194
  %v926 = vunpack.c.h.b16 %v194
  %v927 = vunpack.c.l.b16 %v195
  %v928 = vunpack.c.h.b16 %v195
  %v929 = vunpack.c.l.b16 %v196
  %v930 = vunpack.c.h.b16 %v196
  %v931 = vunpack.c.l.b16 %v197
  %v932 = vunpack.c.h.b16 %v197
  %v933 = vunpack.c.l.b16 %v198
  %v934 = vunpack.c.h.b16 %v198
  %v935 = vunpack.c.l.b16 %v199
  %v936 = vunpack.c.h.b16 %v199
  %v937 = vunpack.c.l.b16 %v200
  %v938 = vunpack.c.h.b16 %v200
  %v939 = vunpack.c.l.b16 %v201
  %v940 = vunpack.c.h.b16 %v201
  %v941 = vunpack.c.l.b16 %v202
  %v942 = vunpack.c.h.b16 %v202
  %v943 = vunpack.c.l.b16 %v203
  %v944 = vunpack.c.h.b16 %v203
  %v945 = vunpack.c.l.b16 %v204
  %v946 = vunpack.c.h.b16 %v204
  %v947 = vunpack.c.l.b16 %v205
  %v948 = vunpack.c.h.b16 %v205
  %v949 = vunpack.c.l.b16 %v206
  %v950 = vunpack.c.h.b16 %v206
  %v951 = vunpack.c.l.b16 %v207
  %v952 = vunpack.c.h.b16 %v207
  %v953 = vunpack.c.l.b16 %v208
  %v954 = vunpack.c.h.b16 %v208
  %v955 = vunpack.c.l.b16 %v209
  %v956 = vunpack.c.h.b16 %v209
  %v957 = vunpack.c.l.b16 %v210
  %v958 = vunpack.c.h.b16 %v210
  %v959 = vunpack.c.l.b16 %v211
  %v960 = vunpack.c.h.b16 %v211
  %v961 = vunpack.c.l.b16 %v212
  %v962 = vunpack.c.h.b16 %v212
  %v963 = vunpack.c.l.b16 %v213
  %v964 = vunpack.c.h.b16 %v213
  %v965 = vunpack.c.l.b16 %v214
  %v966 = vunpack.c.h.b16 %v214
  %v967 = vunpack.c.l.b16 %v215
  %v968 = vunpack.c.h.b16 %v215
  %v969 = vunpack.c.l.b16 %v216
  %v970 = vunpack.c.h.b16 %v216
  %v971 = vunpack.c.l.b16 %v217
  %v972 = vunpack.c.h.b16 %v217
  %v973 = vunpack.c.l.b16 %v218
  %v974 = vunpack.c.h.b16 %v218
  %v975 = vunpack.c.l.b16 %v219
  %v976 = vunpack.c.h.b16 %v219
  %v977 = vunpack.c.l.b16 %v220
  %v978 = vunpack.c.h.b16 %v220
  %v979 = vunpack.c.l.b16 %v221
  %v980 = vunpack.c.h.b16 %v221
  %v981 = vunpack.c.l.b16 %v222
  %v982 = vunpack.c.h.b16 %v222
  %v983 = vunpack.c.l.b16 %v223
  %v984 = vunpack.c.h.b16 %v223
  %v985 = vunpack.c.l.b16 %v224
  %v986 = vunpack.c.h.b16 %v224
  %v987 = vunpack.c.l.b16 %v225
  %v988 = vunpack.c.h.b16 %v225
  %v989 = vunpack.c.l.b16 %v226
  %v990 = vunpack.c.h.b16 %v226
  %v991 = vunpack.c.l.b16 %v227
  %v992 = vunpack.c.h.b16 %v227
  %v993 = vunpack.c.l.b16 %v228
  %v994 = vunpack.c.h.b16 %v228
  %v995 = vunpack.c.l.b16 %v229
  %v996 = vunpack.c.h.b16 %v229
  %v997 = vunpack.c.l.b16 %v230
  %v998 = vunpack.c.h.b16 %v230
  %v999 = vunpack.c.l.b16 %v231
  %v1000 = vunpack.c.h.b16 %v231
  %v1001 = vunpack.c.l.b16 %v232
  %v1002 = vunpack.c.h.b16 %v232
  %v1003 = vunpack.c.l.b16 %v233
  %v1004 = vunpack.c.h.b16 %v233
  %v1005 = vunpack.c.l.b16 %v234
  %v1006 = vunpack.c.h.b16 %v234
  %v1007 = vunpack.c.l.b16 %v235
  %v1008 = vunpack.c.h.b16 %v235
  %v1009 = vunpack.c.l.b16 %v236
  %v1010 = vunpack.c.h.b16 %v236
  %v1011 = vunpack.c.l.b16 %v237
  %v1012 = vunpack.c.h.b16 %v237
  %v1013 = vunpack.c.l.b16 %v238
  %v1014 = vunpack.c.h.b16 %v238
  %v1015 = vunpack.c.l.b16 %v239
  %v1016 = vunpack.c.h.b16 %v239
  %v1017 = vunpack.c.l.b16 %v240
  %v1018 = vunpack.c.h.b16 %v240
  %v1019 = vunpack.c.l.b16 %v241
  %v1020 = vunpack.c.h.b16 %v241
  %v1021 = vunpack.c.l.b16 %v242
  %v1022 = vunpack.c.h.b16 %v242
  %v1023 = vunpack.c.l.b16 %v243
  %v1024 = vunpack.c.h.b16 %v243
  %v1025 = vunpack.c.l.b16 %v244
  %v1026 = vunpack.c.h.b16 %v244
  %v1027 = vunpack.c.l.b16 %v245
  %v1028 = vunpack.c.h.b16 %v245
  %v1029 = vunpack.c.l.b16 %v246
  %v1030 = vunpack.c.h.b16 %v246
  %v1031 = vunpack.c.l.b16 %v247
  %v1032 = vunpack.c.h.b16 %v247
  %v1033 = vunpack.c.l.b16 %v248
  %v1034 = vunpack.c.h.b16 %v248
  %v1035 = vunpack.c.l.b16 %v249
  %v1036 = vunpack.c.h.b16 %v249
  %v1037 = vunpack.c.l.b16 %v250
  %v1038 = vunpack.c.h.b16 %v250
  %v1039 = vunpack.c.l.b16 %v251
  %v1040 = vunpack.c.h.b16 %v251
  %v1041 = vunpack.c.l.b16 %v252
  %v1042 = vunpack.c.h.b16 %v252
  %v1043 = vunpack.c.l.b16 %v253
  %v1044 = vunpack.c.h.b16 %v253
  %v1045 = vunpack.c.l.b16 %v254
  %v1046 = vunpack.c.h.b16 %v254
  %v1047 = vunpack.c.l.b16 %v255
  %v1048 = vunpack.c.h.b16 %v255
  %v1049 = vunpack.c.l.b16 %v256
  %v1050 = vunpack.c.h.b16 %v256
  %v1051 = vunpack.c.l.b16 %v257
  %v1052 = vunpack.c.h.b16 %v257
  %v1053 = vunpack.c.l.b16 %v258
  %v1054 = vunpack.c.h.b16 %v258
  %v1055 = vunpack.c.l.b16 %v259
  %v1056 = vunpack.c.h.b16 %v259
  %v1057 = vunpack.c.l.b16 %v260
  %v1058 = vunpack.c.h.b16 %v260
  %v1059 = vunpack.c.l.b16 %v261
  %v1060 = vunpack.c.h.b16 %v261
  %v1061 = vunpack.c.l.b16 %v262
  %v1062 = vunpack.c.h.b16 %v262
  %v1063 = vunpack.c.l.b16 %v263
  %v1064 = vunpack.c.h.b16 %v263
  %v1065 = vunpack.c.l.b16 %v264
  %v1066 = vunpack.c.h.b16 %v264
  %v1067 = vunpack.c.l.b16 %v265
  %v1068 = vunpack.c.h.b16 %v265
  %v1069 = vunpack.c.l.b16 %v266
  %v1070 = vunpack.c.h.b16 %v266
  %v1071 = vunpack.c.l.b16 %v267
  %v1072 = vunpack.c.h.b16 %v267
  %v1073 = vunpack.c.l.b16 %v268
  %v1074 = vunpack.c.h.b16 %v268
  %v1075 = vunpack.c.l.b16 %v269
  %v1076 = vunpack.c.h.b16 %v269
  %v1077 = vunpack.c.l.b16 %v270
  %v1078 = vunpack.c.h.b16 %v270
  %v1079 = vunpack.c.l.b16 %v271
  %v1080 = vunpack.c.h.b16 %v271
  %v1081 = vunpack.c.l.b16 %v272
  %v1082 = vunpack.c.h.b16 %v272
  %v1083 = vunpack.c.l.b16 %v273
  %v1084 = vunpack.c.h.b16 %v273
  %v1085 = vunpack.c.l.b16 %v274
  %v1086 = vunpack.c.h.b16 %v274
  %v1087 = vunpack.c.l.b16 %v275
  %v1088 = vunpack.c.h.b16 %v275
  %v1089 = vunpack.c.l.b16 %v276
  %v1090 = vunpack.c.h.b16 %v276
  %v1091 = vunpack.c.l.b16 %v277
  %v1092 = vunpack.c.h.b16 %v277
  %v1093 = vunpack.c.l.b16 %v278
  %v1094 = vunpack.c.h.b16 %v278
  %v1095 = vunpack.c.l.b16 %v279
  %v1096 = vunpack.c.h.b16 %v279
  %v1097 = vunpack.c.l.b16 %v280
  %v1098 = vunpack.c.h.b16 %v280
  %v1099 = vpack.c.b16 %v591, %v587
  %v1100 = vpack.c.b16 %v592, %v588
  %v1101 = vpack.c.b16 %v593, %v589
  %v1102 = vpack.c.b16 %v594, %v590
  %v1103 = vpack.c.b16 %v599, %v595
  %v1104 = vpack.c.b16 %v600, %v596
  %v1105 = vpack.c.b16 %v601, %v597
  %v1106 = vpack.c.b16 %v602, %v598
  %v1107 = vpack.c.b16 %v607, %v603
  %v1108 = vpack.c.b16 %v608, %v604
  %v1109 = vpack.c.b16 %v609, %v605
  %v1110 = vpack.c.b16 %v610, %v606
  %v1111 = vpack.c.b16 %v615, %v611
  %v1112 = vpack.c.b16 %v616, %v612
  %v1113 = vpack.c.b16 %v617, %v613
  %v1114 = vpack.c.b16 %v618, %v614
  %v1115 = vpack.c.b16 %v623, %v619
  %v1116 = vpack.c.b16 %v624, %v620
  %v1117 = vpack.c.b16 %v625, %v621
  %v1118 = vpack.c.b16 %v626, %v622
  %v1119 = vpack.c.b16 %v631, %v627
  %v1120 = vpack.c.b16 %v632, %v628
  %v1121 = vpack.c.b16 %v633, %v629
  %v1122 = vpack.c.b16 %v634, %v630
  %v1123 = vpack.c.b16 %v639, %v635
  %v1124 = vpack.c.b16 %v640, %v636
  %v1125 = vpack.c.b16 %v641, %v637
  %v1126 = vpack.c.b16 %v642, %v638
  %v1127 = vpack.c.b16 %v647, %v643
  %v1128 = vpack.c.b16 %v648, %v644
  %v1129 = vpack.c.b16 %v649, %v645
  %v1130 = vpack.c.b16 %v650, %v646
  %v1131 = vpack.c.b16 %v655, %v651
  %v1132 = vpack.c.b16 %v656, %v652
  %v1133 = vpack.c.b16 %v657, %v653
  %v1134 = vpack.c.b16 %v658, %v654
  %v1135 = vpack.c.b16 %v663, %v659
  %v1136 = vpack.c.b16 %v664, %v660
  %v1137 = vpack.c.b16 %v665, %v661
  %v1138 = vpack.c.b16 %v666, %v662
  %v1139 = vpack.c.b16 %v671, %v667
  %v1140 = vpack.c.b16 %v672, %v668
  %v1141 = vpack.c.b16 %v673, %v669
  %v1142 = vpack.c.b16 %v674, %v670
  %v1143 = vpack.c.b16 %v679, %v675
  %v1144 = vpack.c.b16 %v680, %v676
  %v1145 = vpack.c.b16 %v681, %v677
  %v1146 = vpack.c.b16 %v682, %v678
  %v1147 = vpack.c.b16 %v687, %v683
  %v1148 = vpack.c.b16 %v688, %v684
  %v1149 = vpack.c.b16 %v689, %v685
  %v1150 = vpack.c.b16 %v690, %v686
  %v1151 = vpack.c.b16 %v695, %v691
  %v1152 = vpack.c.b16 %v696, %v692
  %v1153 = vpack.c.b16 %v697, %v693
  %v1154 = vpack.c.b16 %v698, %v694
  %v1155 = vpack.c.b16 %v703, %v699
  %v1156 = vpack.c.b16 %v704, %v700
  %v1157 = vpack.c.b16 %v705, %v701
  %v1158 = vpack.c.b16 %v706, %v702
  %v1159 = vpack.c.b16 %v711, %v707
  %v1160 = vpack.c.b16 %v712, %v708
  %v1161 = vpack.c.b16 %v713, %v709
  %v1162 = vpack.c.b16 %v714, %v710
  %v1163 = vpack.c.b16 %v719, %v715
  %v1164 = vpack.c.b16 %v720, %v716
  %v1165 = vpack.c.b16 %v721, %v717
  %v1166 = vpack.c.b16 %v722, %v718
  %v1167 = vpack.c.b16 %v727, %v723
  %v1168 = vpack.c.b16 %v728, %v724
  %v1169 = vpack.c.b16 %v729, %v725
  %v1170 = vpack.c.b16 %v730, %v726
  %v1171 = vpack.c.b16 %v735, %v731
  %v1172 = vpack.c.b16 %v736, %v732
  %v1173 = vpack.c.b16 %v737, %v733
  %v1174 = vpack.c.b16 %v738, %v734
  %v1175 = vpack.c.b16 %v743, %v739
  %v1176 = vpack.c.b16 %v744, %v740
  %v1177 = vpack.c.b16 %v745, %v741
  %v1178 = vpack.c.b16 %v746, %v742
  %v1179 = vpack.c.b16 %v751, %v747
  %v1180 = vpack.c.b16 %v752, %v748
  %v1181 = vpack.c.b16 %v753, %v749
  %v1182 = vpack.c.b16 %v754, %v750
  %v1183 = vpack.c.b16 %v759, %v755
  %v1184 = vpack.c.b16 %v760, %v756
  %v1185 = vpack.c.b16 %v761, %v757
  %v1186 = vpack.c.b16 %v762, %v758
  %v1187 = vpack.c.b16 %v767, %v763
  %v1188 = vpack.c.b16 %v768, %v764
  %v1189 = vpack.c.b16 %v769, %v765
  %v1190 = vpack.c.b16 %v770, %v766
  %v1191 = vpack.c.b16 %v775, %v771
  %v1192 = vpack.c.b16 %v776, %v772
  %v1193 = vpack.c.b16 %v777, %v773
  %v1194 = vpack.c.b16 %v778, %v774
  %v1195 = vpack.c.b16 %v783, %v779
  %v1196 = vpack.c.b16 %v784, %v780
  %v1197 = vpack.c.b16 %v785, %v781
  %v1198 = vpack.c.b16 %v786, %v782
  %v1199 = vpack.c.b16 %v791, %v787
  %v1200 = vpack.c.b16 %v792, %v788
  %v1201 = vpack.c.b16 %v793, %v789
  %v1202 = vpack.c.b16 %v794, %v790
  %v1203 = vpack.c.b16 %v799, %v795
  %v1204 = vpack.c.b16 %v800, %v796
  %v1205 = vpack.c.b16 %v801, %v797
  %v1206 = vpack.c.b16 %v802, %v798
  %v1207 = vpack.c.b16 %v807, %v803
  %v1208 = vpack.c.b16 %v808, %v804
  %v1209 = vpack.c.b16 %v809, %v805
  %v1210 = vpack.c.b16 %v810, %v806
  %v1211 = vpack.c.b16 %v815, %v811
  %v1212 = vpack.c.b16 %v816, %v812
  %v1213 = vpack.c.b16 %v817, %v813
  %v1214 = vpack.c.b16 %v818, %v814
  %v1215 = vpack.c.b16 %v823, %v819
  %v1216 = vpack.c.b16 %v824, %v820
  %v1217 = vpack.c.b16 %v825, %v821
  %v1218 = vpack.c.b16 %v826, %v822
  %v1219 = vpack.c.b16 %v831, %v827
  %v1220 = vpack.c.b16 %v832, %v828
  %v1221 = vpack.c.b16 %v833, %v829
  %v1222 = vpack.c.b16 %v834, %v830
  %v1223 = vpack.c.b16 %v839, %v835
  %v1224 = vpack.c.b16 %v840, %v836
  %v1225 = vpack.c.b16 %v841, %v837
  %v1226 = vpack.c.b16 %v842, %v838
  %v1227 = vpack.c.b16 %v847, %v843
  %v1228 = vpack.c.b16 %v848, %v844
  %v1229 = vpack.c.b16 %v849, %v845
  %v1230 = vpack.c.b16 %v850, %v846
  %v1231 = vpack.c.b16 %v855, %v851
  %v1232 = vpack.c.b16 %v856, %v852
  %v1233 = vpack.c.b16 %v857, %v853
  %v1234 = vpack.c.b16 %v858, %v854
  %v1235 = vpack.c.b16 %v863, %v859
  %v1236 = vpack.c.b16 %v864, %v860
  %v1237 = vpack.c.b16 %v865, %v861
  %v1238 = vpack.c.b16 %v866, %v862
  %v1239 = vpack.c.b16 %v871, %v867
  %v1240 = vpack.c.b16 %v872, %v868
  %v1241 = vpack.c.b16 %v873, %v869
  %v1242 = vpack.c.b16 %v874, %v870
  %v1243 = vpack.c.b16 %v879, %v875
  %v1244 = vpack.c.b16 %v880, %v876
  %v1245 = vpack.c.b16 %v881, %v877
  %v1246 = vpack.c.b16 %v882, %v878
  %v1247 = vpack.c.b16 %v887, %v883
  %v1248 = vpack.c.b16 %v888, %v884
  %v1249 = vpack.c.b16 %v889, %v885
  %v1250 = vpack.c.b16 %v890, %v886
  %v1251 = vpack.c.b16 %v895, %v891
  %v1252 = vpack.c.b16 %v896, %v892
  %v1253 = vpack.c.b16 %v897, %v893
  %v1254 = vpack.c.b16 %v898, %v894
  %v1255 = vpack.c.b16 %v903, %v899
  %v1256 = vpack.c.b16 %v904, %v900
  %v1257 = vpack.c.b16 %v905, %v901
  %v1258 = vpack.c.b16 %v906, %v902
  %v1259 = vpack.c.b16 %v911, %v907
  %v1260 = vpack.c.b16 %v912, %v908
  %v1261 = vpack.c.b16 %v913, %v909
  %v1262 = vpack.c.b16 %v914, %v910
  %v1263 = vpack.c.b16 %v919, %v915
  %v1264 = vpack.c.b16 %v920, %v916
  %v1265 = vpack.c.b16 %v921, %v917
  %v1266 = vpack.c.b16 %v922, %v918
  %v1267 = vpack.c.b16 %v927, %v923
  %v1268 = vpack.c.b16 %v928, %v924
  %v1269 = vpack.c.b16 %v929, %v925
  %v1270 = vpack.c.b16 %v930, %v926
  %v1271 = vpack.c.b16 %v935, %v931
  %v1272 = vpack.c.b16 %v936, %v932
  %v1273 = vpack.c.b16 %v937, %v933
  %v1274 = vpack.c.b16 %v938, %v934
  %v1275 = vpack.c.b16 %v943, %v939
  %v1276 = vpack.c.b16 %v944, %v940
  %v1277 = vpack.c.b16 %v945, %v941
  %v1278 = vpack.c.b16 %v946, %v942
  %v1279 = vpack.c.b16 %v951, %v947
  %v1280 = vpack.c.b16 %v952, %v948
  %v1281 = vpack.c.b16 %v953, %v949
  %v1282 = vpack.c.b16 %v954, %v950
  %v1283 = vpack.c.b16 %v959, %v955
  %v1284 = vpack.c.b16 %v960, %v956
  %v1285 = vpack.c.b16 %v961, %v957
  %v1286 = vpack.c.b16 %v962, %v958
  %v1287 = vpack.c.b16 %v967, %v963
  %v1288 = vpack.c.b16 %v968, %v964
  %v1289 = vpack.c.b16 %v969, %v965
  %v1290 = vpack.c.b16 %v970, %v966
  %v1291 = vpack.c.b16 %v975, %v971
  %v1292 = vpack.c.b16 %v976, %v972
  %v1293 = vpack.c.b16 %v977, %v973
  %v1294 = vpack.c.b16 %v978, %v974
  %v1295 = vpack.c.b16 %v983, %v979
  %v1296 = vpack.c.b16 %v984, %v980
  %v1297 = vpack.c.b16 %v985, %v981
  %v1298 = vpack.c.b16 %v986, %v982
  %v1299 = vpack.c.b16 %v991, %v987
  %v1300 = vpack.c.b16 %v992, %v988
  %v1301 = vpack.c.b16 %v993, %v989
  %v1302 = vpack.c.b16 %v994, %v990
  %v1303 = vpack.c.b16 %v999, %v995
  %v1304 = vpack.c.b16 %v1000, %v996
  %v1305 = vpack.c.b16 %v1001, %v997
  %v1306 = vpack.c.b16 %v1002, %v998
  %v1307 = vpack.c.b16 %v1007, %v1003
  %v1308 = vpack.c.b16 %v1008, %v1004
  %v1309 = vpack.c.b16 %v1009, %v1005
  %v1310 = vpack.c.b16 %v1010, %v1006
  %v1311 = vpack.c.b16 %v1015, %v1011
  %v1312 = vpack.c.b16 %v1016, %v1012
  %v1313 = vpack.c.b16 %v1017, %v1013
  %v1314 = vpack.c.b16 %v1018, %v1014
  %v1315 = vpack.c.b16 %v1023, %v1019
  %v1316 = vpack.c.b16 %v1024, %v1020
  %v1317 = vpack.c.b16 %v1025, %v1021
  %v1318 = vpack.c.b16 %v1026, %v1022
  %v1319 = vpack.c.b16 %v1031, %v1027
  %v1320 = vpack.c.b16 %v1032, %v1028
  %v1321 = vpack.c.b16 %v1033, %v1029
  %v1322 = vpack.c.b16 %v1034, %v1030
  %v1323 = vpack.c.b16 %v1039, %v1035
  %v1324 = vpack.c.b16 %v1040, %v1036
  %v1325 = vpack.c.b16 %v1041, %v1037
  %v1326 = vpack.c.b16 %v1042, %v1038
  %v1327 = vpack.c.b16 %v1047, %v1043
  %v1328 = vpack.c.b16 %v1048, %v1044
  %v1329 = vpack.c.b16 %v1049, %v1045
  %v1330 = vpack.c.b16 %v1050, %v1046
  %v1331 = vpack.c.b16 %v1055, %v1051
  %v1332 = vpack.c.b16 %v1056, %v1052
  %v1333 = vpack.c.b16 %v1057, %v1053
  %v1334 = vpack.c.b16 %v1058, %v1054
  %v1335 = vpack.c.b16 %v1063, %v1059
  %v1336 = vpack.c.b16 %v1064, %v1060
  %v1337 = vpack.c.b16 %v1065, %v1061
  %v1338 = vpack.c.b16 %v1066, %v1062
  %v1339 = vpack.c.b16 %v1071, %v1067
  %v1340 = vpack.c.b16 %v1072, %v1068
  %v1341 = vpack.c.b16 %v1073, %v1069
  %v1342 = vpack.c.b16 %v1074, %v1070
  %v1343 = vpack.c.b16 %v1079, %v1075
  %v1344 = vpack.c.b16 %v1080, %v1076
  %v1345 = vpack.c.b16 %v1081, %v1077
  %v1346 = vpack.c.b16 %v1082, %v1078
  %v1347 = vpack.c.b16 %v1087, %v1083
  %v1348 = vpack.c.b16 %v1088, %v1084
  %v1349 = vpack.c.b16 %v1089, %v1085
  %v1350 = vpack.c.b16 %v1090, %v1086
  %v1351 = vpack.c.b16 %v1095, %v1091
  %v1352 = vpack.c.b16 %v1096, %v1092
  %v1353 = vpack.c.b16 %v1097, %v1093
  %v1354 = vpack.c.b16 %v1098, %v1094
  %1611 = vmatprep.subr.bf16.mxu0 %v1128
  %1612 = vmatpush1.bf16.msra.mxu0 %v1127
  %1613 = vmatprep.subr.bf16.mxu0 %v1124
  %1614 = vmatpush1.bf16.msra.mxu0 %v1123
  %1615 = vmatprep.subr.bf16.mxu0 %v1120
  %1616 = vmatpush1.bf16.msra.mxu0 %v1119
  %1617 = vmatprep.subr.bf16.mxu0 %v1116
  %1618 = vmatpush1.bf16.msra.mxu0 %v1115
  %1619 = vmatprep.subr.bf16.mxu0 %v1112
  %1620 = vmatpush1.bf16.msra.mxu0 %v1111
  %1621 = vmatprep.subr.bf16.mxu0 %v1108
  %1622 = vmatpush1.bf16.msra.mxu0 %v1107
  %1623 = vmatprep.subr.bf16.mxu0 %v1104
  %1624 = vmatpush1.bf16.msra.mxu0 %v1103
  %1625 = vmatprep.subr.bf16.mxu0 %v1100
  %1626 = vmatpush1.bf16.msra.mxu0 %v1099
  %1627 = vmatprep.subr.bf16.mxu0 %v1160
  %1628 = vmatpush2.bf16.msra.mxu0 %v1159
  %1629 = vmatprep.subr.bf16.mxu0 %v1156
  %1630 = vmatpush2.bf16.msra.mxu0 %v1155
  %1631 = vmatprep.subr.bf16.mxu0 %v1152
  %1632 = vmatpush2.bf16.msra.mxu0 %v1151
  %1633 = vmatprep.subr.bf16.mxu0 %v1148
  %1634 = vmatpush2.bf16.msra.mxu0 %v1147
  %1635 = vmatprep.subr.bf16.mxu0 %v1144
  %1636 = vmatpush2.bf16.msra.mxu0 %v1143
  %1637 = vmatprep.subr.bf16.mxu0 %v1140
  %1638 = vmatpush2.bf16.msra.mxu0 %v1139
  %1639 = vmatprep.subr.bf16.mxu0 %v1136
  %1640 = vmatpush2.bf16.msra.mxu0 %v1135
  %1641 = vmatprep.subr.bf16.mxu0 %v1132
  %1642 = vmatpush2.bf16.msra.mxu0 %v1131
  %1643 = vmatprep.mubr.bf16.mxu0 %v316
  %1644 = vmatmul.mubr.bf16.gmra.mxu0 %v315
  %v1645 = vpop.f32.mrf.mxu0
  %v1646 = vadd.f32 %v286, %v1645
  %v1647 = vpop.f32.mrf.mxu0
  %v1648 = vadd.f32 %v290, %v1647
  %v1649 = vpop.f32.mrf.mxu0
  %v1650 = vpop.f32.mrf.mxu0
  %1651 = vdwg.mxu0
  %1652 = vmatprep.subr.bf16.mxu0 %v1192
  %1653 = vmatpush1.bf16.msra.mxu0 %v1191
  %1654 = vmatprep.subr.bf16.mxu0 %v1188
  %1655 = vmatpush1.bf16.msra.mxu0 %v1187
  %1656 = vmatprep.subr.bf16.mxu0 %v1184
  %1657 = vmatpush1.bf16.msra.mxu0 %v1183
  %1658 = vmatprep.subr.bf16.mxu0 %v1180
  %1659 = vmatpush1.bf16.msra.mxu0 %v1179
  %1660 = vmatprep.subr.bf16.mxu0 %v1176
  %1661 = vmatpush1.bf16.msra.mxu0 %v1175
  %1662 = vmatprep.subr.bf16.mxu0 %v1172
  %1663 = vmatpush1.bf16.msra.mxu0 %v1171
  %1664 = vmatprep.subr.bf16.mxu0 %v1168
  %1665 = vmatpush1.bf16.msra.mxu0 %v1167
  %1666 = vmatprep.subr.bf16.mxu0 %v1164
  %1667 = vmatpush1.bf16.msra.mxu0 %v1163
  %1668 = vmatprep.subr.bf16.mxu0 %v1224
  %1669 = vmatpush2.bf16.msra.mxu0 %v1223
  %1670 = vmatprep.subr.bf16.mxu0 %v1220
  %1671 = vmatpush2.bf16.msra.mxu0 %v1219
  %1672 = vmatprep.subr.bf16.mxu0 %v1216
  %1673 = vmatpush2.bf16.msra.mxu0 %v1215
  %1674 = vmatprep.subr.bf16.mxu0 %v1212
  %1675 = vmatpush2.bf16.msra.mxu0 %v1211
  %1676 = vmatprep.subr.bf16.mxu0 %v1208
  %1677 = vmatpush2.bf16.msra.mxu0 %v1207
  %1678 = vmatprep.subr.bf16.mxu0 %v1204
  %1679 = vmatpush2.bf16.msra.mxu0 %v1203
  %1680 = vmatprep.subr.bf16.mxu0 %v1200
  %1681 = vmatpush2.bf16.msra.mxu0 %v1199
  %1682 = vmatprep.subr.bf16.mxu0 %v1196
  %1683 = vmatpush2.bf16.msra.mxu0 %v1195
  %1684 = vmatprep.mubr.bf16.mxu0 %v318
  %1685 = vmatmul.mubr.bf16.gmra.mxu0 %v317
  %v1686 = vpop.f32.mrf.mxu0
  %v1687 = vadd.f32 %v1646, %v1686
  %v1688 = vpop.f32.mrf.mxu0
  %v1689 = vadd.f32 %v1648, %v1688
  %v1690 = vpop.f32.mrf.mxu0
  %v1691 = vpop.f32.mrf.mxu0
  %1692 = vdwg.mxu0
  %1693 = vmatprep.subr.bf16.mxu0 %v1256
  %1694 = vmatpush1.bf16.msra.mxu0 %v1255
  %1695 = vmatprep.subr.bf16.mxu0 %v1252
  %1696 = vmatpush1.bf16.msra.mxu0 %v1251
  %1697 = vmatprep.subr.bf16.mxu0 %v1248
  %1698 = vmatpush1.bf16.msra.mxu0 %v1247
  %1699 = vmatprep.subr.bf16.mxu0 %v1244
  %1700 = vmatpush1.bf16.msra.mxu0 %v1243
  %1701 = vmatprep.subr.bf16.mxu0 %v1240
  %1702 = vmatpush1.bf16.msra.mxu0 %v1239
  %1703 = vmatprep.subr.bf16.mxu0 %v1236
  %1704 = vmatpush1.bf16.msra.mxu0 %v1235
  %1705 = vmatprep.subr.bf16.mxu0 %v1232
  %1706 = vmatpush1.bf16.msra.mxu0 %v1231
  %1707 = vmatprep.subr.bf16.mxu0 %v1228
  %1708 = vmatpush1.bf16.msra.mxu0 %v1227
  %1709 = vmatprep.subr.bf16.mxu0 %v1288
  %1710 = vmatpush2.bf16.msra.mxu0 %v1287
  %1711 = vmatprep.subr.bf16.mxu0 %v1284
  %1712 = vmatpush2.bf16.msra.mxu0 %v1283
  %1713 = vmatprep.subr.bf16.mxu0 %v1280
  %1714 = vmatpush2.bf16.msra.mxu0 %v1279
  %1715 = vmatprep.subr.bf16.mxu0 %v1276
  %1716 = vmatpush2.bf16.msra.mxu0 %v1275
  %1717 = vmatprep.subr.bf16.mxu0 %v1272
  %1718 = vmatpush2.bf16.msra.mxu0 %v1271
  %1719 = vmatprep.subr.bf16.mxu0 %v1268
  %1720 = vmatpush2.bf16.msra.mxu0 %v1267
  %1721 = vmatprep.subr.bf16.mxu0 %v1264
  %1722 = vmatpush2.bf16.msra.mxu0 %v1263
  %1723 = vmatprep.subr.bf16.mxu0 %v1260
  %1724 = vmatpush2.bf16.msra.mxu0 %v1259
  %1725 = vmatprep.mubr.bf16.mxu0 %v320
  %1726 = vmatmul.mubr.bf16.gmra.mxu0 %v319
  %v1727 = vpop.f32.mrf.mxu0
  %v1728 = vadd.f32 %v1687, %v1727
  %v1729 = vpop.f32.mrf.mxu0
  %v1730 = vadd.f32 %v1689, %v1729
  %v1731 = vpop.f32.mrf.mxu0
  %v1732 = vpop.f32.mrf.mxu0
  %1733 = vdwg.mxu0
  %1734 = vmatprep.subr.bf16.mxu0 %v1320
  %1735 = vmatpush1.bf16.msra.mxu0 %v1319
  %1736 = vmatprep.subr.bf16.mxu0 %v1316
  %1737 = vmatpush1.bf16.msra.mxu0 %v1315
  %1738 = vmatprep.subr.bf16.mxu0 %v1312
  %1739 = vmatpush1.bf16.msra.mxu0 %v1311
  %1740 = vmatprep.subr.bf16.mxu0 %v1308
  %1741 = vmatpush1.bf16.msra.mxu0 %v1307
  %1742 = vmatprep.subr.bf16.mxu0 %v1304
  %1743 = vmatpush1.bf16.msra.mxu0 %v1303
  %1744 = vmatprep.subr.bf16.mxu0 %v1300
  %1745 = vmatpush1.bf16.msra.mxu0 %v1299
  %1746 = vmatprep.subr.bf16.mxu0 %v1296
  %1747 = vmatpush1.bf16.msra.mxu0 %v1295
  %1748 = vmatprep.subr.bf16.mxu0 %v1292
  %1749 = vmatpush1.bf16.msra.mxu0 %v1291
  %1750 = vmatprep.subr.bf16.mxu0 %v1352
  %1751 = vmatpush2.bf16.msra.mxu0 %v1351
  %1752 = vmatprep.subr.bf16.mxu0 %v1348
  %1753 = vmatpush2.bf16.msra.mxu0 %v1347
  %1754 = vmatprep.subr.bf16.mxu0 %v1344
  %1755 = vmatpush2.bf16.msra.mxu0 %v1343
  %1756 = vmatprep.subr.bf16.mxu0 %v1340
  %1757 = vmatpush2.bf16.msra.mxu0 %v1339
  %1758 = vmatprep.subr.bf16.mxu0 %v1336
  %1759 = vmatpush2.bf16.msra.mxu0 %v1335
  %1760 = vmatprep.subr.bf16.mxu0 %v1332
  %1761 = vmatpush2.bf16.msra.mxu0 %v1331
  %1762 = vmatprep.subr.bf16.mxu0 %v1328
  %1763 = vmatpush2.bf16.msra.mxu0 %v1327
  %1764 = vmatprep.subr.bf16.mxu0 %v1324
  %1765 = vmatpush2.bf16.msra.mxu0 %v1323
  %1766 = vmatprep.mubr.bf16.mxu0 %v322
  %1767 = vmatmul.mubr.bf16.gmra.mxu0 %v321
  %v1768 = vpop.f32.mrf.mxu0
  %v1769 = vadd.f32 %v1728, %v1768
  %v1770 = vpop.f32.mrf.mxu0
  %v1771 = vadd.f32 %v1730, %v1770
  %v1772 = vpop.f32.mrf.mxu0
  %v1773 = vpop.f32.mrf.mxu0
  %1774 = vdwg.mxu0
  %1775 = vmatprep.subr.bf16.mxu0 %v1130
  %1776 = vmatpush1.bf16.msra.mxu0 %v1129
  %1777 = vmatprep.subr.bf16.mxu0 %v1126
  %1778 = vmatpush1.bf16.msra.mxu0 %v1125
  %1779 = vmatprep.subr.bf16.mxu0 %v1122
  %1780 = vmatpush1.bf16.msra.mxu0 %v1121
  %1781 = vmatprep.subr.bf16.mxu0 %v1118
  %1782 = vmatpush1.bf16.msra.mxu0 %v1117
  %1783 = vmatprep.subr.bf16.mxu0 %v1114
  %1784 = vmatpush1.bf16.msra.mxu0 %v1113
  %1785 = vmatprep.subr.bf16.mxu0 %v1110
  %1786 = vmatpush1.bf16.msra.mxu0 %v1109
  %1787 = vmatprep.subr.bf16.mxu0 %v1106
  %1788 = vmatpush1.bf16.msra.mxu0 %v1105
  %1789 = vmatprep.subr.bf16.mxu0 %v1102
  %1790 = vmatpush1.bf16.msra.mxu0 %v1101
  %1791 = vmatprep.subr.bf16.mxu0 %v1162
  %1792 = vmatpush2.bf16.msra.mxu0 %v1161
  %1793 = vmatprep.subr.bf16.mxu0 %v1158
  %1794 = vmatpush2.bf16.msra.mxu0 %v1157
  %1795 = vmatprep.subr.bf16.mxu0 %v1154
  %1796 = vmatpush2.bf16.msra.mxu0 %v1153
  %1797 = vmatprep.subr.bf16.mxu0 %v1150
  %1798 = vmatpush2.bf16.msra.mxu0 %v1149
  %1799 = vmatprep.subr.bf16.mxu0 %v1146
  %1800 = vmatpush2.bf16.msra.mxu0 %v1145
  %1801 = vmatprep.subr.bf16.mxu0 %v1142
  %1802 = vmatpush2.bf16.msra.mxu0 %v1141
  %1803 = vmatprep.subr.bf16.mxu0 %v1138
  %1804 = vmatpush2.bf16.msra.mxu0 %v1137
  %1805 = vmatprep.subr.bf16.mxu0 %v1134
  %1806 = vmatpush2.bf16.msra.mxu0 %v1133
  %1807 = vmatprep.mubr.bf16.mxu0 %v316
  %1808 = vmatmul.mubr.bf16.gmra.mxu0 %v315
  %v1809 = vpop.f32.mrf.mxu0
  %v1810 = vadd.f32 %v294, %v1809
  %v1811 = vpop.f32.mrf.mxu0
  %v1812 = vadd.f32 %v298, %v1811
  %v1813 = vpop.f32.mrf.mxu0
  %v1814 = vpop.f32.mrf.mxu0
  %1815 = vdwg.mxu0
  %1816 = vmatprep.subr.bf16.mxu0 %v1194
  %1817 = vmatpush1.bf16.msra.mxu0 %v1193
  %1818 = vmatprep.subr.bf16.mxu0 %v1190
  %1819 = vmatpush1.bf16.msra.mxu0 %v1189
  %1820 = vmatprep.subr.bf16.mxu0 %v1186
  %1821 = vmatpush1.bf16.msra.mxu0 %v1185
  %1822 = vmatprep.subr.bf16.mxu0 %v1182
  %1823 = vmatpush1.bf16.msra.mxu0 %v1181
  %1824 = vmatprep.subr.bf16.mxu0 %v1178
  %1825 = vmatpush1.bf16.msra.mxu0 %v1177
  %1826 = vmatprep.subr.bf16.mxu0 %v1174
  %1827 = vmatpush1.bf16.msra.mxu0 %v1173
  %1828 = vmatprep.subr.bf16.mxu0 %v1170
  %1829 = vmatpush1.bf16.msra.mxu0 %v1169
  %1830 = vmatprep.subr.bf16.mxu0 %v1166
  %1831 = vmatpush1.bf16.msra.mxu0 %v1165
  %1832 = vmatprep.subr.bf16.mxu0 %v1226
  %1833 = vmatpush2.bf16.msra.mxu0 %v1225
  %1834 = vmatprep.subr.bf16.mxu0 %v1222
  %1835 = vmatpush2.bf16.msra.mxu0 %v1221
  %1836 = vmatprep.subr.bf16.mxu0 %v1218
  %1837 = vmatpush2.bf16.msra.mxu0 %v1217
  %1838 = vmatprep.subr.bf16.mxu0 %v1214
  %1839 = vmatpush2.bf16.msra.mxu0 %v1213
  %1840 = vmatprep.subr.bf16.mxu0 %v1210
  %1841 = vmatpush2.bf16.msra.mxu0 %v1209
  %1842 = vmatprep.subr.bf16.mxu0 %v1206
  %1843 = vmatpush2.bf16.msra.mxu0 %v1205
  %1844 = vmatprep.subr.bf16.mxu0 %v1202
  %1845 = vmatpush2.bf16.msra.mxu0 %v1201
  %1846 = vmatprep.subr.bf16.mxu0 %v1198
  %1847 = vmatpush2.bf16.msra.mxu0 %v1197
  %1848 = vmatprep.mubr.bf16.mxu0 %v318
  %1849 = vmatmul.mubr.bf16.gmra.mxu0 %v317
  %v1850 = vpop.f32.mrf.mxu0
  %v1851 = vadd.f32 %v1810, %v1850
  %v1852 = vpop.f32.mrf.mxu0
  %v1853 = vadd.f32 %v1812, %v1852
  %v1854 = vpop.f32.mrf.mxu0
  %v1855 = vpop.f32.mrf.mxu0
  %1856 = vdwg.mxu0
  %1857 = vmatprep.subr.bf16.mxu0 %v1258
  %1858 = vmatpush1.bf16.msra.mxu0 %v1257
  %1859 = vmatprep.subr.bf16.mxu0 %v1254
  %1860 = vmatpush1.bf16.msra.mxu0 %v1253
  %1861 = vmatprep.subr.bf16.mxu0 %v1250
  %1862 = vmatpush1.bf16.msra.mxu0 %v1249
  %1863 = vmatprep.subr.bf16.mxu0 %v1246
  %1864 = vmatpush1.bf16.msra.mxu0 %v1245
  %1865 = vmatprep.subr.bf16.mxu0 %v1242
  %1866 = vmatpush1.bf16.msra.mxu0 %v1241
  %1867 = vmatprep.subr.bf16.mxu0 %v1238
  %1868 = vmatpush1.bf16.msra.mxu0 %v1237
  %1869 = vmatprep.subr.bf16.mxu0 %v1234
  %1870 = vmatpush1.bf16.msra.mxu0 %v1233
  %1871 = vmatprep.subr.bf16.mxu0 %v1230
  %1872 = vmatpush1.bf16.msra.mxu0 %v1229
  %1873 = vmatprep.subr.bf16.mxu0 %v1290
  %1874 = vmatpush2.bf16.msra.mxu0 %v1289
  %1875 = vmatprep.subr.bf16.mxu0 %v1286
  %1876 = vmatpush2.bf16.msra.mxu0 %v1285
  %1877 = vmatprep.subr.bf16.mxu0 %v1282
  %1878 = vmatpush2.bf16.msra.mxu0 %v1281
  %1879 = vmatprep.subr.bf16.mxu0 %v1278
  %1880 = vmatpush2.bf16.msra.mxu0 %v1277
  %1881 = vmatprep.subr.bf16.mxu0 %v1274
  %1882 = vmatpush2.bf16.msra.mxu0 %v1273
  %1883 = vmatprep.subr.bf16.mxu0 %v1270
  %1884 = vmatpush2.bf16.msra.mxu0 %v1269
  %1885 = vmatprep.subr.bf16.mxu0 %v1266
  %1886 = vmatpush2.bf16.msra.mxu0 %v1265
  %1887 = vmatprep.subr.bf16.mxu0 %v1262
  %1888 = vmatpush2.bf16.msra.mxu0 %v1261
  %1889 = vmatprep.mubr.bf16.mxu0 %v320
  %1890 = vmatmul.mubr.bf16.gmra.mxu0 %v319
  %v1891 = vpop.f32.mrf.mxu0
  %v1892 = vadd.f32 %v1851, %v1891
  %v1893 = vpop.f32.mrf.mxu0
  %v1894 = vadd.f32 %v1853, %v1893
  %v1895 = vpop.f32.mrf.mxu0
  %v1896 = vpop.f32.mrf.mxu0
  %1897 = vdwg.mxu0
  %1898 = vmatprep.subr.bf16.mxu0 %v1322
  %1899 = vmatpush1.bf16.msra.mxu0 %v1321
  %1900 = vmatprep.subr.bf16.mxu0 %v1318
  %1901 = vmatpush1.bf16.msra.mxu0 %v1317
  %1902 = vmatprep.subr.bf16.mxu0 %v1314
  %1903 = vmatpush1.bf16.msra.mxu0 %v1313
  %1904 = vmatprep.subr.bf16.mxu0 %v1310
  %1905 = vmatpush1.bf16.msra.mxu0 %v1309
  %1906 = vmatprep.subr.bf16.mxu0 %v1306
  %1907 = vmatpush1.bf16.msra.mxu0 %v1305
  %1908 = vmatprep.subr.bf16.mxu0 %v1302
  %1909 = vmatpush1.bf16.msra.mxu0 %v1301
  %1910 = vmatprep.subr.bf16.mxu0 %v1298
  %1911 = vmatpush1.bf16.msra.mxu0 %v1297
  %1912 = vmatprep.subr.bf16.mxu0 %v1294
  %1913 = vmatpush1.bf16.msra.mxu0 %v1293
  %1914 = vmatprep.subr.bf16.mxu0 %v1354
  %1915 = vmatpush2.bf16.msra.mxu0 %v1353
  %1916 = vmatprep.subr.bf16.mxu0 %v1350
  %1917 = vmatpush2.bf16.msra.mxu0 %v1349
  %1918 = vmatprep.subr.bf16.mxu0 %v1346
  %1919 = vmatpush2.bf16.msra.mxu0 %v1345
  %1920 = vmatprep.subr.bf16.mxu0 %v1342
  %1921 = vmatpush2.bf16.msra.mxu0 %v1341
  %1922 = vmatprep.subr.bf16.mxu0 %v1338
  %1923 = vmatpush2.bf16.msra.mxu0 %v1337
  %1924 = vmatprep.subr.bf16.mxu0 %v1334
  %1925 = vmatpush2.bf16.msra.mxu0 %v1333
  %1926 = vmatprep.subr.bf16.mxu0 %v1330
  %1927 = vmatpush2.bf16.msra.mxu0 %v1329
  %1928 = vmatprep.subr.bf16.mxu0 %v1326
  %1929 = vmatpush2.bf16.msra.mxu0 %v1325
  %1930 = vmatprep.mubr.bf16.mxu0 %v322
  %1931 = vmatmul.mubr.bf16.gmra.mxu0 %v321
  %v1932 = vpop.f32.mrf.mxu0
  %v1933 = vadd.f32 %v1892, %v1932
  %v1934 = vpop.f32.mrf.mxu0
  %v1935 = vadd.f32 %v1894, %v1934
  %v1936 = vpop.f32.mrf.mxu0
  %v1937 = vpop.f32.mrf.mxu0
  %1938 = vdwg.mxu0
  %v1939 = vmax.f32 %v1769, 0.0
  %v1940 = vmax.f32 %v1771, 0.0
  %v1941 = vmax.f32 %v1933, 0.0
  %v1942 = vmax.f32 %v1935, 0.0
  %v1943 = vpack.c.bf16 %v1939, %v1939
  %v1944 = vpack.c.bf16 %v1940, %v1940
  %v1945 = vpack.c.bf16 %v1941, %v1941
  %v1946 = vpack.c.bf16 %v1942, %v1942
  %v1947 = vld [vmem:[%s3] sm:$0xf]
  %v1948 = vld [vmem:[%s3 + $0x4] sm:$0xf]
  %v1949 = vld [vmem:[%s3 + $0x8] sm:$0xf]
  %v1950 = vld [vmem:[%s3 + $0xc] sm:$0xf]
  %v1951 = vld [vmem:[%s3 + $0x10] sm:$0xf]
  %v1952 = vld [vmem:[%s3 + $0x14] sm:$0xf]
  %v1953 = vld [vmem:[%s3 + $0x18] sm:$0xf]
  %v1954 = vld [vmem:[%s3 + $0x1c] sm:$0xf]
  %v1955 = vld [vmem:[%s3 + $0x20] sm:$0xf]
  %v1956 = vld [vmem:[%s3 + $0x24] sm:$0xf]
  %v1957 = vld [vmem:[%s3 + $0x28] sm:$0xf]
  %v1958 = vld [vmem:[%s3 + $0x2c] sm:$0xf]
  %v1959 = vld [vmem:[%s3 + $0x30] sm:$0xf]
  %v1960 = vld [vmem:[%s3 + $0x34] sm:$0xf]
  %v1961 = vld [vmem:[%s3 + $0x38] sm:$0xf]
  %v1962 = vld [vmem:[%s3 + $0x3c] sm:$0xf]
  %v1963 = vld [vmem:[%s3 + $0x40] sm:$0xf]
  %v1964 = vld [vmem:[%s3 + $0x44] sm:$0xf]
  %v1965 = vld [vmem:[%s3 + $0x48] sm:$0xf]
  %v1966 = vld [vmem:[%s3 + $0x4c] sm:$0xf]
  %v1967 = vld [vmem:[%s3 + $0x50] sm:$0xf]
  %v1968 = vld [vmem:[%s3 + $0x54] sm:$0xf]
  %v1969 = vld [vmem:[%s3 + $0x58] sm:$0xf]
  %v1970 = vld [vmem:[%s3 + $0x5c] sm:$0xf]
  %v1971 = vld [vmem:[%s3 + $0x60] sm:$0xf]
  %v1972 = vld [vmem:[%s3 + $0x64] sm:$0xf]
  %v1973 = vld [vmem:[%s3 + $0x68] sm:$0xf]
  %v1974 = vld [vmem:[%s3 + $0x6c] sm:$0xf]
  %v1975 = vld [vmem:[%s3 + $0x70] sm:$0xf]
  %v1976 = vld [vmem:[%s3 + $0x74] sm:$0xf]
  %v1977 = vld [vmem:[%s3 + $0x78] sm:$0xf]
  %v1978 = vld [vmem:[%s3 + $0x7c] sm:$0xf]
  %v1979 = vld [vmem:[%s3 + $0x80] sm:$0xf]
  %v1980 = vld [vmem:[%s3 + $0x84] sm:$0xf]
  %v1981 = vld [vmem:[%s3 + $0x88] sm:$0xf]
  %v1982 = vld [vmem:[%s3 + $0x8c] sm:$0xf]
  %v1983 = vld [vmem:[%s3 + $0x90] sm:$0xf]
  %v1984 = vld [vmem:[%s3 + $0x94] sm:$0xf]
  %v1985 = vld [vmem:[%s3 + $0x98] sm:$0xf]
  %v1986 = vld [vmem:[%s3 + $0x9c] sm:$0xf]
  %v1987 = vld [vmem:[%s3 + $0xa0] sm:$0xf]
  %v1988 = vld [vmem:[%s3 + $0xa4] sm:$0xf]
  %v1989 = vld [vmem:[%s3 + $0xa8] sm:$0xf]
  %v1990 = vld [vmem:[%s3 + $0xac] sm:$0xf]
  %v1991 = vld [vmem:[%s3 + $0xb0] sm:$0xf]
  %v1992 = vld [vmem:[%s3 + $0xb4] sm:$0xf]
  %v1993 = vld [vmem:[%s3 + $0xb8] sm:$0xf]
  %v1994 = vld [vmem:[%s3 + $0xbc] sm:$0xf]
  %v1995 = vld [vmem:[%s3 + $0xc0] sm:$0xf]
  %v1996 = vld [vmem:[%s3 + $0xc4] sm:$0xf]
  %v1997 = vld [vmem:[%s3 + $0xc8] sm:$0xf]
  %v1998 = vld [vmem:[%s3 + $0xcc] sm:$0xf]
  %v1999 = vld [vmem:[%s3 + $0xd0] sm:$0xf]
  %v2000 = vld [vmem:[%s3 + $0xd4] sm:$0xf]
  %v2001 = vld [vmem:[%s3 + $0xd8] sm:$0xf]
  %v2002 = vld [vmem:[%s3 + $0xdc] sm:$0xf]
  %v2003 = vld [vmem:[%s3 + $0xe0] sm:$0xf]
  %v2004 = vld [vmem:[%s3 + $0xe4] sm:$0xf]
  %v2005 = vld [vmem:[%s3 + $0xe8] sm:$0xf]
  %v2006 = vld [vmem:[%s3 + $0xec] sm:$0xf]
  %v2007 = vld [vmem:[%s3 + $0xf0] sm:$0xf]
  %v2008 = vld [vmem:[%s3 + $0xf4] sm:$0xf]
  %v2009 = vld [vmem:[%s3 + $0xf8] sm:$0xf]
  %v2010 = vld [vmem:[%s3 + $0xfc] sm:$0xf]
  %v2011 = vld [vmem:[%s4] sm:$0x1]
  %v2013 = vlaneseq
  %v2014 = vshrl.u32 %v2013, 7
  %v2015 = vsub.s32 0, %v2014
  %v2016 = vrot.slane %v2011, %v2015
  %v2082 = vunpack.c.l.b16 %v1947
  %v2083 = vunpack.c.l.b16 %v1948
  %v2084 = vunpack.c.l.b16 %v1949
  %v2085 = vunpack.c.l.b16 %v1950
  %v2086 = vunpack.c.l.b16 %v1951
  %v2087 = vunpack.c.l.b16 %v1952
  %v2088 = vunpack.c.l.b16 %v1953
  %v2089 = vunpack.c.l.b16 %v1954
  %v2090 = vunpack.c.l.b16 %v1955
  %v2091 = vunpack.c.l.b16 %v1956
  %v2092 = vunpack.c.l.b16 %v1957
  %v2093 = vunpack.c.l.b16 %v1958
  %v2094 = vunpack.c.l.b16 %v1959
  %v2095 = vunpack.c.l.b16 %v1960
  %v2096 = vunpack.c.l.b16 %v1961
  %v2097 = vunpack.c.l.b16 %v1962
  %v2098 = vunpack.c.l.b16 %v1963
  %v2099 = vunpack.c.l.b16 %v1964
  %v2100 = vunpack.c.l.b16 %v1965
  %v2101 = vunpack.c.l.b16 %v1966
  %v2102 = vunpack.c.l.b16 %v1967
  %v2103 = vunpack.c.l.b16 %v1968
  %v2104 = vunpack.c.l.b16 %v1969
  %v2105 = vunpack.c.l.b16 %v1970
  %v2106 = vunpack.c.l.b16 %v1971
  %v2107 = vunpack.c.l.b16 %v1972
  %v2108 = vunpack.c.l.b16 %v1973
  %v2109 = vunpack.c.l.b16 %v1974
  %v2110 = vunpack.c.l.b16 %v1975
  %v2111 = vunpack.c.l.b16 %v1976
  %v2112 = vunpack.c.l.b16 %v1977
  %v2113 = vunpack.c.l.b16 %v1978
  %v2114 = vunpack.c.l.b16 %v1979
  %v2115 = vunpack.c.l.b16 %v1980
  %v2116 = vunpack.c.l.b16 %v1981
  %v2117 = vunpack.c.l.b16 %v1982
  %v2118 = vunpack.c.l.b16 %v1983
  %v2119 = vunpack.c.l.b16 %v1984
  %v2120 = vunpack.c.l.b16 %v1985
  %v2121 = vunpack.c.l.b16 %v1986
  %v2122 = vunpack.c.l.b16 %v1987
  %v2123 = vunpack.c.l.b16 %v1988
  %v2124 = vunpack.c.l.b16 %v1989
  %v2125 = vunpack.c.l.b16 %v1990
  %v2126 = vunpack.c.l.b16 %v1991
  %v2127 = vunpack.c.l.b16 %v1992
  %v2128 = vunpack.c.l.b16 %v1993
  %v2129 = vunpack.c.l.b16 %v1994
  %v2130 = vunpack.c.l.b16 %v1995
  %v2131 = vunpack.c.l.b16 %v1996
  %v2132 = vunpack.c.l.b16 %v1997
  %v2133 = vunpack.c.l.b16 %v1998
  %v2134 = vunpack.c.l.b16 %v1999
  %v2135 = vunpack.c.l.b16 %v2000
  %v2136 = vunpack.c.l.b16 %v2001
  %v2137 = vunpack.c.l.b16 %v2002
  %v2138 = vunpack.c.l.b16 %v2003
  %v2139 = vunpack.c.l.b16 %v2004
  %v2140 = vunpack.c.l.b16 %v2005
  %v2141 = vunpack.c.l.b16 %v2006
  %v2142 = vunpack.c.l.b16 %v2007
  %v2143 = vunpack.c.l.b16 %v2008
  %v2144 = vunpack.c.l.b16 %v2009
  %v2145 = vunpack.c.l.b16 %v2010
  %v2146 = vpack.c.b16 %v2083, %v2082
  %v2147 = vpack.c.b16 %v2085, %v2084
  %v2148 = vpack.c.b16 %v2087, %v2086
  %v2149 = vpack.c.b16 %v2089, %v2088
  %v2150 = vpack.c.b16 %v2091, %v2090
  %v2151 = vpack.c.b16 %v2093, %v2092
  %v2152 = vpack.c.b16 %v2095, %v2094
  %v2153 = vpack.c.b16 %v2097, %v2096
  %v2154 = vpack.c.b16 %v2099, %v2098
  %v2155 = vpack.c.b16 %v2101, %v2100
  %v2156 = vpack.c.b16 %v2103, %v2102
  %v2157 = vpack.c.b16 %v2105, %v2104
  %v2158 = vpack.c.b16 %v2107, %v2106
  %v2159 = vpack.c.b16 %v2109, %v2108
  %v2160 = vpack.c.b16 %v2111, %v2110
  %v2161 = vpack.c.b16 %v2113, %v2112
  %v2162 = vpack.c.b16 %v2115, %v2114
  %v2163 = vpack.c.b16 %v2117, %v2116
  %v2164 = vpack.c.b16 %v2119, %v2118
  %v2165 = vpack.c.b16 %v2121, %v2120
  %v2166 = vpack.c.b16 %v2123, %v2122
  %v2167 = vpack.c.b16 %v2125, %v2124
  %v2168 = vpack.c.b16 %v2127, %v2126
  %v2169 = vpack.c.b16 %v2129, %v2128
  %v2170 = vpack.c.b16 %v2131, %v2130
  %v2171 = vpack.c.b16 %v2133, %v2132
  %v2172 = vpack.c.b16 %v2135, %v2134
  %v2173 = vpack.c.b16 %v2137, %v2136
  %v2174 = vpack.c.b16 %v2139, %v2138
  %v2175 = vpack.c.b16 %v2141, %v2140
  %v2176 = vpack.c.b16 %v2143, %v2142
  %v2177 = vpack.c.b16 %v2145, %v2144
  %2210 = vmatprep.subr.bf16.mxu0 0
  %2211 = vmatpush1.bf16.msra.mxu0 %v2153
  %2212 = vmatprep.subr.bf16.mxu0 0
  %2213 = vmatpush1.bf16.msra.mxu0 %v2152
  %2214 = vmatprep.subr.bf16.mxu0 0
  %2215 = vmatpush1.bf16.msra.mxu0 %v2151
  %2216 = vmatprep.subr.bf16.mxu0 0
  %2217 = vmatpush1.bf16.msra.mxu0 %v2150
  %2218 = vmatprep.subr.bf16.mxu0 0
  %2219 = vmatpush1.bf16.msra.mxu0 %v2149
  %2220 = vmatprep.subr.bf16.mxu0 0
  %2221 = vmatpush1.bf16.msra.mxu0 %v2148
  %2222 = vmatprep.subr.bf16.mxu0 0
  %2223 = vmatpush1.bf16.msra.mxu0 %v2147
  %2224 = vmatprep.subr.bf16.mxu0 0
  %2225 = vmatpush1.bf16.msra.mxu0 %v2146
  %2226 = vmatprep.subr.bf16.mxu0 0
  %2227 = vmatpush2.bf16.msra.mxu0 %v2161
  %2228 = vmatprep.subr.bf16.mxu0 0
  %2229 = vmatpush2.bf16.msra.mxu0 %v2160
  %2230 = vmatprep.subr.bf16.mxu0 0
  %2231 = vmatpush2.bf16.msra.mxu0 %v2159
  %2232 = vmatprep.subr.bf16.mxu0 0
  %2233 = vmatpush2.bf16.msra.mxu0 %v2158
  %2234 = vmatprep.subr.bf16.mxu0 0
  %2235 = vmatpush2.bf16.msra.mxu0 %v2157
  %2236 = vmatprep.subr.bf16.mxu0 0
  %2237 = vmatpush2.bf16.msra.mxu0 %v2156
  %2238 = vmatprep.subr.bf16.mxu0 0
  %2239 = vmatpush2.bf16.msra.mxu0 %v2155
  %2240 = vmatprep.subr.bf16.mxu0 0
  %2241 = vmatpush2.bf16.msra.mxu0 %v2154
  %2242 = vmatprep.mubr.bf16.mxu0 %v1944
  %2243 = vmatmul.mubr.bf16.gmra.mxu0 %v1943
  %v2244 = vpop.f32.mrf.mxu0
  %v2245 = vadd.f32 %v2016, %v2244
  %v2246 = vpop.f32.mrf.mxu0
  %v2247 = vpop.f32.mrf.mxu0
  %v2248 = vpop.f32.mrf.mxu0
  %2249 = vdwg.mxu0
  %2250 = vmatprep.subr.bf16.mxu0 0
  %2251 = vmatpush1.bf16.msra.mxu0 %v2169
  %2252 = vmatprep.subr.bf16.mxu0 0
  %2253 = vmatpush1.bf16.msra.mxu0 %v2168
  %2254 = vmatprep.subr.bf16.mxu0 0
  %2255 = vmatpush1.bf16.msra.mxu0 %v2167
  %2256 = vmatprep.subr.bf16.mxu0 0
  %2257 = vmatpush1.bf16.msra.mxu0 %v2166
  %2258 = vmatprep.subr.bf16.mxu0 0
  %2259 = vmatpush1.bf16.msra.mxu0 %v2165
  %2260 = vmatprep.subr.bf16.mxu0 0
  %2261 = vmatpush1.bf16.msra.mxu0 %v2164
  %2262 = vmatprep.subr.bf16.mxu0 0
  %2263 = vmatpush1.bf16.msra.mxu0 %v2163
  %2264 = vmatprep.subr.bf16.mxu0 0
  %2265 = vmatpush1.bf16.msra.mxu0 %v2162
  %2266 = vmatprep.subr.bf16.mxu0 0
  %2267 = vmatpush2.bf16.msra.mxu0 %v2177
  %2268 = vmatprep.subr.bf16.mxu0 0
  %2269 = vmatpush2.bf16.msra.mxu0 %v2176
  %2270 = vmatprep.subr.bf16.mxu0 0
  %2271 = vmatpush2.bf16.msra.mxu0 %v2175
  %2272 = vmatprep.subr.bf16.mxu0 0
  %2273 = vmatpush2.bf16.msra.mxu0 %v2174
  %2274 = vmatprep.subr.bf16.mxu0 0
  %2275 = vmatpush2.bf16.msra.mxu0 %v2173
  %2276 = vmatprep.subr.bf16.mxu0 0
  %2277 = vmatpush2.bf16.msra.mxu0 %v2172
  %2278 = vmatprep.subr.bf16.mxu0 0
  %2279 = vmatpush2.bf16.msra.mxu0 %v2171
  %2280 = vmatprep.subr.bf16.mxu0 0
  %2281 = vmatpush2.bf16.msra.mxu0 %v2170
  %2282 = vmatprep.mubr.bf16.mxu0 %v1946
  %2283 = vmatmul.mubr.bf16.gmra.mxu0 %v1945
  %v2284 = vpop.f32.mrf.mxu0
  %v2285 = vadd.f32 %v2245, %v2284
  %v2286 = vpop.f32.mrf.mxu0
  %v2287 = vpop.f32.mrf.mxu0
  %v2288 = vpop.f32.mrf.mxu0
  %2289 = vdwg.mxu0
  %2290 = vst [vmem:[%s5] sm:$0xff] %v2285
  // Predicated region
  $region22: #{cnn_forward.5} parent=0 // pred_check
    _
  $region23: #{cnn_forward.5} parent=0 // pred_check_branch
    %2292 = sbr.rel (0) target = $region25
  $region24: #{cnn_forward.5} parent=0 // pred_region
    _
  $region25: #{cnn_forward.5} parent=0 // pred_fallthru
    _
  // Predicated region
  $region26: #{cnn_forward.5} parent=0 // pred_check
    _
  $region27: #{cnn_forward.5} parent=0 // pred_check_branch
    %2294 = sbr.rel (0) target = $region29
  $region28: #{cnn_forward.5} parent=0 // pred_region
    _
  $region29: #{cnn_forward.5} parent=0 // pred_fallthru
    _

</llo_original>
